<compile_context>
chip_gen: v7x
topology: tpu7x:2x2x1
jax: 0.10.0
libtpu: 0.0.40
codegen_flags: <defaults>
</compile_context>

<pallas_src>
import functools

import jax
import jax.numpy as jnp
from jax.experimental import pallas as pl
from jax.experimental.pallas import tpu as pltpu

LEAKY_SLOPE = 0.2
BN_EPS = 1e-5

# Hidden widths are fixed by the module architecture.
H1, H2, H3, H4 = 128, 256, 512, 1024

# Static lane offsets of the packed BN-parameter vector: g2|be2|g3|be3|g4|be4.
# Every offset is a multiple of 128, so slices are vreg-aligned.
_OFF_G2 = 0
_OFF_BE2 = _OFF_G2 + H2
_OFF_G3 = _OFF_BE2 + H2
_OFF_BE3 = _OFF_G3 + H3
_OFF_G4 = _OFF_BE3 + H3
_OFF_BE4 = _OFF_G4 + H4
VEC_LEN = _OFF_BE4 + H4          # 3584

# Per-tile byte budget for the double-buffered int8 w5 tile (safe on all
# generations, incl. v7x's 64 MiB physical VMEM).
_W5_TILE_BUDGET = 4 << 20


def _tiling(out_dim):
    """Return (out_pad, ntiles, tn) for the w5 / output column split."""
    out_pad = ((out_dim + 127) // 128) * 128
    # int8 storage: 1 byte/elem, 2 buffers (double-buffered pipeline).
    max_tn = max(128, (_W5_TILE_BUDGET // (2 * H4)) // 128 * 128)
    cands = [t for t in range(128, out_pad + 1, 128) if out_pad % t == 0]
    # Prefer >= 4 tiles (>= 2 grid steps per TensorCore on dual-core chips) so
    # each core can double-buffer its w5 DMAs; otherwise just respect budget.
    pref = [t for t in cands if t <= max_tn and out_pad // t >= 4]
    fit = [t for t in cands if t <= max_tn]
    tn = max(pref) if pref else (max(fit) if fit else cands[0])
    return out_pad, out_pad // tn, tn


def _leaky_relu(x):
    return jnp.where(x > 0, x, LEAKY_SLOPE * x)


def _batchnorm_train(x, gamma, beta):
    # PyTorch BatchNorm1d in (default) training mode: biased batch statistics.
    mean = jnp.mean(x, axis=0, keepdims=True)
    xc = x - mean                                   # reused for var and norm
    var = jnp.mean(xc * xc, axis=0, keepdims=True)
    inv = jax.lax.rsqrt(var + BN_EPS)
    return xc * inv * gamma + beta


def generator_kernel(labels_ref, t_ref, noise_ref,
                     w1_ref, w2_ref, w3_ref, w4_ref,
                     vec_ref, w5q_ref, sb5_ref, out_ref, *, batch):
    # Folded embedding lookup: temb = (emb @ W1_emb + b1)[labels].  Labels sit
    # in SMEM (scalar prefetch); the tiny (classes, 128) table is VMEM-resident,
    # so gather its rows in-kernel (removes the glue gather HLO).
    rows = [t_ref[pl.ds(labels_ref[i], 1), :] for i in range(batch)]
    temb = jnp.concatenate(rows, axis=0)                          # (B, 128) f32

    # Packed BN gammas / betas (static, lane-aligned slices).
    g2 = vec_ref[:, _OFF_G2:_OFF_G2 + H2]
    be2 = vec_ref[:, _OFF_BE2:_OFF_BE2 + H2]
    g3 = vec_ref[:, _OFF_G3:_OFF_G3 + H3]
    be3 = vec_ref[:, _OFF_BE3:_OFF_BE3 + H3]
    g4 = vec_ref[:, _OFF_G4:_OFF_G4 + H4]
    be4 = vec_ref[:, _OFF_BE4:_OFF_BE4 + H4]

    # Block 1: Linear(latent+classes -> 128) + LeakyReLU.
    # (Embedding part + bias were folded into temb above.)
    x = noise_ref[...].astype(jnp.bfloat16)
    h = jnp.dot(x, w1_ref[...], preferred_element_type=jnp.float32) + temb
    h = _leaky_relu(h)

    # Blocks 2-4: Linear + training-mode BatchNorm1d + LeakyReLU.
    # (Linear biases dropped: they cancel exactly inside training-mode BN.)
    h = jnp.dot(h.astype(jnp.bfloat16), w2_ref[...],
                preferred_element_type=jnp.float32)
    h = _leaky_relu(_batchnorm_train(h, g2, be2))

    h = jnp.dot(h.astype(jnp.bfloat16), w3_ref[...],
                preferred_element_type=jnp.float32)
    h = _leaky_relu(_batchnorm_train(h, g3, be3))

    h = jnp.dot(h.astype(jnp.bfloat16), w4_ref[...],
                preferred_element_type=jnp.float32)
    h = _leaky_relu(_batchnorm_train(h, g4, be4))

    # Output tile: dequantize int8 w5 (ints in [-127,127] are exact in bf16),
    # MXU matmul with f32 accumulation, per-column scale + bias in the f32
    # epilogue, tanh, unmasked lane-dense store.
    w5 = w5q_ref[...].astype(jnp.bfloat16)
    acc = jnp.dot(h.astype(jnp.bfloat16), w5, preferred_element_type=jnp.float32)
    scale = sb5_ref[0:1, :]
    b5 = sb5_ref[1:2, :]
    out_ref[...] = jnp.tanh(acc * scale + b5)


def init_params(key, classes, latent_dim, channels, img_size):
    """Deterministic synthetic parameters matching the PyTorch module shapes,
    pre-processed into the kernel-friendly layout (folds, packing, int8 w5)."""
    out_dim = channels * img_size * img_size
    out_pad, ntiles, tn = _tiling(out_dim)

    keys = jax.random.split(key, 11)
    # nn.Embedding(classes, classes): N(0, 1)
    emb = jax.random.normal(keys[0], (classes, classes), dtype=jnp.float32)

    def linear(kw, kb, fan_in, fan_out):
        bound = float(1.0 / (fan_in ** 0.5))
        w = jax.random.uniform(kw, (fan_in, fan_out), minval=-bound,
                               maxval=bound, dtype=jnp.float32)
        b = jax.random.uniform(kb, (1, fan_out), minval=-bound,
                               maxval=bound, dtype=jnp.float32)
        return w, b

    w1, b1 = linear(keys[1], keys[2], latent_dim + classes, H1)
    w2, _ = linear(keys[3], keys[4], H1, H2)   # bias unused (BN follows)
    w3, _ = linear(keys[5], keys[6], H2, H3)   # bias unused (BN follows)
    w4, _ = linear(keys[7], keys[8], H3, H4)   # bias unused (BN follows)
    w5, b5 = linear(keys[9], keys[10], H4, out_dim)

    p = {}
    # Fold embedding lookup + b1:  z @ W1 + b1
    #   == emb(labels) @ W1[:classes] + noise @ W1[classes:] + b1
    # (the module does torch.cat((emb, noise), -1), so emb rows come first).
    p["T"] = emb @ w1[:classes] + b1                          # (classes, 128) f32
    p["w1n"] = w1[classes:].astype(jnp.bfloat16)              # (latent, 128)
    p["w2"] = w2.astype(jnp.bfloat16)
    p["w3"] = w3.astype(jnp.bfloat16)
    p["w4"] = w4.astype(jnp.bfloat16)

    # int8 per-output-column quantization of the dominant w5, padded to a lane
    # multiple of 128 and pre-packed tile-major so each grid step's DMA is one
    # contiguous block.
    w5p = jnp.pad(w5, ((0, 0), (0, out_pad - out_dim)))       # (H4, out_pad)
    b5p = jnp.pad(b5, ((0, 0), (0, out_pad - out_dim)))       # (1, out_pad)
    absmax = jnp.max(jnp.abs(w5p), axis=0, keepdims=True)
    scale = jnp.where(absmax > 0, absmax / 127.0, 1.0)        # (1, out_pad)
    w5q = jnp.clip(jnp.round(w5p / scale), -127, 127).astype(jnp.int8)
    p["w5q"] = w5q.reshape(H4, ntiles, tn).transpose(1, 0, 2)  # (ntiles, H4, tn)
    sb = jnp.concatenate([scale, b5p], axis=0)                 # (2, out_pad)
    p["sb5"] = sb.reshape(2, ntiles, tn).transpose(1, 0, 2)    # (ntiles, 2, tn)

    # Packed BN params (gamma=1, beta=0 — freshly initialized BatchNorm1d).
    # TODO(synk): BatchNorm running-stat buffer updates (training side effect)
    # are not produced; they do not affect the training-mode forward output.
    p["bn_vec"] = jnp.concatenate(
        [jnp.ones((1, H2)), jnp.zeros((1, H2)),
         jnp.ones((1, H3)), jnp.zeros((1, H3)),
         jnp.ones((1, H4)), jnp.zeros((1, H4))], axis=-1).astype(jnp.float32)
    return p


@functools.partial(jax.jit, static_argnames=("channels", "img_size", "core_split"))
def _generator_forward_impl(noise, labels, params, *, channels, img_size,
                            core_split):
    B, latent_dim = noise.shape
    classes = params["T"].shape[0]
    out_dim = channels * img_size * img_size
    out_pad, ntiles, tn = _tiling(out_dim)

    # Real two-TensorCore split of the w5 stream on dual-core parts; plain
    # serial grid otherwise (or as a compile-time fallback).
    if core_split and ntiles > 1 and ntiles % 2 == 0:
        sem = (pltpu.CORE_PARALLEL,)
    else:
        sem = (pltpu.ARBITRARY,)

    const = lambda j, labels_ref: (0, 0)
    tile3 = lambda j, labels_ref: (j, 0, 0)

    flat = pl.pallas_call(
        functools.partial(generator_kernel, batch=B),
        out_shape=jax.ShapeDtypeStruct((B, out_pad), jnp.float32),
        grid_spec=pltpu.PrefetchScalarGridSpec(
            num_scalar_prefetch=1,          # labels -> SMEM
            grid=(ntiles,),
            in_specs=[
                pl.BlockSpec((classes, H1), const),            # T table (f32)
                pl.BlockSpec((B, latent_dim), const),          # noise (f32)
                pl.BlockSpec((latent_dim, H1), const),         # w1 noise-part (bf16)
                pl.BlockSpec((H1, H2), const),                 # w2 (bf16)
                pl.BlockSpec((H2, H3), const),                 # w3 (bf16)
                pl.BlockSpec((H3, H4), const),                 # w4 (bf16)
                pl.BlockSpec((1, VEC_LEN), const),             # packed BN params (f32)
                pl.BlockSpec((pl.Squeezed(), H4, tn), tile3),  # w5 tile (int8, tile-major)
                pl.BlockSpec((pl.Squeezed(), 2, tn), tile3),   # scale|b5 tile (f32)
            ],
            out_specs=pl.BlockSpec((B, tn), lambda j, labels_ref: (0, j)),
        ),
        compiler_params=pltpu.CompilerParams(
            dimension_semantics=sem,
            vmem_limit_bytes=32 << 20),
    )(labels, params["T"], noise, params["w1n"], params["w2"], params["w3"],
      params["w4"], params["bn_vec"], params["w5q"], params["sb5"])

    # Glue: drop lane padding, reshape to NCHW (x.view(B, C, H, W)).
    return flat[:, :out_dim].reshape(B, channels, img_size, img_size)


# One-shot compile-time fallback: if the backend rejects CORE_PARALLEL for the
# grid axis, fall back to the plain serial grid (identical numerics).
_CORE_SPLIT_STATE = {"ok": None}


def generator_forward(noise, labels, params, *, channels, img_size):
    if _CORE_SPLIT_STATE["ok"] is not False:
        try:
            out = _generator_forward_impl(noise, labels, params,
                                          channels=channels, img_size=img_size,
                                          core_split=True)
            out = jax.block_until_ready(out)
            _CORE_SPLIT_STATE["ok"] = True
            return out
        except Exception:
            _CORE_SPLIT_STATE["ok"] = False
    return jax.block_until_ready(
        _generator_forward_impl(noise, labels, params, channels=channels,
                                img_size=img_size, core_split=False))


if __name__ == "__main__":
    # Module-consistent shapes (hidden widths 128/256/512/1024 are fixed by
    # the architecture; classes/channels/img_size/latent follow the spec).
    classes, channels, img_size, latent_dim = 10, 1, 64, 100
    B = 8

    key = jax.random.PRNGKey(0)
    k_params, k_noise, k_labels = jax.random.split(key, 3)

    params = init_params(k_params, classes, latent_dim, channels, img_size)
    noise = jax.random.normal(k_noise, (B, latent_dim), dtype=jnp.float32)
    labels = jax.random.randint(k_labels, (B,), 0, classes, dtype=jnp.int32)

    out = generator_forward(noise, labels, params,
                            channels=channels, img_size=img_size)
    out = jax.block_until_ready(out)
    assert out.shape == (B, channels, img_size, img_size)
    assert bool(jnp.all(jnp.isfinite(out)))
    assert bool(jnp.all(jnp.abs(out) <= 1.0))   # tanh range sanity check
    print("KERNEL_OK")
</pallas_src>

<mosaic_0001>
module attributes {stable_mosaic.version = 11 : i64} {
  func.func @generator_kernel(%arg0: i32, %arg1: memref<8xi32, #tpu.memory_space<smem>>, %arg2: memref<10x128xf32, #tpu.memory_space<vmem>>, %arg3: memref<8x100xf32, #tpu.memory_space<vmem>>, %arg4: memref<100x128xbf16, #tpu.memory_space<vmem>>, %arg5: memref<128x256xbf16, #tpu.memory_space<vmem>>, %arg6: memref<256x512xbf16, #tpu.memory_space<vmem>>, %arg7: memref<512x1024xbf16, #tpu.memory_space<vmem>>, %arg8: memref<1x3584xf32, #tpu.memory_space<vmem>>, %arg9: memref<1x1024x1024xi8, #tpu.memory_space<vmem>>, %arg10: memref<1x2x1024xf32, #tpu.memory_space<vmem>>, %arg11: memref<8x1024xf32, #tpu.memory_space<vmem>>) attributes {dimension_semantics = [#tpu.dimension_semantics<core_parallel>], iteration_bounds = array<i64: 4>, scalar_prefetch = 1 : i64, scratch_operands = 0 : i64, tpu.core_type = #tpu.core_type<tc>, window_params = [{pipeline_mode = #tpu.pipeline_mode<synchronous>, transform_indices = @transform_0, window_bounds = array<i64: 10, 128>}, {pipeline_mode = #tpu.pipeline_mode<synchronous>, transform_indices = @transform_1, window_bounds = array<i64: 8, 100>}, {pipeline_mode = #tpu.pipeline_mode<synchronous>, transform_indices = @transform_2, window_bounds = array<i64: 100, 128>}, {pipeline_mode = #tpu.pipeline_mode<synchronous>, transform_indices = @transform_3, window_bounds = array<i64: 128, 256>}, {pipeline_mode = #tpu.pipeline_mode<synchronous>, transform_indices = @transform_4, window_bounds = array<i64: 256, 512>}, {pipeline_mode = #tpu.pipeline_mode<synchronous>, transform_indices = @transform_5, window_bounds = array<i64: 512, 1024>}, {pipeline_mode = #tpu.pipeline_mode<synchronous>, transform_indices = @transform_6, window_bounds = array<i64: 1, 3584>}, {transform_indices = @transform_7, window_bounds = array<i64: 1, 1024, 1024>}, {transform_indices = @transform_8, window_bounds = array<i64: 1, 2, 1024>}, {transform_indices = @transform_9, window_bounds = array<i64: 8, 1024>}]} {
    %c0 = arith.constant 0 : index
    %0 = memref.load %arg1[%c0] : memref<8xi32, #tpu.memory_space<smem>>
    %1 = arith.index_cast %0 : i32 to index
    %c0_0 = arith.constant 0 : index
    %2 = vector.load %arg2[%1, %c0_0] : memref<10x128xf32, #tpu.memory_space<vmem>>, vector<1x128xf32>
    %c1 = arith.constant 1 : index
    %3 = memref.load %arg1[%c1] : memref<8xi32, #tpu.memory_space<smem>>
    %4 = arith.index_cast %3 : i32 to index
    %c0_1 = arith.constant 0 : index
    %5 = vector.load %arg2[%4, %c0_1] : memref<10x128xf32, #tpu.memory_space<vmem>>, vector<1x128xf32>
    %c2 = arith.constant 2 : index
    %6 = memref.load %arg1[%c2] : memref<8xi32, #tpu.memory_space<smem>>
    %7 = arith.index_cast %6 : i32 to index
    %c0_2 = arith.constant 0 : index
    %8 = vector.load %arg2[%7, %c0_2] : memref<10x128xf32, #tpu.memory_space<vmem>>, vector<1x128xf32>
    %c3 = arith.constant 3 : index
    %9 = memref.load %arg1[%c3] : memref<8xi32, #tpu.memory_space<smem>>
    %10 = arith.index_cast %9 : i32 to index
    %c0_3 = arith.constant 0 : index
    %11 = vector.load %arg2[%10, %c0_3] : memref<10x128xf32, #tpu.memory_space<vmem>>, vector<1x128xf32>
    %c4 = arith.constant 4 : index
    %12 = memref.load %arg1[%c4] : memref<8xi32, #tpu.memory_space<smem>>
    %13 = arith.index_cast %12 : i32 to index
    %c0_4 = arith.constant 0 : index
    %14 = vector.load %arg2[%13, %c0_4] : memref<10x128xf32, #tpu.memory_space<vmem>>, vector<1x128xf32>
    %c5 = arith.constant 5 : index
    %15 = memref.load %arg1[%c5] : memref<8xi32, #tpu.memory_space<smem>>
    %16 = arith.index_cast %15 : i32 to index
    %c0_5 = arith.constant 0 : index
    %17 = vector.load %arg2[%16, %c0_5] : memref<10x128xf32, #tpu.memory_space<vmem>>, vector<1x128xf32>
    %c6 = arith.constant 6 : index
    %18 = memref.load %arg1[%c6] : memref<8xi32, #tpu.memory_space<smem>>
    %19 = arith.index_cast %18 : i32 to index
    %c0_6 = arith.constant 0 : index
    %20 = vector.load %arg2[%19, %c0_6] : memref<10x128xf32, #tpu.memory_space<vmem>>, vector<1x128xf32>
    %c7 = arith.constant 7 : index
    %21 = memref.load %arg1[%c7] : memref<8xi32, #tpu.memory_space<smem>>
    %22 = arith.index_cast %21 : i32 to index
    %c0_7 = arith.constant 0 : index
    %23 = vector.load %arg2[%22, %c0_7] : memref<10x128xf32, #tpu.memory_space<vmem>>, vector<1x128xf32>
    %24 = tpu.concatenate %2, %5, %8, %11, %14, %17, %20, %23 in 0 : vector<1x128xf32>, vector<1x128xf32>, vector<1x128xf32>, vector<1x128xf32>, vector<1x128xf32>, vector<1x128xf32>, vector<1x128xf32>, vector<1x128xf32> -> vector<8x128xf32>
    %c0_8 = arith.constant 0 : index
    %c0_9 = arith.constant 0 : index
    %25 = vector.load %arg8[%c0_8, %c0_9] : memref<1x3584xf32, #tpu.memory_space<vmem>>, vector<1x256xf32>
    %c0_10 = arith.constant 0 : index
    %c256 = arith.constant 256 : index
    %26 = vector.load %arg8[%c0_10, %c256] : memref<1x3584xf32, #tpu.memory_space<vmem>>, vector<1x256xf32>
    %c0_11 = arith.constant 0 : index
    %c512 = arith.constant 512 : index
    %27 = vector.load %arg8[%c0_11, %c512] : memref<1x3584xf32, #tpu.memory_space<vmem>>, vector<1x512xf32>
    %c0_12 = arith.constant 0 : index
    %c1024 = arith.constant 1024 : index
    %28 = vector.load %arg8[%c0_12, %c1024] : memref<1x3584xf32, #tpu.memory_space<vmem>>, vector<1x512xf32>
    %c0_13 = arith.constant 0 : index
    %c1536 = arith.constant 1536 : index
    %29 = vector.load %arg8[%c0_13, %c1536] : memref<1x3584xf32, #tpu.memory_space<vmem>>, vector<1x1024xf32>
    %c0_14 = arith.constant 0 : index
    %c2560 = arith.constant 2560 : index
    %30 = vector.load %arg8[%c0_14, %c2560] : memref<1x3584xf32, #tpu.memory_space<vmem>>, vector<1x1024xf32>
    %c0_15 = arith.constant 0 : index
    %c0_16 = arith.constant 0 : index
    %31 = vector.load %arg3[%c0_15, %c0_16] : memref<8x100xf32, #tpu.memory_space<vmem>>, vector<8x100xf32>
    %32 = arith.truncf %31 : vector<8x100xf32> to vector<8x100xbf16>
    %c0_17 = arith.constant 0 : index
    %c0_18 = arith.constant 0 : index
    %33 = vector.load %arg4[%c0_17, %c0_18] : memref<100x128xbf16, #tpu.memory_space<vmem>>, vector<100x128xbf16>
    %cst = arith.constant dense<0.000000e+00> : vector<8x128xf32>
    %34 = tpu.matmul %32, %33, %cst {dimension_numbers = #tpu.dot_dimension_numbers<[1], [0], [0], [1], [0, 0, 1, 1], [], []>} : vector<8x100xbf16>, vector<100x128xbf16>, vector<8x128xf32> -> vector<8x128xf32>
    %35 = arith.addf %34, %24 : vector<8x128xf32>
    %cst_19 = arith.constant 0.000000e+00 : f32
    %36 = vector.broadcast %cst_19 : f32 to vector<8x128xf32>
    %37 = arith.cmpf ogt, %35, %36 : vector<8x128xf32>
    %cst_20 = arith.constant 2.000000e-01 : f32
    %38 = vector.broadcast %cst_20 : f32 to vector<8x128xf32>
    %39 = arith.mulf %38, %35 : vector<8x128xf32>
    %40 = arith.select %37, %35, %39 : vector<8x128xi1>, vector<8x128xf32>
    %41 = arith.truncf %40 : vector<8x128xf32> to vector<8x128xbf16>
    %c0_21 = arith.constant 0 : index
    %c0_22 = arith.constant 0 : index
    %42 = vector.load %arg5[%c0_21, %c0_22] : memref<128x256xbf16, #tpu.memory_space<vmem>>, vector<128x256xbf16>
    %cst_23 = arith.constant dense<0.000000e+00> : vector<8x256xf32>
    %43 = tpu.matmul %41, %42, %cst_23 {dimension_numbers = #tpu.dot_dimension_numbers<[1], [0], [0], [1], [0, 0, 1, 1], [], []>} : vector<8x128xbf16>, vector<128x256xbf16>, vector<8x256xf32> -> vector<8x256xf32>
    %cst_24 = arith.constant dense<0.000000e+00> : vector<256xf32>
    %44 = vector.multi_reduction <add>, %43, %cst_24 [0] : vector<8x256xf32> to vector<256xf32>
    %45 = vector.shape_cast %44 : vector<256xf32> to vector<1x256xf32>
    %cst_25 = arith.constant 8.000000e+00 : f32
    %46 = vector.broadcast %cst_25 : f32 to vector<1x256xf32>
    %47 = arith.divf %45, %46 : vector<1x256xf32>
    %48 = vector.broadcast %47 : vector<1x256xf32> to vector<8x256xf32>
    %49 = arith.subf %43, %48 : vector<8x256xf32>
    %50 = arith.mulf %49, %49 : vector<8x256xf32>
    %cst_26 = arith.constant dense<0.000000e+00> : vector<256xf32>
    %51 = vector.multi_reduction <add>, %50, %cst_26 [0] : vector<8x256xf32> to vector<256xf32>
    %52 = vector.shape_cast %51 : vector<256xf32> to vector<1x256xf32>
    %cst_27 = arith.constant 8.000000e+00 : f32
    %53 = vector.broadcast %cst_27 : f32 to vector<1x256xf32>
    %54 = arith.divf %52, %53 : vector<1x256xf32>
    %cst_28 = arith.constant 9.99999974E-6 : f32
    %55 = vector.broadcast %cst_28 : f32 to vector<1x256xf32>
    %56 = arith.addf %54, %55 : vector<1x256xf32>
    %57 = math.rsqrt %56 : vector<1x256xf32>
    %58 = vector.broadcast %57 : vector<1x256xf32> to vector<8x256xf32>
    %59 = arith.mulf %49, %58 : vector<8x256xf32>
    %60 = vector.broadcast %25 : vector<1x256xf32> to vector<8x256xf32>
    %61 = arith.mulf %59, %60 : vector<8x256xf32>
    %62 = vector.broadcast %26 : vector<1x256xf32> to vector<8x256xf32>
    %63 = arith.addf %61, %62 : vector<8x256xf32>
    %cst_29 = arith.constant 0.000000e+00 : f32
    %64 = vector.broadcast %cst_29 : f32 to vector<8x256xf32>
    %65 = arith.cmpf ogt, %63, %64 : vector<8x256xf32>
    %cst_30 = arith.constant 2.000000e-01 : f32
    %66 = vector.broadcast %cst_30 : f32 to vector<8x256xf32>
    %67 = arith.mulf %66, %63 : vector<8x256xf32>
    %68 = arith.select %65, %63, %67 : vector<8x256xi1>, vector<8x256xf32>
    %69 = arith.truncf %68 : vector<8x256xf32> to vector<8x256xbf16>
    %c0_31 = arith.constant 0 : index
    %c0_32 = arith.constant 0 : index
    %70 = vector.load %arg6[%c0_31, %c0_32] : memref<256x512xbf16, #tpu.memory_space<vmem>>, vector<256x512xbf16>
    %cst_33 = arith.constant dense<0.000000e+00> : vector<8x512xf32>
    %71 = tpu.matmul %69, %70, %cst_33 {dimension_numbers = #tpu.dot_dimension_numbers<[1], [0], [0], [1], [0, 0, 1, 1], [], []>} : vector<8x256xbf16>, vector<256x512xbf16>, vector<8x512xf32> -> vector<8x512xf32>
    %cst_34 = arith.constant dense<0.000000e+00> : vector<512xf32>
    %72 = vector.multi_reduction <add>, %71, %cst_34 [0] : vector<8x512xf32> to vector<512xf32>
    %73 = vector.shape_cast %72 : vector<512xf32> to vector<1x512xf32>
    %cst_35 = arith.constant 8.000000e+00 : f32
    %74 = vector.broadcast %cst_35 : f32 to vector<1x512xf32>
    %75 = arith.divf %73, %74 : vector<1x512xf32>
    %76 = vector.broadcast %75 : vector<1x512xf32> to vector<8x512xf32>
    %77 = arith.subf %71, %76 : vector<8x512xf32>
    %78 = arith.mulf %77, %77 : vector<8x512xf32>
    %cst_36 = arith.constant dense<0.000000e+00> : vector<512xf32>
    %79 = vector.multi_reduction <add>, %78, %cst_36 [0] : vector<8x512xf32> to vector<512xf32>
    %80 = vector.shape_cast %79 : vector<512xf32> to vector<1x512xf32>
    %cst_37 = arith.constant 8.000000e+00 : f32
    %81 = vector.broadcast %cst_37 : f32 to vector<1x512xf32>
    %82 = arith.divf %80, %81 : vector<1x512xf32>
    %cst_38 = arith.constant 9.99999974E-6 : f32
    %83 = vector.broadcast %cst_38 : f32 to vector<1x512xf32>
    %84 = arith.addf %82, %83 : vector<1x512xf32>
    %85 = math.rsqrt %84 : vector<1x512xf32>
    %86 = vector.broadcast %85 : vector<1x512xf32> to vector<8x512xf32>
    %87 = arith.mulf %77, %86 : vector<8x512xf32>
    %88 = vector.broadcast %27 : vector<1x512xf32> to vector<8x512xf32>
    %89 = arith.mulf %87, %88 : vector<8x512xf32>
    %90 = vector.broadcast %28 : vector<1x512xf32> to vector<8x512xf32>
    %91 = arith.addf %89, %90 : vector<8x512xf32>
    %cst_39 = arith.constant 0.000000e+00 : f32
    %92 = vector.broadcast %cst_39 : f32 to vector<8x512xf32>
    %93 = arith.cmpf ogt, %91, %92 : vector<8x512xf32>
    %cst_40 = arith.constant 2.000000e-01 : f32
    %94 = vector.broadcast %cst_40 : f32 to vector<8x512xf32>
    %95 = arith.mulf %94, %91 : vector<8x512xf32>
    %96 = arith.select %93, %91, %95 : vector<8x512xi1>, vector<8x512xf32>
    %97 = arith.truncf %96 : vector<8x512xf32> to vector<8x512xbf16>
    %c0_41 = arith.constant 0 : index
    %c0_42 = arith.constant 0 : index
    %98 = vector.load %arg7[%c0_41, %c0_42] : memref<512x1024xbf16, #tpu.memory_space<vmem>>, vector<512x1024xbf16>
    %cst_43 = arith.constant dense<0.000000e+00> : vector<8x1024xf32>
    %99 = tpu.matmul %97, %98, %cst_43 {dimension_numbers = #tpu.dot_dimension_numbers<[1], [0], [0], [1], [0, 0, 1, 1], [], []>} : vector<8x512xbf16>, vector<512x1024xbf16>, vector<8x1024xf32> -> vector<8x1024xf32>
    %cst_44 = arith.constant dense<0.000000e+00> : vector<1024xf32>
    %100 = vector.multi_reduction <add>, %99, %cst_44 [0] : vector<8x1024xf32> to vector<1024xf32>
    %101 = vector.shape_cast %100 : vector<1024xf32> to vector<1x1024xf32>
    %cst_45 = arith.constant 8.000000e+00 : f32
    %102 = vector.broadcast %cst_45 : f32 to vector<1x1024xf32>
    %103 = arith.divf %101, %102 : vector<1x1024xf32>
    %104 = vector.broadcast %103 : vector<1x1024xf32> to vector<8x1024xf32>
    %105 = arith.subf %99, %104 : vector<8x1024xf32>
    %106 = arith.mulf %105, %105 : vector<8x1024xf32>
    %cst_46 = arith.constant dense<0.000000e+00> : vector<1024xf32>
    %107 = vector.multi_reduction <add>, %106, %cst_46 [0] : vector<8x1024xf32> to vector<1024xf32>
    %108 = vector.shape_cast %107 : vector<1024xf32> to vector<1x1024xf32>
    %cst_47 = arith.constant 8.000000e+00 : f32
    %109 = vector.broadcast %cst_47 : f32 to vector<1x1024xf32>
    %110 = arith.divf %108, %109 : vector<1x1024xf32>
    %cst_48 = arith.constant 9.99999974E-6 : f32
    %111 = vector.broadcast %cst_48 : f32 to vector<1x1024xf32>
    %112 = arith.addf %110, %111 : vector<1x1024xf32>
    %113 = math.rsqrt %112 : vector<1x1024xf32>
    %114 = vector.broadcast %113 : vector<1x1024xf32> to vector<8x1024xf32>
    %115 = arith.mulf %105, %114 : vector<8x1024xf32>
    %116 = vector.broadcast %29 : vector<1x1024xf32> to vector<8x1024xf32>
    %117 = arith.mulf %115, %116 : vector<8x1024xf32>
    %118 = vector.broadcast %30 : vector<1x1024xf32> to vector<8x1024xf32>
    %119 = arith.addf %117, %118 : vector<8x1024xf32>
    %cst_49 = arith.constant 0.000000e+00 : f32
    %120 = vector.broadcast %cst_49 : f32 to vector<8x1024xf32>
    %121 = arith.cmpf ogt, %119, %120 : vector<8x1024xf32>
    %cst_50 = arith.constant 2.000000e-01 : f32
    %122 = vector.broadcast %cst_50 : f32 to vector<8x1024xf32>
    %123 = arith.mulf %122, %119 : vector<8x1024xf32>
    %124 = arith.select %121, %119, %123 : vector<8x1024xi1>, vector<8x1024xf32>
    %c0_51 = arith.constant 0 : index
    %c0_52 = arith.constant 0 : index
    %c0_53 = arith.constant 0 : index
    %125 = vector.load %arg9[%c0_51, %c0_52, %c0_53] : memref<1x1024x1024xi8, #tpu.memory_space<vmem>>, vector<1x1024x1024xi8>
    %126 = vector.shape_cast %125 : vector<1x1024x1024xi8> to vector<1024x1024xi8>
    %127 = arith.sitofp %126 : vector<1024x1024xi8> to vector<1024x1024xbf16>
    %128 = arith.truncf %124 : vector<8x1024xf32> to vector<8x1024xbf16>
    %cst_54 = arith.constant dense<0.000000e+00> : vector<8x1024xf32>
    %129 = tpu.matmul %128, %127, %cst_54 {dimension_numbers = #tpu.dot_dimension_numbers<[1], [0], [0], [1], [0, 0, 1, 1], [], []>} : vector<8x1024xbf16>, vector<1024x1024xbf16>, vector<8x1024xf32> -> vector<8x1024xf32>
    %c0_55 = arith.constant 0 : index
    %c0_56 = arith.constant 0 : index
    %c0_57 = arith.constant 0 : index
    %130 = vector.load %arg10[%c0_55, %c0_56, %c0_57] : memref<1x2x1024xf32, #tpu.memory_space<vmem>>, vector<1x1x1024xf32>
    %131 = vector.shape_cast %130 : vector<1x1x1024xf32> to vector<1x1024xf32>
    %c0_58 = arith.constant 0 : index
    %c1_59 = arith.constant 1 : index
    %c0_60 = arith.constant 0 : index
    %132 = vector.load %arg10[%c0_58, %c1_59, %c0_60] : memref<1x2x1024xf32, #tpu.memory_space<vmem>>, vector<1x1x1024xf32>
    %133 = vector.shape_cast %132 : vector<1x1x1024xf32> to vector<1x1024xf32>
    %134 = vector.broadcast %131 : vector<1x1024xf32> to vector<8x1024xf32>
    %135 = arith.mulf %129, %134 : vector<8x1024xf32>
    %136 = vector.broadcast %133 : vector<1x1024xf32> to vector<8x1024xf32>
    %137 = arith.addf %135, %136 : vector<8x1024xf32>
    %138 = math.tanh %137 : vector<8x1024xf32>
    %c0_61 = arith.constant 0 : index
    %c0_62 = arith.constant 0 : index
    %139 = vector.load %arg11[%c0_61, %c0_62] : memref<8x1024xf32, #tpu.memory_space<vmem>>, vector<8x1024xf32>
    tpu.vector_store %arg11[%c0_61, %c0_62], %138 {strides = array<i32>} : memref<8x1024xf32, #tpu.memory_space<vmem>>, vector<8x1024xf32>,
    return
  }
  func.func @transform_0(%arg0: i32, %arg1: memref<8xi32, #tpu.memory_space<smem>>) -> (i32, i32) {
    %c0_i32 = arith.constant 0 : i32
    %c0_i32_0 = arith.constant 0 : i32
    %c0_i32_1 = arith.constant 0 : i32
    return %c0_i32, %c0_i32_0 : i32, i32
  }
  func.func @transform_1(%arg0: i32, %arg1: memref<8xi32, #tpu.memory_space<smem>>) -> (i32, i32) {
    %c0_i32 = arith.constant 0 : i32
    %c0_i32_0 = arith.constant 0 : i32
    %c0_i32_1 = arith.constant 0 : i32
    return %c0_i32, %c0_i32_0 : i32, i32
  }
  func.func @transform_2(%arg0: i32, %arg1: memref<8xi32, #tpu.memory_space<smem>>) -> (i32, i32) {
    %c0_i32 = arith.constant 0 : i32
    %c0_i32_0 = arith.constant 0 : i32
    %c0_i32_1 = arith.constant 0 : i32
    return %c0_i32, %c0_i32_0 : i32, i32
  }
  func.func @transform_3(%arg0: i32, %arg1: memref<8xi32, #tpu.memory_space<smem>>) -> (i32, i32) {
    %c0_i32 = arith.constant 0 : i32
    %c0_i32_0 = arith.constant 0 : i32
    %c0_i32_1 = arith.constant 0 : i32
    return %c0_i32, %c0_i32_0 : i32, i32
  }
  func.func @transform_4(%arg0: i32, %arg1: memref<8xi32, #tpu.memory_space<smem>>) -> (i32, i32) {
    %c0_i32 = arith.constant 0 : i32
    %c0_i32_0 = arith.constant 0 : i32
    %c0_i32_1 = arith.constant 0 : i32
    return %c0_i32, %c0_i32_0 : i32, i32
  }
  func.func @transform_5(%arg0: i32, %arg1: memref<8xi32, #tpu.memory_space<smem>>) -> (i32, i32) {
    %c0_i32 = arith.constant 0 : i32
    %c0_i32_0 = arith.constant 0 : i32
    %c0_i32_1 = arith.constant 0 : i32
    return %c0_i32, %c0_i32_0 : i32, i32
  }
  func.func @transform_6(%arg0: i32, %arg1: memref<8xi32, #tpu.memory_space<smem>>) -> (i32, i32) {
    %c0_i32 = arith.constant 0 : i32
    %c0_i32_0 = arith.constant 0 : i32
    %c0_i32_1 = arith.constant 0 : i32
    return %c0_i32, %c0_i32_0 : i32, i32
  }
  func.func @transform_7(%arg0: i32, %arg1: memref<8xi32, #tpu.memory_space<smem>>) -> (i32, i32, i32) {
    %c0_i32 = arith.constant 0 : i32
    %c0_i32_0 = arith.constant 0 : i32
    %c0_i32_1 = arith.constant 0 : i32
    return %arg0, %c0_i32, %c0_i32_0 : i32, i32, i32
  }
  func.func @transform_8(%arg0: i32, %arg1: memref<8xi32, #tpu.memory_space<smem>>) -> (i32, i32, i32) {
    %c0_i32 = arith.constant 0 : i32
    %c0_i32_0 = arith.constant 0 : i32
    %c0_i32_1 = arith.constant 0 : i32
    return %arg0, %c0_i32, %c0_i32_0 : i32, i32, i32
  }
  func.func @transform_9(%arg0: i32, %arg1: memref<8xi32, #tpu.memory_space<smem>>) -> (i32, i32) {
    %c0_i32 = arith.constant 0 : i32
    %c0_i32_0 = arith.constant 0 : i32
    return %c0_i32, %arg0 : i32, i32
  }
}

module attributes {stable_mosaic.version = 11 : i64} {
  func.func @generator_kernel(%arg0: i32, %arg1: memref<8xi32, #tpu.memory_space<smem>>, %arg2: memref<10x128xf32, #tpu.memory_space<vmem>>, %arg3: memref<8x100xf32, #tpu.memory_space<vmem>>, %arg4: memref<100x128xbf16, #tpu.memory_space<vmem>>, %arg5: memref<128x256xbf16, #tpu.memory_space<vmem>>, %arg6: memref<256x512xbf16, #tpu.memory_space<vmem>>, %arg7: memref<512x1024xbf16, #tpu.memory_space<vmem>>, %arg8: memref<1x3584xf32, #tpu.memory_space<vmem>>, %arg9: memref<1x1024x1024xi8, #tpu.memory_space<vmem>>, %arg10: memref<1x2x1024xf32, #tpu.memory_space<vmem>>, %arg11: memref<8x1024xf32, #tpu.memory_space<vmem>>) attributes {dimension_semantics = [#tpu.dimension_semantics<arbitrary>], iteration_bounds = array<i64: 4>, scalar_prefetch = 1 : i64, scratch_operands = 0 : i64, tpu.core_type = #tpu.core_type<tc>, window_params = [{pipeline_mode = #tpu.pipeline_mode<synchronous>, transform_indices = @transform_0, window_bounds = array<i64: 10, 128>}, {pipeline_mode = #tpu.pipeline_mode<synchronous>, transform_indices = @transform_1, window_bounds = array<i64: 8, 100>}, {pipeline_mode = #tpu.pipeline_mode<synchronous>, transform_indices = @transform_2, window_bounds = array<i64: 100, 128>}, {pipeline_mode = #tpu.pipeline_mode<synchronous>, transform_indices = @transform_3, window_bounds = array<i64: 128, 256>}, {pipeline_mode = #tpu.pipeline_mode<synchronous>, transform_indices = @transform_4, window_bounds = array<i64: 256, 512>}, {pipeline_mode = #tpu.pipeline_mode<synchronous>, transform_indices = @transform_5, window_bounds = array<i64: 512, 1024>}, {pipeline_mode = #tpu.pipeline_mode<synchronous>, transform_indices = @transform_6, window_bounds = array<i64: 1, 3584>}, {transform_indices = @transform_7, window_bounds = array<i64: 1, 1024, 1024>}, {transform_indices = @transform_8, window_bounds = array<i64: 1, 2, 1024>}, {transform_indices = @transform_9, window_bounds = array<i64: 8, 1024>}]} {
    %c0 = arith.constant 0 : index
    %0 = memref.load %arg1[%c0] : memref<8xi32, #tpu.memory_space<smem>>
    %1 = arith.index_cast %0 : i32 to index
    %c0_0 = arith.constant 0 : index
    %2 = vector.load %arg2[%1, %c0_0] : memref<10x128xf32, #tpu.memory_space<vmem>>, vector<1x128xf32>
    %c1 = arith.constant 1 : index
    %3 = memref.load %arg1[%c1] : memref<8xi32, #tpu.memory_space<smem>>
    %4 = arith.index_cast %3 : i32 to index
    %c0_1 = arith.constant 0 : index
    %5 = vector.load %arg2[%4, %c0_1] : memref<10x128xf32, #tpu.memory_space<vmem>>, vector<1x128xf32>
    %c2 = arith.constant 2 : index
    %6 = memref.load %arg1[%c2] : memref<8xi32, #tpu.memory_space<smem>>
    %7 = arith.index_cast %6 : i32 to index
    %c0_2 = arith.constant 0 : index
    %8 = vector.load %arg2[%7, %c0_2] : memref<10x128xf32, #tpu.memory_space<vmem>>, vector<1x128xf32>
    %c3 = arith.constant 3 : index
    %9 = memref.load %arg1[%c3] : memref<8xi32, #tpu.memory_space<smem>>
    %10 = arith.index_cast %9 : i32 to index
    %c0_3 = arith.constant 0 : index
    %11 = vector.load %arg2[%10, %c0_3] : memref<10x128xf32, #tpu.memory_space<vmem>>, vector<1x128xf32>
    %c4 = arith.constant 4 : index
    %12 = memref.load %arg1[%c4] : memref<8xi32, #tpu.memory_space<smem>>
    %13 = arith.index_cast %12 : i32 to index
    %c0_4 = arith.constant 0 : index
    %14 = vector.load %arg2[%13, %c0_4] : memref<10x128xf32, #tpu.memory_space<vmem>>, vector<1x128xf32>
    %c5 = arith.constant 5 : index
    %15 = memref.load %arg1[%c5] : memref<8xi32, #tpu.memory_space<smem>>
    %16 = arith.index_cast %15 : i32 to index
    %c0_5 = arith.constant 0 : index
    %17 = vector.load %arg2[%16, %c0_5] : memref<10x128xf32, #tpu.memory_space<vmem>>, vector<1x128xf32>
    %c6 = arith.constant 6 : index
    %18 = memref.load %arg1[%c6] : memref<8xi32, #tpu.memory_space<smem>>
    %19 = arith.index_cast %18 : i32 to index
    %c0_6 = arith.constant 0 : index
    %20 = vector.load %arg2[%19, %c0_6] : memref<10x128xf32, #tpu.memory_space<vmem>>, vector<1x128xf32>
    %c7 = arith.constant 7 : index
    %21 = memref.load %arg1[%c7] : memref<8xi32, #tpu.memory_space<smem>>
    %22 = arith.index_cast %21 : i32 to index
    %c0_7 = arith.constant 0 : index
    %23 = vector.load %arg2[%22, %c0_7] : memref<10x128xf32, #tpu.memory_space<vmem>>, vector<1x128xf32>
    %24 = tpu.concatenate %2, %5, %8, %11, %14, %17, %20, %23 in 0 : vector<1x128xf32>, vector<1x128xf32>, vector<1x128xf32>, vector<1x128xf32>, vector<1x128xf32>, vector<1x128xf32>, vector<1x128xf32>, vector<1x128xf32> -> vector<8x128xf32>
    %c0_8 = arith.constant 0 : index
    %c0_9 = arith.constant 0 : index
    %25 = vector.load %arg8[%c0_8, %c0_9] : memref<1x3584xf32, #tpu.memory_space<vmem>>, vector<1x256xf32>
    %c0_10 = arith.constant 0 : index
    %c256 = arith.constant 256 : index
    %26 = vector.load %arg8[%c0_10, %c256] : memref<1x3584xf32, #tpu.memory_space<vmem>>, vector<1x256xf32>
    %c0_11 = arith.constant 0 : index
    %c512 = arith.constant 512 : index
    %27 = vector.load %arg8[%c0_11, %c512] : memref<1x3584xf32, #tpu.memory_space<vmem>>, vector<1x512xf32>
    %c0_12 = arith.constant 0 : index
    %c1024 = arith.constant 1024 : index
    %28 = vector.load %arg8[%c0_12, %c1024] : memref<1x3584xf32, #tpu.memory_space<vmem>>, vector<1x512xf32>
    %c0_13 = arith.constant 0 : index
    %c1536 = arith.constant 1536 : index
    %29 = vector.load %arg8[%c0_13, %c1536] : memref<1x3584xf32, #tpu.memory_space<vmem>>, vector<1x1024xf32>
    %c0_14 = arith.constant 0 : index
    %c2560 = arith.constant 2560 : index
    %30 = vector.load %arg8[%c0_14, %c2560] : memref<1x3584xf32, #tpu.memory_space<vmem>>, vector<1x1024xf32>
    %c0_15 = arith.constant 0 : index
    %c0_16 = arith.constant 0 : index
    %31 = vector.load %arg3[%c0_15, %c0_16] : memref<8x100xf32, #tpu.memory_space<vmem>>, vector<8x100xf32>
    %32 = arith.truncf %31 : vector<8x100xf32> to vector<8x100xbf16>
    %c0_17 = arith.constant 0 : index
    %c0_18 = arith.constant 0 : index
    %33 = vector.load %arg4[%c0_17, %c0_18] : memref<100x128xbf16, #tpu.memory_space<vmem>>, vector<100x128xbf16>
    %cst = arith.constant dense<0.000000e+00> : vector<8x128xf32>
    %34 = tpu.matmul %32, %33, %cst {dimension_numbers = #tpu.dot_dimension_numbers<[1], [0], [0], [1], [0, 0, 1, 1], [], []>} : vector<8x100xbf16>, vector<100x128xbf16>, vector<8x128xf32> -> vector<8x128xf32>
    %35 = arith.addf %34, %24 : vector<8x128xf32>
    %cst_19 = arith.constant 0.000000e+00 : f32
    %36 = vector.broadcast %cst_19 : f32 to vector<8x128xf32>
    %37 = arith.cmpf ogt, %35, %36 : vector<8x128xf32>
    %cst_20 = arith.constant 2.000000e-01 : f32
    %38 = vector.broadcast %cst_20 : f32 to vector<8x128xf32>
    %39 = arith.mulf %38, %35 : vector<8x128xf32>
    %40 = arith.select %37, %35, %39 : vector<8x128xi1>, vector<8x128xf32>
    %41 = arith.truncf %40 : vector<8x128xf32> to vector<8x128xbf16>
    %c0_21 = arith.constant 0 : index
    %c0_22 = arith.constant 0 : index
    %42 = vector.load %arg5[%c0_21, %c0_22] : memref<128x256xbf16, #tpu.memory_space<vmem>>, vector<128x256xbf16>
    %cst_23 = arith.constant dense<0.000000e+00> : vector<8x256xf32>
    %43 = tpu.matmul %41, %42, %cst_23 {dimension_numbers = #tpu.dot_dimension_numbers<[1], [0], [0], [1], [0, 0, 1, 1], [], []>} : vector<8x128xbf16>, vector<128x256xbf16>, vector<8x256xf32> -> vector<8x256xf32>
    %cst_24 = arith.constant dense<0.000000e+00> : vector<256xf32>
    %44 = vector.multi_reduction <add>, %43, %cst_24 [0] : vector<8x256xf32> to vector<256xf32>
    %45 = vector.shape_cast %44 : vector<256xf32> to vector<1x256xf32>
    %cst_25 = arith.constant 8.000000e+00 : f32
    %46 = vector.broadcast %cst_25 : f32 to vector<1x256xf32>
    %47 = arith.divf %45, %46 : vector<1x256xf32>
    %48 = vector.broadcast %47 : vector<1x256xf32> to vector<8x256xf32>
    %49 = arith.subf %43, %48 : vector<8x256xf32>
    %50 = arith.mulf %49, %49 : vector<8x256xf32>
    %cst_26 = arith.constant dense<0.000000e+00> : vector<256xf32>
    %51 = vector.multi_reduction <add>, %50, %cst_26 [0] : vector<8x256xf32> to vector<256xf32>
    %52 = vector.shape_cast %51 : vector<256xf32> to vector<1x256xf32>
    %cst_27 = arith.constant 8.000000e+00 : f32
    %53 = vector.broadcast %cst_27 : f32 to vector<1x256xf32>
    %54 = arith.divf %52, %53 : vector<1x256xf32>
    %cst_28 = arith.constant 9.99999974E-6 : f32
    %55 = vector.broadcast %cst_28 : f32 to vector<1x256xf32>
    %56 = arith.addf %54, %55 : vector<1x256xf32>
    %57 = math.rsqrt %56 : vector<1x256xf32>
    %58 = vector.broadcast %57 : vector<1x256xf32> to vector<8x256xf32>
    %59 = arith.mulf %49, %58 : vector<8x256xf32>
    %60 = vector.broadcast %25 : vector<1x256xf32> to vector<8x256xf32>
    %61 = arith.mulf %59, %60 : vector<8x256xf32>
    %62 = vector.broadcast %26 : vector<1x256xf32> to vector<8x256xf32>
    %63 = arith.addf %61, %62 : vector<8x256xf32>
    %cst_29 = arith.constant 0.000000e+00 : f32
    %64 = vector.broadcast %cst_29 : f32 to vector<8x256xf32>
    %65 = arith.cmpf ogt, %63, %64 : vector<8x256xf32>
    %cst_30 = arith.constant 2.000000e-01 : f32
    %66 = vector.broadcast %cst_30 : f32 to vector<8x256xf32>
    %67 = arith.mulf %66, %63 : vector<8x256xf32>
    %68 = arith.select %65, %63, %67 : vector<8x256xi1>, vector<8x256xf32>
    %69 = arith.truncf %68 : vector<8x256xf32> to vector<8x256xbf16>
    %c0_31 = arith.constant 0 : index
    %c0_32 = arith.constant 0 : index
    %70 = vector.load %arg6[%c0_31, %c0_32] : memref<256x512xbf16, #tpu.memory_space<vmem>>, vector<256x512xbf16>
    %cst_33 = arith.constant dense<0.000000e+00> : vector<8x512xf32>
    %71 = tpu.matmul %69, %70, %cst_33 {dimension_numbers = #tpu.dot_dimension_numbers<[1], [0], [0], [1], [0, 0, 1, 1], [], []>} : vector<8x256xbf16>, vector<256x512xbf16>, vector<8x512xf32> -> vector<8x512xf32>
    %cst_34 = arith.constant dense<0.000000e+00> : vector<512xf32>
    %72 = vector.multi_reduction <add>, %71, %cst_34 [0] : vector<8x512xf32> to vector<512xf32>
    %73 = vector.shape_cast %72 : vector<512xf32> to vector<1x512xf32>
    %cst_35 = arith.constant 8.000000e+00 : f32
    %74 = vector.broadcast %cst_35 : f32 to vector<1x512xf32>
    %75 = arith.divf %73, %74 : vector<1x512xf32>
    %76 = vector.broadcast %75 : vector<1x512xf32> to vector<8x512xf32>
    %77 = arith.subf %71, %76 : vector<8x512xf32>
    %78 = arith.mulf %77, %77 : vector<8x512xf32>
    %cst_36 = arith.constant dense<0.000000e+00> : vector<512xf32>
    %79 = vector.multi_reduction <add>, %78, %cst_36 [0] : vector<8x512xf32> to vector<512xf32>
    %80 = vector.shape_cast %79 : vector<512xf32> to vector<1x512xf32>
    %cst_37 = arith.constant 8.000000e+00 : f32
    %81 = vector.broadcast %cst_37 : f32 to vector<1x512xf32>
    %82 = arith.divf %80, %81 : vector<1x512xf32>
    %cst_38 = arith.constant 9.99999974E-6 : f32
    %83 = vector.broadcast %cst_38 : f32 to vector<1x512xf32>
    %84 = arith.addf %82, %83 : vector<1x512xf32>
    %85 = math.rsqrt %84 : vector<1x512xf32>
    %86 = vector.broadcast %85 : vector<1x512xf32> to vector<8x512xf32>
    %87 = arith.mulf %77, %86 : vector<8x512xf32>
    %88 = vector.broadcast %27 : vector<1x512xf32> to vector<8x512xf32>
    %89 = arith.mulf %87, %88 : vector<8x512xf32>
    %90 = vector.broadcast %28 : vector<1x512xf32> to vector<8x512xf32>
    %91 = arith.addf %89, %90 : vector<8x512xf32>
    %cst_39 = arith.constant 0.000000e+00 : f32
    %92 = vector.broadcast %cst_39 : f32 to vector<8x512xf32>
    %93 = arith.cmpf ogt, %91, %92 : vector<8x512xf32>
    %cst_40 = arith.constant 2.000000e-01 : f32
    %94 = vector.broadcast %cst_40 : f32 to vector<8x512xf32>
    %95 = arith.mulf %94, %91 : vector<8x512xf32>
    %96 = arith.select %93, %91, %95 : vector<8x512xi1>, vector<8x512xf32>
    %97 = arith.truncf %96 : vector<8x512xf32> to vector<8x512xbf16>
    %c0_41 = arith.constant 0 : index
    %c0_42 = arith.constant 0 : index
    %98 = vector.load %arg7[%c0_41, %c0_42] : memref<512x1024xbf16, #tpu.memory_space<vmem>>, vector<512x1024xbf16>
    %cst_43 = arith.constant dense<0.000000e+00> : vector<8x1024xf32>
    %99 = tpu.matmul %97, %98, %cst_43 {dimension_numbers = #tpu.dot_dimension_numbers<[1], [0], [0], [1], [0, 0, 1, 1], [], []>} : vector<8x512xbf16>, vector<512x1024xbf16>, vector<8x1024xf32> -> vector<8x1024xf32>
    %cst_44 = arith.constant dense<0.000000e+00> : vector<1024xf32>
    %100 = vector.multi_reduction <add>, %99, %cst_44 [0] : vector<8x1024xf32> to vector<1024xf32>
    %101 = vector.shape_cast %100 : vector<1024xf32> to vector<1x1024xf32>
    %cst_45 = arith.constant 8.000000e+00 : f32
    %102 = vector.broadcast %cst_45 : f32 to vector<1x1024xf32>
    %103 = arith.divf %101, %102 : vector<1x1024xf32>
    %104 = vector.broadcast %103 : vector<1x1024xf32> to vector<8x1024xf32>
    %105 = arith.subf %99, %104 : vector<8x1024xf32>
    %106 = arith.mulf %105, %105 : vector<8x1024xf32>
    %cst_46 = arith.constant dense<0.000000e+00> : vector<1024xf32>
    %107 = vector.multi_reduction <add>, %106, %cst_46 [0] : vector<8x1024xf32> to vector<1024xf32>
    %108 = vector.shape_cast %107 : vector<1024xf32> to vector<1x1024xf32>
    %cst_47 = arith.constant 8.000000e+00 : f32
    %109 = vector.broadcast %cst_47 : f32 to vector<1x1024xf32>
    %110 = arith.divf %108, %109 : vector<1x1024xf32>
    %cst_48 = arith.constant 9.99999974E-6 : f32
    %111 = vector.broadcast %cst_48 : f32 to vector<1x1024xf32>
    %112 = arith.addf %110, %111 : vector<1x1024xf32>
    %113 = math.rsqrt %112 : vector<1x1024xf32>
    %114 = vector.broadcast %113 : vector<1x1024xf32> to vector<8x1024xf32>
    %115 = arith.mulf %105, %114 : vector<8x1024xf32>
    %116 = vector.broadcast %29 : vector<1x1024xf32> to vector<8x1024xf32>
    %117 = arith.mulf %115, %116 : vector<8x1024xf32>
    %118 = vector.broadcast %30 : vector<1x1024xf32> to vector<8x1024xf32>
    %119 = arith.addf %117, %118 : vector<8x1024xf32>
    %cst_49 = arith.constant 0.000000e+00 : f32
    %120 = vector.broadcast %cst_49 : f32 to vector<8x1024xf32>
    %121 = arith.cmpf ogt, %119, %120 : vector<8x1024xf32>
    %cst_50 = arith.constant 2.000000e-01 : f32
    %122 = vector.broadcast %cst_50 : f32 to vector<8x1024xf32>
    %123 = arith.mulf %122, %119 : vector<8x1024xf32>
    %124 = arith.select %121, %119, %123 : vector<8x1024xi1>, vector<8x1024xf32>
    %c0_51 = arith.constant 0 : index
    %c0_52 = arith.constant 0 : index
    %c0_53 = arith.constant 0 : index
    %125 = vector.load %arg9[%c0_51, %c0_52, %c0_53] : memref<1x1024x1024xi8, #tpu.memory_space<vmem>>, vector<1x1024x1024xi8>
    %126 = vector.shape_cast %125 : vector<1x1024x1024xi8> to vector<1024x1024xi8>
    %127 = arith.sitofp %126 : vector<1024x1024xi8> to vector<1024x1024xbf16>
    %128 = arith.truncf %124 : vector<8x1024xf32> to vector<8x1024xbf16>
    %cst_54 = arith.constant dense<0.000000e+00> : vector<8x1024xf32>
    %129 = tpu.matmul %128, %127, %cst_54 {dimension_numbers = #tpu.dot_dimension_numbers<[1], [0], [0], [1], [0, 0, 1, 1], [], []>} : vector<8x1024xbf16>, vector<1024x1024xbf16>, vector<8x1024xf32> -> vector<8x1024xf32>
    %c0_55 = arith.constant 0 : index
    %c0_56 = arith.constant 0 : index
    %c0_57 = arith.constant 0 : index
    %130 = vector.load %arg10[%c0_55, %c0_56, %c0_57] : memref<1x2x1024xf32, #tpu.memory_space<vmem>>, vector<1x1x1024xf32>
    %131 = vector.shape_cast %130 : vector<1x1x1024xf32> to vector<1x1024xf32>
    %c0_58 = arith.constant 0 : index
    %c1_59 = arith.constant 1 : index
    %c0_60 = arith.constant 0 : index
    %132 = vector.load %arg10[%c0_58, %c1_59, %c0_60] : memref<1x2x1024xf32, #tpu.memory_space<vmem>>, vector<1x1x1024xf32>
    %133 = vector.shape_cast %132 : vector<1x1x1024xf32> to vector<1x1024xf32>
    %134 = vector.broadcast %131 : vector<1x1024xf32> to vector<8x1024xf32>
    %135 = arith.mulf %129, %134 : vector<8x1024xf32>
    %136 = vector.broadcast %133 : vector<1x1024xf32> to vector<8x1024xf32>
    %137 = arith.addf %135, %136 : vector<8x1024xf32>
    %138 = math.tanh %137 : vector<8x1024xf32>
    %c0_61 = arith.constant 0 : index
    %c0_62 = arith.constant 0 : index
    %139 = vector.load %arg11[%c0_61, %c0_62] : memref<8x1024xf32, #tpu.memory_space<vmem>>, vector<8x1024xf32>
    tpu.vector_store %arg11[%c0_61, %c0_62], %138 {strides = array<i32>} : memref<8x1024xf32, #tpu.memory_space<vmem>>, vector<8x1024xf32>,
    return
  }
  func.func @transform_0(%arg0: i32, %arg1: memref<8xi32, #tpu.memory_space<smem>>) -> (i32, i32) {
    %c0_i32 = arith.constant 0 : i32
    %c0_i32_0 = arith.constant 0 : i32
    %c0_i32_1 = arith.constant 0 : i32
    return %c0_i32, %c0_i32_0 : i32, i32
  }
  func.func @transform_1(%arg0: i32, %arg1: memref<8xi32, #tpu.memory_space<smem>>) -> (i32, i32) {
    %c0_i32 = arith.constant 0 : i32
    %c0_i32_0 = arith.constant 0 : i32
    %c0_i32_1 = arith.constant 0 : i32
    return %c0_i32, %c0_i32_0 : i32, i32
  }
  func.func @transform_2(%arg0: i32, %arg1: memref<8xi32, #tpu.memory_space<smem>>) -> (i32, i32) {
    %c0_i32 = arith.constant 0 : i32
    %c0_i32_0 = arith.constant 0 : i32
    %c0_i32_1 = arith.constant 0 : i32
    return %c0_i32, %c0_i32_0 : i32, i32
  }
  func.func @transform_3(%arg0: i32, %arg1: memref<8xi32, #tpu.memory_space<smem>>) -> (i32, i32) {
    %c0_i32 = arith.constant 0 : i32
    %c0_i32_0 = arith.constant 0 : i32
    %c0_i32_1 = arith.constant 0 : i32
    return %c0_i32, %c0_i32_0 : i32, i32
  }
  func.func @transform_4(%arg0: i32, %arg1: memref<8xi32, #tpu.memory_space<smem>>) -> (i32, i32) {
    %c0_i32 = arith.constant 0 : i32
    %c0_i32_0 = arith.constant 0 : i32
    %c0_i32_1 = arith.constant 0 : i32
    return %c0_i32, %c0_i32_0 : i32, i32
  }
  func.func @transform_5(%arg0: i32, %arg1: memref<8xi32, #tpu.memory_space<smem>>) -> (i32, i32) {
    %c0_i32 = arith.constant 0 : i32
    %c0_i32_0 = arith.constant 0 : i32
    %c0_i32_1 = arith.constant 0 : i32
    return %c0_i32, %c0_i32_0 : i32, i32
  }
  func.func @transform_6(%arg0: i32, %arg1: memref<8xi32, #tpu.memory_space<smem>>) -> (i32, i32) {
    %c0_i32 = arith.constant 0 : i32
    %c0_i32_0 = arith.constant 0 : i32
    %c0_i32_1 = arith.constant 0 : i32
    return %c0_i32, %c0_i32_0 : i32, i32
  }
  func.func @transform_7(%arg0: i32, %arg1: memref<8xi32, #tpu.memory_space<smem>>) -> (i32, i32, i32) {
    %c0_i32 = arith.constant 0 : i32
    %c0_i32_0 = arith.constant 0 : i32
    %c0_i32_1 = arith.constant 0 : i32
    return %arg0, %c0_i32, %c0_i32_0 : i32, i32, i32
  }
  func.func @transform_8(%arg0: i32, %arg1: memref<8xi32, #tpu.memory_space<smem>>) -> (i32, i32, i32) {
    %c0_i32 = arith.constant 0 : i32
    %c0_i32_0 = arith.constant 0 : i32
    %c0_i32_1 = arith.constant 0 : i32
    return %arg0, %c0_i32, %c0_i32_0 : i32, i32, i32
  }
  func.func @transform_9(%arg0: i32, %arg1: memref<8xi32, #tpu.memory_space<smem>>) -> (i32, i32) {
    %c0_i32 = arith.constant 0 : i32
    %c0_i32_0 = arith.constant 0 : i32
    return %c0_i32, %arg0 : i32, i32
  }
}

</mosaic_0001>

<llo_original>
// kernel: _generator_forward_impl.1
$region0: #{_generator_forward_impl.1}
  #allocation0 [shape = 'u32[]', space=smem, size = 0x4, offset = 0x4, fixed_abs, tag = 'smem constant byte address 0x4 - core index']
  #allocation1 [shape = 'u32[144,128]{1,0:T(1,128)}', space=vmem, size = 0x12000, scoped, tag = 'internal scratch']
  #allocation2 [shape = 's32[1]{0}', space=sflag, size = 0x4, scoped, tag = 'scoped memory for _generator_forward_impl.1']
  #allocation3 [shape = 'u8[512]{0}', space=smem, size = 0x200, scoped, tag = 'prefetched SMEM operand 0']
  %s0 = inlined_call_operand.hbm [shape: s32[8], index: 0, kind: input, shape index: {}]
  %s1 = inlined_call_operand.hbm [shape: f32[10,128], index: 1, kind: input, shape index: {}]
  %s2 = inlined_call_operand.hbm [shape: f32[8,100], index: 2, kind: input, shape index: {}]
  %s3 = inlined_call_operand.hbm [shape: bf16[100,128], index: 3, kind: input, shape index: {}]
  %s4 = inlined_call_operand.hbm [shape: bf16[128,256], index: 4, kind: input, shape index: {}]
  %s5 = inlined_call_operand.hbm [shape: bf16[256,512], index: 5, kind: input, shape index: {}]
  %s6 = inlined_call_operand.hbm [shape: bf16[512,1024], index: 6, kind: input, shape index: {}]
  %s7 = inlined_call_operand.hbm [shape: f32[1,3584], index: 7, kind: input, shape index: {}]
  %s8 = inlined_call_operand.hbm [shape: s8[4,1024,1024], index: 8, kind: input, shape index: {}]
  %s9 = inlined_call_operand.hbm [shape: f32[4,2,1024], index: 9, kind: input, shape index: {}]
  %s10 = inlined_call_operand.vmem [shape: f32[8,4096], index: 10, kind: output, shape index: {}]
  %s11 = sld [smem:[#allocation0]]
  $region105: #{_generator_forward_impl.1} parent=0
    _
  %s13 = ssub.s32 1, %s11
  %s14 = scalar_select 0, %s13, %s11
  %16 = dma.hbm_to_smem %s0, 16, [#allocation3], [#allocation2]
  %17 = dma.done [#allocation2], 16
  %18 = sfence
  $region1: #{_generator_forward_impl.1} parent=0
    #allocation4 [shape = 'u8[8192]{0}', space=vmem, size = 0x2000, scoped, tag = 'input window, operand 1, single buffered']
    #allocation5 [shape = 's32[2]{0}', space=sflag, size = 0x8, scoped, tag = 'scoped memory for _generator_forward_impl.1']
    #allocation6 [shape = 'u8[4096]{0}', space=vmem, size = 0x1000, scoped, tag = 'input window, operand 2, single buffered']
    #allocation7 [shape = 's32[1]{0}', space=sflag, size = 0x4, scoped, tag = 'scoped memory for _generator_forward_impl.1']
    #allocation8 [shape = 'u8[26624]{0}', space=vmem, size = 0x6800, scoped, tag = 'input window, operand 3, single buffered']
    #allocation9 [shape = 'u8[65536]{0}', space=vmem, size = 0x10000, scoped, tag = 'input window, operand 4, single buffered']
    #allocation10 [shape = 's32[1]{0}', space=sflag, size = 0x4, scoped, tag = 'scoped memory for _generator_forward_impl.1']
    #allocation11 [shape = 'u8[262144]{0}', space=vmem, size = 0x40000, scoped, tag = 'input window, operand 5, single buffered']
    #allocation12 [shape = 'u8[1048576]{0}', space=vmem, size = 0x100000, scoped, tag = 'input window, operand 6, single buffered']
    #allocation13 [shape = 's32[1]{0}', space=sflag, size = 0x4, scoped, tag = 'scoped memory for _generator_forward_impl.1']
    #allocation14 [shape = 'u8[14336]{0}', space=vmem, size = 0x3800, scoped, tag = 'input window, operand 7, single buffered']
    #allocation15 [shape = 'u8[2097152]{0}', space=vmem, size = 0x200000, scoped, tag = 'input window, operand 8']
    #allocation16 [shape = 's32[2]{0}', space=sflag, size = 0x8, scoped, tag = 'scoped memory for _generator_forward_impl.1']
    #allocation17 [shape = 'u8[16384]{0}', space=vmem, size = 0x4000, scoped, tag = 'input window, operand 9']
    %19 = vsyncpa [#allocation5], 0
    %20 = vsyncpa [#allocation7], 0
    %21 = vsyncpa [#allocation10], 0
    %22 = vsyncpa [#allocation13], 0
    %23 = vsyncpa [#allocation16], 0
    %s24 = scalar_lea.sflag [#allocation16], 1
    %25 = vsyncpa %s24, 0
    loop: start=0, step=1, limit=6
    $region2: #{_generator_forward_impl.1} parent=1 // loop_pre_header
      _
    $region3: #{_generator_forward_impl.1} parent=1 // loop_header
      %s27 = sphi 0, %s31
      %p28 = scmp.ge.s32.totalorder %s27, 6
      %s35 = sphi 0, %s35
      %s37 = sphi 0, %s35
      %s38 = sphi 0, %s37
      %s52 = sphi 0, %s38
      %s56 = sphi 0, %s56
      %s58 = sphi 0, %s56
      %s59 = sphi 0, %s58
      %s73 = sphi 0, %s59
      %s77 = sphi 0, %s77
      %s79 = sphi 0, %s77
      %s80 = sphi 0, %s79
      %s94 = sphi 0, %s80
      %s98 = sphi 0, %s98
      %s100 = sphi 0, %s98
      %s101 = sphi 0, %s100
      %s115 = sphi 0, %s101
      %s119 = sphi 0, %s119
      %s121 = sphi 0, %s119
      %s122 = sphi 0, %s121
      %s136 = sphi 0, %s122
      %s140 = sphi 0, %s140
      %s142 = sphi 0, %s140
      %s143 = sphi 0, %s142
      %s157 = sphi 0, %s143
      %s161 = sphi 0, %s161
      %s163 = sphi 0, %s161
      %s164 = sphi 0, %s163
      %s178 = sphi 0, %s164
      %s184 = sphi 0, %s186
      %s187 = sphi 0, %s184
      %s188 = sphi 0, %s187
      %s204 = sphi 0, %s188
      %s210 = sphi 0, %s212
      %s213 = sphi 0, %s210
      %s214 = sphi 0, %s213
      %s230 = sphi 0, %s214
      %s236 = sphi 0, %s238
      %s239 = sphi 0, %s236
      %s240 = sphi 0, %s239
      %s256 = sphi 0, %s240
    $region4: #{_generator_forward_impl.1} parent=1 // loop_header_branch
      %30 = sbr.rel (%p28) target = $region8
    $region5: #{_generator_forward_impl.1} parent=1 // loop_body
      %s32 = ssub.s32 %s27, 1
      %s33 = ssub.s32 %s27, 2
      %s34 = sadd.s32 %s27, 1
      %s36 = sadd.s32 %s35, 1
      %p39 = scmp.eq.s32.totalorder %s27, 3
      %p40 = scmp.ne.s32.totalorder %s35, %s37
      %p41 = scmp.eq.s32.totalorder %s27, 0
      %p42 = por %p40, %p41
      %p43 = scmp.ne.s32.totalorder %s35, %s37
      %p44 = scmp.eq.s32.totalorder %s32, 3
      %p45 = por %p43, %p44
      %p46 = scmp.ne.s32.totalorder %s37, %s38
      %p47 = scmp.eq.s32.totalorder %s32, 0
      %p48 = por %p46, %p47
      %p49 = scmp.ne.s32.totalorder %s37, %s38
      %p50 = scmp.eq.s32.totalorder %s33, 3
      %p51 = por %p49, %p50
      %p53 = scmp.ne.s32.totalorder %s38, %s52
      %p54 = scmp.eq.s32.totalorder %s33, 0
      %p55 = por %p53, %p54
      %s57 = sadd.s32 %s56, 1
      %p60 = scmp.eq.s32.totalorder %s27, 3
      %p61 = scmp.ne.s32.totalorder %s56, %s58
      %p62 = scmp.eq.s32.totalorder %s27, 0
      %p63 = por %p61, %p62
      %p64 = scmp.ne.s32.totalorder %s56, %s58
      %p65 = scmp.eq.s32.totalorder %s32, 3
      %p66 = por %p64, %p65
      %p67 = scmp.ne.s32.totalorder %s58, %s59
      %p68 = scmp.eq.s32.totalorder %s32, 0
      %p69 = por %p67, %p68
      %p70 = scmp.ne.s32.totalorder %s58, %s59
      %p71 = scmp.eq.s32.totalorder %s33, 3
      %p72 = por %p70, %p71
      %p74 = scmp.ne.s32.totalorder %s59, %s73
      %p75 = scmp.eq.s32.totalorder %s33, 0
      %p76 = por %p74, %p75
      %s78 = sadd.s32 %s77, 1
      %p81 = scmp.eq.s32.totalorder %s27, 3
      %p82 = scmp.ne.s32.totalorder %s77, %s79
      %p83 = scmp.eq.s32.totalorder %s27, 0
      %p84 = por %p82, %p83
      %p85 = scmp.ne.s32.totalorder %s77, %s79
      %p86 = scmp.eq.s32.totalorder %s32, 3
      %p87 = por %p85, %p86
      %p88 = scmp.ne.s32.totalorder %s79, %s80
      %p89 = scmp.eq.s32.totalorder %s32, 0
      %p90 = por %p88, %p89
      %p91 = scmp.ne.s32.totalorder %s79, %s80
      %p92 = scmp.eq.s32.totalorder %s33, 3
      %p93 = por %p91, %p92
      %p95 = scmp.ne.s32.totalorder %s80, %s94
      %p96 = scmp.eq.s32.totalorder %s33, 0
      %p97 = por %p95, %p96
      %s99 = sadd.s32 %s98, 1
      %p102 = scmp.eq.s32.totalorder %s27, 3
      %p103 = scmp.ne.s32.totalorder %s98, %s100
      %p104 = scmp.eq.s32.totalorder %s27, 0
      %p105 = por %p103, %p104
      %p106 = scmp.ne.s32.totalorder %s98, %s100
      %p107 = scmp.eq.s32.totalorder %s32, 3
      %p108 = por %p106, %p107
      %p109 = scmp.ne.s32.totalorder %s100, %s101
      %p110 = scmp.eq.s32.totalorder %s32, 0
      %p111 = por %p109, %p110
      %p112 = scmp.ne.s32.totalorder %s100, %s101
      %p113 = scmp.eq.s32.totalorder %s33, 3
      %p114 = por %p112, %p113
      %p116 = scmp.ne.s32.totalorder %s101, %s115
      %p117 = scmp.eq.s32.totalorder %s33, 0
      %p118 = por %p116, %p117
      %s120 = sadd.s32 %s119, 1
      %p123 = scmp.eq.s32.totalorder %s27, 3
      %p124 = scmp.ne.s32.totalorder %s119, %s121
      %p125 = scmp.eq.s32.totalorder %s27, 0
      %p126 = por %p124, %p125
      %p127 = scmp.ne.s32.totalorder %s119, %s121
      %p128 = scmp.eq.s32.totalorder %s32, 3
      %p129 = por %p127, %p128
      %p130 = scmp.ne.s32.totalorder %s121, %s122
      %p131 = scmp.eq.s32.totalorder %s32, 0
      %p132 = por %p130, %p131
      %p133 = scmp.ne.s32.totalorder %s121, %s122
      %p134 = scmp.eq.s32.totalorder %s33, 3
      %p135 = por %p133, %p134
      %p137 = scmp.ne.s32.totalorder %s122, %s136
      %p138 = scmp.eq.s32.totalorder %s33, 0
      %p139 = por %p137, %p138
      %s141 = sadd.s32 %s140, 1
      %p144 = scmp.eq.s32.totalorder %s27, 3
      %p145 = scmp.ne.s32.totalorder %s140, %s142
      %p146 = scmp.eq.s32.totalorder %s27, 0
      %p147 = por %p145, %p146
      %p148 = scmp.ne.s32.totalorder %s140, %s142
      %p149 = scmp.eq.s32.totalorder %s32, 3
      %p150 = por %p148, %p149
      %p151 = scmp.ne.s32.totalorder %s142, %s143
      %p152 = scmp.eq.s32.totalorder %s32, 0
      %p153 = por %p151, %p152
      %p154 = scmp.ne.s32.totalorder %s142, %s143
      %p155 = scmp.eq.s32.totalorder %s33, 3
      %p156 = por %p154, %p155
      %p158 = scmp.ne.s32.totalorder %s143, %s157
      %p159 = scmp.eq.s32.totalorder %s33, 0
      %p160 = por %p158, %p159
      %s162 = sadd.s32 %s161, 1
      %p165 = scmp.eq.s32.totalorder %s27, 3
      %p166 = scmp.ne.s32.totalorder %s161, %s163
      %p167 = scmp.eq.s32.totalorder %s27, 0
      %p168 = por %p166, %p167
      %p169 = scmp.ne.s32.totalorder %s161, %s163
      %p170 = scmp.eq.s32.totalorder %s32, 3
      %p171 = por %p169, %p170
      %p172 = scmp.ne.s32.totalorder %s163, %s164
      %p173 = scmp.eq.s32.totalorder %s32, 0
      %p174 = por %p172, %p173
      %p175 = scmp.ne.s32.totalorder %s163, %s164
      %p176 = scmp.eq.s32.totalorder %s33, 3
      %p177 = por %p175, %p176
      %p179 = scmp.ne.s32.totalorder %s164, %s178
      %p180 = scmp.eq.s32.totalorder %s33, 0
      %p181 = por %p179, %p180
      %s182 = ssub.s32 %s27, %s34
      %p183 = scmp.eq.s32.totalorder %s182, 0
      %s185 = sadd.s32 %s184, 1
      %s186 = scalar_select %p183, %s184, %s185
      %p189 = pneg %p183
      %p190 = scmp.eq.s32.totalorder %s27, 3
      %p191 = por %p189, %p190
      %p192 = scmp.ne.s32.totalorder %s184, %s187
      %p193 = scmp.eq.s32.totalorder %s27, 0
      %p194 = por %p192, %p193
      %p195 = scmp.ne.s32.totalorder %s184, %s187
      %p196 = scmp.eq.s32.totalorder %s32, 3
      %p197 = por %p195, %p196
      %p198 = scmp.ne.s32.totalorder %s187, %s188
      %p199 = scmp.eq.s32.totalorder %s32, 0
      %p200 = por %p198, %p199
      %p201 = scmp.ne.s32.totalorder %s187, %s188
      %p202 = scmp.eq.s32.totalorder %s33, 3
      %p203 = por %p201, %p202
      %p205 = scmp.ne.s32.totalorder %s188, %s204
      %p206 = scmp.eq.s32.totalorder %s33, 0
      %p207 = por %p205, %p206
      %s208 = ssub.s32 %s27, %s34
      %p209 = scmp.eq.s32.totalorder %s208, 0
      %s211 = sadd.s32 %s210, 1
      %s212 = scalar_select %p209, %s210, %s211
      %p215 = pneg %p209
      %p216 = scmp.eq.s32.totalorder %s27, 3
      %p217 = por %p215, %p216
      %p218 = scmp.ne.s32.totalorder %s210, %s213
      %p219 = scmp.eq.s32.totalorder %s27, 0
      %p220 = por %p218, %p219
      %p221 = scmp.ne.s32.totalorder %s210, %s213
      %p222 = scmp.eq.s32.totalorder %s32, 3
      %p223 = por %p221, %p222
      %p224 = scmp.ne.s32.totalorder %s213, %s214
      %p225 = scmp.eq.s32.totalorder %s32, 0
      %p226 = por %p224, %p225
      %p227 = scmp.ne.s32.totalorder %s213, %s214
      %p228 = scmp.eq.s32.totalorder %s33, 3
      %p229 = por %p227, %p228
      %p231 = scmp.ne.s32.totalorder %s214, %s230
      %p232 = scmp.eq.s32.totalorder %s33, 0
      %p233 = por %p231, %p232
      %s234 = ssub.s32 %s27, %s34
      %p235 = scmp.eq.s32.totalorder %s234, 0
      %s237 = sadd.s32 %s236, 1
      %s238 = scalar_select %p235, %s236, %s237
      %p241 = pneg %p235
      %p242 = scmp.eq.s32.totalorder %s27, 3
      %p243 = por %p241, %p242
      %p244 = scmp.ne.s32.totalorder %s236, %s239
      %p245 = scmp.eq.s32.totalorder %s27, 0
      %p246 = por %p244, %p245
      %p247 = scmp.ne.s32.totalorder %s236, %s239
      %p248 = scmp.eq.s32.totalorder %s32, 3
      %p249 = por %p247, %p248
      %p250 = scmp.ne.s32.totalorder %s239, %s240
      %p251 = scmp.eq.s32.totalorder %s32, 0
      %p252 = por %p250, %p251
      %p253 = scmp.ne.s32.totalorder %s239, %s240
      %p254 = scmp.eq.s32.totalorder %s33, 3
      %p255 = por %p253, %p254
      %p257 = scmp.ne.s32.totalorder %s240, %s256
      %p258 = scmp.eq.s32.totalorder %s33, 0
      %p259 = por %p257, %p258
      %p260 = scmp.le.s32.totalorder 1, %s27
      %p261 = scmp.lt.s32.totalorder %s27, 5
      %p262 = pnand %p260, %p261
      %p263 = pneg %p262
      // Predicated region
      $region9: #{_generator_forward_impl.1} parent=5 // pred_check
        _
      $region10: #{_generator_forward_impl.1} parent=5 // pred_check_branch
        %265 = sbr.rel (%p262) target = $region12
      $region11: #{_generator_forward_impl.1} parent=5 // pred_region
        %s266 = ssub.s32 %s27, 1
        // Predicated region
        $region13: #{_generator_forward_impl.1} parent=11 // pred_check
          %p267 = pneg %p48
        $region14: #{_generator_forward_impl.1} parent=11 // pred_check_branch
          %269 = sbr.rel (%p267) target = $region16
        $region15: #{_generator_forward_impl.1} parent=11 // pred_region
          %s271 = ssub.s32 256, 256
          %272 = vsyncadd [#allocation5], %s271
          %s273 = sshll.u32 [#allocation4], 4
          %s274 = int_to_ptr.vmem [resolvable:$true] %s273
          %279 = dma.hbm_to_vmem [thread:$0]  %s1, 256, %s274, [#allocation5], 128, 128, 8
        $region16: #{_generator_forward_impl.1} parent=11 // pred_fallthru
          _
        // Predicated region
        $region17: #{_generator_forward_impl.1} parent=11 // pred_check
          %p280 = pneg %p69
        $region18: #{_generator_forward_impl.1} parent=11 // pred_check_branch
          %282 = sbr.rel (%p280) target = $region20
        $region19: #{_generator_forward_impl.1} parent=11 // pred_region
          %s284 = ssub.s32 128, 128
          %285 = vsyncadd [#allocation7], %s284
          %s287 = sshll.u32 [#allocation6], 4
          %s288 = int_to_ptr.vmem [resolvable:$true] %s287
          %290 = dma.hbm_to_vmem [thread:$0]  %s2, 128, %s288, [#allocation7]
        $region20: #{_generator_forward_impl.1} parent=11 // pred_fallthru
          _
        // Predicated region
        $region21: #{_generator_forward_impl.1} parent=11 // pred_check
          %p291 = pneg %p90
        $region22: #{_generator_forward_impl.1} parent=11 // pred_check_branch
          %293 = sbr.rel (%p291) target = $region24
        $region23: #{_generator_forward_impl.1} parent=11 // pred_region
          %s295 = ssub.s32 832, 832
          %296 = vsyncadd [#allocation7], %s295
          %s297 = sshll.u32 [#allocation8], 4
          %s298 = int_to_ptr.vmem [resolvable:$true] %s297
          %303 = dma.hbm_to_vmem [thread:$0]  %s3, 832, %s298, [#allocation7], 64, 64, 4
        $region24: #{_generator_forward_impl.1} parent=11 // pred_fallthru
          _
        // Predicated region
        $region25: #{_generator_forward_impl.1} parent=11 // pred_check
          %p304 = pneg %p111
        $region26: #{_generator_forward_impl.1} parent=11 // pred_check_branch
          %306 = sbr.rel (%p304) target = $region28
        $region27: #{_generator_forward_impl.1} parent=11 // pred_region
          %s308 = ssub.s32 2048, 2048
          %309 = vsyncadd [#allocation10], %s308
          %s310 = sshll.u32 [#allocation9], 4
          %s311 = int_to_ptr.vmem [resolvable:$true] %s310
          %316 = dma.hbm_to_vmem [thread:$0]  %s4, 2048, %s311, [#allocation10], 128, 128, 8
        $region28: #{_generator_forward_impl.1} parent=11 // pred_fallthru
          _
        // Predicated region
        $region29: #{_generator_forward_impl.1} parent=11 // pred_check
          %p317 = pneg %p132
        $region30: #{_generator_forward_impl.1} parent=11 // pred_check_branch
          %319 = sbr.rel (%p317) target = $region32
        $region31: #{_generator_forward_impl.1} parent=11 // pred_region
          %s321 = ssub.s32 8192, 8192
          %322 = vsyncadd [#allocation10], %s321
          %s323 = sshll.u32 [#allocation11], 4
          %s324 = int_to_ptr.vmem [resolvable:$true] %s323
          %329 = dma.hbm_to_vmem [thread:$0]  %s5, 8192, %s324, [#allocation10], 256, 256, 16
        $region32: #{_generator_forward_impl.1} parent=11 // pred_fallthru
          _
        // Predicated region
        $region33: #{_generator_forward_impl.1} parent=11 // pred_check
          %p330 = pneg %p153
        $region34: #{_generator_forward_impl.1} parent=11 // pred_check_branch
          %332 = sbr.rel (%p330) target = $region36
        $region35: #{_generator_forward_impl.1} parent=11 // pred_region
          %s334 = ssub.s32 32768, 32768
          %335 = vsyncadd [#allocation13], %s334
          %s336 = sshll.u32 [#allocation12], 4
          %s337 = int_to_ptr.vmem [resolvable:$true] %s336
          %342 = dma.hbm_to_vmem [thread:$0]  %s6, 32768, %s337, [#allocation13], 512, 512, 32
        $region36: #{_generator_forward_impl.1} parent=11 // pred_fallthru
          _
        // Predicated region
        $region37: #{_generator_forward_impl.1} parent=11 // pred_check
          %p343 = pneg %p174
        $region38: #{_generator_forward_impl.1} parent=11 // pred_check_branch
          %345 = sbr.rel (%p343) target = $region40
        $region39: #{_generator_forward_impl.1} parent=11 // pred_region
          %s347 = ssub.s32 448, 448
          %348 = vsyncadd [#allocation13], %s347
          %s350 = sshll.u32 [#allocation14], 4
          %s351 = int_to_ptr.vmem [resolvable:$true] %s350
          %353 = dma.hbm_to_vmem [thread:$0]  %s7, 448, %s351, [#allocation13]
        $region40: #{_generator_forward_impl.1} parent=11 // pred_fallthru
          _
      $region12: #{_generator_forward_impl.1} parent=5 // pred_fallthru
        _
      %p354 = scmp.lt.s32.totalorder %s27, 4
      // Predicated region
      $region41: #{_generator_forward_impl.1} parent=5 // pred_check
        %p355 = pneg %p354
      $region42: #{_generator_forward_impl.1} parent=5 // pred_check_branch
        %357 = sbr.rel (%p355) target = $region44
      $region43: #{_generator_forward_impl.1} parent=5 // pred_region
        // Predicated region
        $region45: #{_generator_forward_impl.1} parent=43 // pred_check
          %p358 = pneg %p194
        $region46: #{_generator_forward_impl.1} parent=43 // pred_check_branch
          %360 = sbr.rel (%p358) target = $region48
        $region47: #{_generator_forward_impl.1} parent=43 // pred_region
          %s361 = sand.u32 %s27, 1
          %s362 = scalar_lea.sflag [#allocation16], %s361
          %s363 = sand.u32 %s184, 1
          %s364 = smul.addr %s363, 2048
          %s365 = scalar_lea.vmem [#allocation15], %s364
          %s367 = ssub.s32 32768, 32768
          %368 = vsyncadd %s362, %s367
          %s369 = smul.addr %s27, 256
          %s370 = smul.addr %s369, 128
          %s371 = scalar_lea.hbm %s8, %s370
          %s372 = sshll.u32 %s365, 4
          %s373 = int_to_ptr.vmem [resolvable:$true] %s372
          %378 = dma.hbm_to_vmem [thread:$0]  %s371, 32768, %s373, %s362, 1024, 1024, 64
        $region48: #{_generator_forward_impl.1} parent=43 // pred_fallthru
          _
        // Predicated region
        $region49: #{_generator_forward_impl.1} parent=43 // pred_check
          %p379 = pneg %p220
        $region50: #{_generator_forward_impl.1} parent=43 // pred_check_branch
          %381 = sbr.rel (%p379) target = $region52
        $region51: #{_generator_forward_impl.1} parent=43 // pred_region
          %s382 = sand.u32 %s27, 1
          %s383 = scalar_lea.sflag [#allocation16], %s382
          %s384 = sand.u32 %s210, 1
          %s385 = smul.addr %s384, 16
          %s386 = scalar_lea.vmem [#allocation17], %s385
          %s388 = ssub.s32 256, 256
          %389 = vsyncadd %s383, %s388
          %s390 = smul.addr %s27, 8
          %s391 = smul.addr %s390, 32
          %s392 = scalar_lea.hbm %s9, %s391
          %s394 = sshll.u32 %s386, 4
          %s395 = int_to_ptr.vmem [resolvable:$true] %s394
          %397 = dma.hbm_to_vmem [thread:$0]  %s392, 256, %s395, %s383
        $region52: #{_generator_forward_impl.1} parent=43 // pred_fallthru
          _
      $region44: #{_generator_forward_impl.1} parent=5 // pred_fallthru
        _
      %p398 = scmp.le.s32.totalorder 1, %s27
      %p399 = scmp.lt.s32.totalorder %s27, 5
      %p400 = pnand %p398, %p399
      %p401 = pneg %p400
      // Predicated region
      $region53: #{_generator_forward_impl.1} parent=5 // pred_check
        _
      $region54: #{_generator_forward_impl.1} parent=5 // pred_check_branch
        %403 = sbr.rel (%p400) target = $region56
      $region55: #{_generator_forward_impl.1} parent=5 // pred_region
        %s404 = ssub.s32 %s27, 1
        // Predicated region
        $region57: #{_generator_forward_impl.1} parent=55 // pred_check
          %p405 = pneg %p48
        $region58: #{_generator_forward_impl.1} parent=55 // pred_check_branch
          %407 = sbr.rel (%p405) target = $region60
        $region59: #{_generator_forward_impl.1} parent=55 // pred_region
          %408 = dma.done [#allocation5], 256
        $region60: #{_generator_forward_impl.1} parent=55 // pred_fallthru
          _
        // Predicated region
        $region61: #{_generator_forward_impl.1} parent=55 // pred_check
          %p409 = pneg %p69
        $region62: #{_generator_forward_impl.1} parent=55 // pred_check_branch
          %411 = sbr.rel (%p409) target = $region64
        $region63: #{_generator_forward_impl.1} parent=55 // pred_region
          %412 = dma.done [#allocation7], 128
        $region64: #{_generator_forward_impl.1} parent=55 // pred_fallthru
          _
        // Predicated region
        $region65: #{_generator_forward_impl.1} parent=55 // pred_check
          %p413 = pneg %p90
        $region66: #{_generator_forward_impl.1} parent=55 // pred_check_branch
          %415 = sbr.rel (%p413) target = $region68
        $region67: #{_generator_forward_impl.1} parent=55 // pred_region
          %416 = dma.done [#allocation7], 832
        $region68: #{_generator_forward_impl.1} parent=55 // pred_fallthru
          _
        // Predicated region
        $region69: #{_generator_forward_impl.1} parent=55 // pred_check
          %p417 = pneg %p111
        $region70: #{_generator_forward_impl.1} parent=55 // pred_check_branch
          %419 = sbr.rel (%p417) target = $region72
        $region71: #{_generator_forward_impl.1} parent=55 // pred_region
          %420 = dma.done [#allocation10], 2048
        $region72: #{_generator_forward_impl.1} parent=55 // pred_fallthru
          _
        // Predicated region
        $region73: #{_generator_forward_impl.1} parent=55 // pred_check
          %p421 = pneg %p132
        $region74: #{_generator_forward_impl.1} parent=55 // pred_check_branch
          %423 = sbr.rel (%p421) target = $region76
        $region75: #{_generator_forward_impl.1} parent=55 // pred_region
          %424 = dma.done [#allocation10], 8192
        $region76: #{_generator_forward_impl.1} parent=55 // pred_fallthru
          _
        // Predicated region
        $region77: #{_generator_forward_impl.1} parent=55 // pred_check
          %p425 = pneg %p153
        $region78: #{_generator_forward_impl.1} parent=55 // pred_check_branch
          %427 = sbr.rel (%p425) target = $region80
        $region79: #{_generator_forward_impl.1} parent=55 // pred_region
          %428 = dma.done [#allocation13], 32768
        $region80: #{_generator_forward_impl.1} parent=55 // pred_fallthru
          _
        // Predicated region
        $region81: #{_generator_forward_impl.1} parent=55 // pred_check
          %p429 = pneg %p174
        $region82: #{_generator_forward_impl.1} parent=55 // pred_check_branch
          %431 = sbr.rel (%p429) target = $region84
        $region83: #{_generator_forward_impl.1} parent=55 // pred_region
          %432 = dma.done [#allocation13], 448
        $region84: #{_generator_forward_impl.1} parent=55 // pred_fallthru
          _
        %s433 = sand.u32 %s32, 1
        %s434 = scalar_lea.sflag [#allocation16], %s433
        %s435 = sand.u32 %s187, 1
        %s436 = smul.addr %s435, 2048
        %s437 = scalar_lea.vmem [#allocation15], %s436
        // Predicated region
        $region85: #{_generator_forward_impl.1} parent=55 // pred_check
          %p438 = pneg %p200
        $region86: #{_generator_forward_impl.1} parent=55 // pred_check_branch
          %440 = sbr.rel (%p438) target = $region88
        $region87: #{_generator_forward_impl.1} parent=55 // pred_region
          %441 = dma.done %s434, 32768
        $region88: #{_generator_forward_impl.1} parent=55 // pred_fallthru
          _
        %s442 = sand.u32 %s32, 1
        %s443 = scalar_lea.sflag [#allocation16], %s442
        %s444 = sand.u32 %s213, 1
        %s445 = smul.addr %s444, 16
        %s446 = scalar_lea.vmem [#allocation17], %s445
        // Predicated region
        $region89: #{_generator_forward_impl.1} parent=55 // pred_check
          %p447 = pneg %p226
        $region90: #{_generator_forward_impl.1} parent=55 // pred_check_branch
          %449 = sbr.rel (%p447) target = $region92
        $region91: #{_generator_forward_impl.1} parent=55 // pred_region
          %450 = dma.done %s443, 256
        $region92: #{_generator_forward_impl.1} parent=55 // pred_fallthru
          _
        %p451 = pneg %p48
        %p452 = pneg %p45
        %p453 = pneg %p69
        %p454 = pneg %p66
        %p455 = pneg %p90
        %p456 = pneg %p87
        %p457 = pneg %p111
        %p458 = pneg %p108
        %p459 = pneg %p132
        %p460 = pneg %p129
        %p461 = pneg %p153
        %p462 = pneg %p150
        %p463 = pneg %p174
        %p464 = pneg %p171
        %s465 = sand.u32 %s32, 1
        %s466 = scalar_lea.sflag [#allocation16], %s465
        %s467 = sand.u32 %s187, 1
        %s468 = smul.addr %s467, 2048
        %s469 = scalar_lea.vmem [#allocation15], %s468
        %p470 = pneg %p200
        %p471 = pneg %p197
        %s472 = sand.u32 %s32, 1
        %s473 = scalar_lea.sflag [#allocation16], %s472
        %s474 = sand.u32 %s213, 1
        %s475 = smul.addr %s474, 16
        %s476 = scalar_lea.vmem [#allocation17], %s475
        %p477 = pneg %p226
        %p478 = pneg %p223
        %p479 = pneg %p252
        %p480 = pneg %p249
        %s481 = smul.u32 8, %s32
        %p482 = scmp.lt.s32.totalorder %s481, 31
        %s483 = scalar_select %p482, %s481, 31
        %s484 = smul.addr %s483, 8
        %s485 = scalar_lea.vmem %s10, %s484
        %s486 = smul.u32 8, %s32
        %p487 = scmp.lt.s32.totalorder %s486, 31
        %s488 = scalar_select %p487, %s486, 31
        %s489 = smul.addr %s488, 8
        %s490 = scalar_lea.vmem %s10, %s489
        %s491 = smul.u32 8, %s32
        %s493 = sld [smem:[#allocation3]]
        %s494 = scalar_lea.vmem [#allocation4], %s493
        %v495 = vld [vmem:[%s494] sm:$0x1]
        %s496 = sld [smem:[#allocation3 + $0x1]]
        %s497 = scalar_lea.vmem [#allocation4], %s496
        %v498 = vld [vmem:[%s497] sm:$0x1]
        %s499 = sld [smem:[#allocation3 + $0x2]]
        %s500 = scalar_lea.vmem [#allocation4], %s499
        %v501 = vld [vmem:[%s500] sm:$0x1]
        %s502 = sld [smem:[#allocation3 + $0x3]]
        %s503 = scalar_lea.vmem [#allocation4], %s502
        %v504 = vld [vmem:[%s503] sm:$0x1]
        %s505 = sld [smem:[#allocation3 + $0x4]]
        %s506 = scalar_lea.vmem [#allocation4], %s505
        %v507 = vld [vmem:[%s506] sm:$0x1]
        %s508 = sld [smem:[#allocation3 + $0x5]]
        %s509 = scalar_lea.vmem [#allocation4], %s508
        %v510 = vld [vmem:[%s509] sm:$0x1]
        %s511 = sld [smem:[#allocation3 + $0x6]]
        %s512 = scalar_lea.vmem [#allocation4], %s511
        %v513 = vld [vmem:[%s512] sm:$0x1]
        %s514 = sld [smem:[#allocation3 + $0x7]]
        %s515 = scalar_lea.vmem [#allocation4], %s514
        %v516 = vld [vmem:[%s515] sm:$0x1]
        %v518 = vrot.slane %v498, 7
        %v521 = vrot.slane %v501, 6
        %v524 = vrot.slane %v504, 5
        %v527 = vrot.slane %v507, 4
        %v530 = vrot.slane %v510, 3
        %v533 = vrot.slane %v513, 2
        %v536 = vrot.slane %v516, 1
        %vm538 = vcmask 1040384
        %v539 = vsel %vm538, %v495, %v518
        %vm540 = vcmask 1041408
        %v541 = vsel %vm540, %v539, %v521
        %vm542 = vcmask 1042432
        %v543 = vsel %vm542, %v541, %v524
        %vm544 = vcmask 1043456
        %v545 = vsel %vm544, %v543, %v527
        %vm546 = vcmask 1044480
        %v547 = vsel %vm546, %v545, %v530
        %vm548 = vcmask 1045504
        %v549 = vsel %vm548, %v547, %v533
        %vm550 = vcmask 1046528
        %v551 = vsel %vm550, %v549, %v536
        %v552 = vld [vmem:[#allocation14] sm:$0x3]
        %v553 = vld [vmem:[#allocation14 + $0x2] sm:$0x3]
        %v554 = vld [vmem:[#allocation14 + $0x4] sm:$0xf]
        %v555 = vld [vmem:[#allocation14 + $0x8] sm:$0xf]
        %v556 = vld [vmem:[#allocation14 + $0xc] sm:$0xff]
        %v557 = vld [vmem:[#allocation14 + $0x14] sm:$0xff]
        %v558 = vld [vmem:[#allocation6] sm:$0xff]
        %v559 = vpack.c.bf16 %v558, %v558
        %v560 = vld [vmem:[#allocation8] sm:$0xf]
        %v561 = vld [vmem:[#allocation8 + $0x4] sm:$0xf]
        %v562 = vld [vmem:[#allocation8 + $0x8] sm:$0xf]
        %v563 = vld [vmem:[#allocation8 + $0xc] sm:$0xf]
        %v564 = vld [vmem:[#allocation8 + $0x10] sm:$0xf]
        %v565 = vld [vmem:[#allocation8 + $0x14] sm:$0xf]
        %v566 = vld [vmem:[#allocation8 + $0x18] sm:$0xf]
        %v567 = vld [vmem:[#allocation8 + $0x1c] sm:$0xf]
        %v568 = vld [vmem:[#allocation8 + $0x20] sm:$0xf]
        %v569 = vld [vmem:[#allocation8 + $0x24] sm:$0xf]
        %v570 = vld [vmem:[#allocation8 + $0x28] sm:$0xf]
        %v571 = vld [vmem:[#allocation8 + $0x2c] sm:$0xf]
        %v572 = vld [vmem:[#allocation8 + $0x30] sm:$0x3]
        %v586 = vunpack.c.l.b16 %v560
        %v587 = vunpack.c.l.b16 %v561
        %v588 = vunpack.c.l.b16 %v562
        %v589 = vunpack.c.l.b16 %v563
        %v590 = vunpack.c.l.b16 %v564
        %v591 = vunpack.c.l.b16 %v565
        %v592 = vunpack.c.l.b16 %v566
        %v593 = vunpack.c.l.b16 %v567
        %v594 = vunpack.c.l.b16 %v568
        %v595 = vunpack.c.l.b16 %v569
        %v596 = vunpack.c.l.b16 %v570
        %v597 = vunpack.c.l.b16 %v571
        %v598 = vunpack.c.l.b16 %v572
        %v599 = vpack.c.b16 %v587, %v586
        %v600 = vpack.c.b16 %v589, %v588
        %v601 = vpack.c.b16 %v591, %v590
        %v602 = vpack.c.b16 %v593, %v592
        %v603 = vpack.c.b16 %v595, %v594
        %v604 = vpack.c.b16 %v597, %v596
        %v605 = vpack.c.b16 %v598, %v598
        %vm612 = vcmask 818176
        %v614 = vsel %vm612, %v559, 0
        %v617 = vsel %vm540, %v605, 0
        %619 = vmatprep.subr.bf16.mxu0 0
        %620 = vmatpush1.bf16.msra.mxu0 %v599
        %621 = vmatprep.subr.bf16.mxu0 0
        %622 = vmatpush1.bf16.msra.mxu0 %v600
        %623 = vmatprep.subr.bf16.mxu0 0
        %624 = vmatpush1.bf16.msra.mxu0 %v601
        %625 = vmatprep.subr.bf16.mxu0 0
        %626 = vmatpush1.bf16.msra.mxu0 %v602
        %627 = vmatprep.subr.bf16.mxu0 0
        %628 = vmatpush1.bf16.msra.mxu0 %v603
        %629 = vmatprep.subr.bf16.mxu0 0
        %630 = vmatpush1.bf16.msra.mxu0 %v604
        %631 = vmatprep.subr.bf16.mxu0 0
        %632 = vmatpush1.bf16.msra.mxu0 %v617
        %633 = vmatprep.subr.bf16.mxu0 0
        %634 = vmatpush1.bf16.msra.mxu0 0
        %635 = vmatprep.subr.bf16.mxu0 0
        %636 = vmatpush1.bf16.msra.mxu0 0
        %637 = vmatprep.subr.bf16.mxu0 0
        %638 = vmatpush1.bf16.msra.mxu0 0
        %639 = vmatprep.subr.bf16.mxu0 0
        %640 = vmatpush1.bf16.msra.mxu0 0
        %641 = vmatprep.subr.bf16.mxu0 0
        %642 = vmatpush1.bf16.msra.mxu0 0
        %643 = vmatprep.subr.bf16.mxu0 0
        %644 = vmatpush1.bf16.msra.mxu0 0
        %645 = vmatprep.subr.bf16.mxu0 0
        %646 = vmatpush1.bf16.msra.mxu0 0
        %647 = vmatprep.subr.bf16.mxu0 0
        %648 = vmatpush1.bf16.msra.mxu0 0
        %649 = vmatprep.subr.bf16.mxu0 0
        %650 = vmatpush1.bf16.msra.mxu0 0
        %651 = vmatprep.mubr.bf16.mxu0 0
        %652 = vmatmul.mubr.bf16.gmra.mrb[0].mxu0 %v614
        %v653 = vpop.f32.mrb[0].mxu0
        %v654 = vadd.f32 %v551, %v653
        %v655 = vpop.f32.mrb[0].mxu0
        %v656 = vpop.f32.mrb[0].mxu0
        %v657 = vpop.f32.mrb[0].mxu0
        %658 = vdwg.mxu0
        %vm659 = vcmp.gt.f32.partialorder %v654, 0.0
        %v660 = vmul.f32 %v654, 0.2
        %v661 = vsel %vm659, %v654, %v660
        %v662 = vpack.c.bf16 %v661, %v661
        %v663 = vld [vmem:[#allocation9] sm:$0xff]
        %v664 = vld [vmem:[#allocation9 + $0x8] sm:$0xff]
        %v665 = vld [vmem:[#allocation9 + $0x10] sm:$0xff]
        %v666 = vld [vmem:[#allocation9 + $0x18] sm:$0xff]
        %v667 = vld [vmem:[#allocation9 + $0x20] sm:$0xff]
        %v668 = vld [vmem:[#allocation9 + $0x28] sm:$0xff]
        %v669 = vld [vmem:[#allocation9 + $0x30] sm:$0xff]
        %v670 = vld [vmem:[#allocation9 + $0x38] sm:$0xff]
        %v671 = vld [vmem:[#allocation9 + $0x40] sm:$0xff]
        %v672 = vld [vmem:[#allocation9 + $0x48] sm:$0xff]
        %v673 = vld [vmem:[#allocation9 + $0x50] sm:$0xff]
        %v674 = vld [vmem:[#allocation9 + $0x58] sm:$0xff]
        %v675 = vld [vmem:[#allocation9 + $0x60] sm:$0xff]
        %v676 = vld [vmem:[#allocation9 + $0x68] sm:$0xff]
        %v677 = vld [vmem:[#allocation9 + $0x70] sm:$0xff]
        %v678 = vld [vmem:[#allocation9 + $0x78] sm:$0xff]
        %v695 = vunpack.c.l.b16 %v663
        %v696 = vunpack.c.h.b16 %v663
        %v697 = vunpack.c.l.b16 %v664
        %v698 = vunpack.c.h.b16 %v664
        %v699 = vunpack.c.l.b16 %v665
        %v700 = vunpack.c.h.b16 %v665
        %v701 = vunpack.c.l.b16 %v666
        %v702 = vunpack.c.h.b16 %v666
        %v703 = vunpack.c.l.b16 %v667
        %v704 = vunpack.c.h.b16 %v667
        %v705 = vunpack.c.l.b16 %v668
        %v706 = vunpack.c.h.b16 %v668
        %v707 = vunpack.c.l.b16 %v669
        %v708 = vunpack.c.h.b16 %v669
        %v709 = vunpack.c.l.b16 %v670
        %v710 = vunpack.c.h.b16 %v670
        %v711 = vunpack.c.l.b16 %v671
        %v712 = vunpack.c.h.b16 %v671
        %v713 = vunpack.c.l.b16 %v672
        %v714 = vunpack.c.h.b16 %v672
        %v715 = vunpack.c.l.b16 %v673
        %v716 = vunpack.c.h.b16 %v673
        %v717 = vunpack.c.l.b16 %v674
        %v718 = vunpack.c.h.b16 %v674
        %v719 = vunpack.c.l.b16 %v675
        %v720 = vunpack.c.h.b16 %v675
        %v721 = vunpack.c.l.b16 %v676
        %v722 = vunpack.c.h.b16 %v676
        %v723 = vunpack.c.l.b16 %v677
        %v724 = vunpack.c.h.b16 %v677
        %v725 = vunpack.c.l.b16 %v678
        %v726 = vunpack.c.h.b16 %v678
        %v727 = vpack.c.b16 %v697, %v695
        %v728 = vpack.c.b16 %v698, %v696
        %v729 = vpack.c.b16 %v701, %v699
        %v730 = vpack.c.b16 %v702, %v700
        %v731 = vpack.c.b16 %v705, %v703
        %v732 = vpack.c.b16 %v706, %v704
        %v733 = vpack.c.b16 %v709, %v707
        %v734 = vpack.c.b16 %v710, %v708
        %v735 = vpack.c.b16 %v713, %v711
        %v736 = vpack.c.b16 %v714, %v712
        %v737 = vpack.c.b16 %v717, %v715
        %v738 = vpack.c.b16 %v718, %v716
        %v739 = vpack.c.b16 %v721, %v719
        %v740 = vpack.c.b16 %v722, %v720
        %v741 = vpack.c.b16 %v725, %v723
        %v742 = vpack.c.b16 %v726, %v724
        %759 = vmatprep.subr.bf16.mxu0 %v728
        %760 = vmatpush1.bf16.msra.mxu0 %v727
        %761 = vmatprep.subr.bf16.mxu0 %v730
        %762 = vmatpush1.bf16.msra.mxu0 %v729
        %763 = vmatprep.subr.bf16.mxu0 %v732
        %764 = vmatpush1.bf16.msra.mxu0 %v731
        %765 = vmatprep.subr.bf16.mxu0 %v734
        %766 = vmatpush1.bf16.msra.mxu0 %v733
        %767 = vmatprep.subr.bf16.mxu0 %v736
        %768 = vmatpush1.bf16.msra.mxu0 %v735
        %769 = vmatprep.subr.bf16.mxu0 %v738
        %770 = vmatpush1.bf16.msra.mxu0 %v737
        %771 = vmatprep.subr.bf16.mxu0 %v740
        %772 = vmatpush1.bf16.msra.mxu0 %v739
        %773 = vmatprep.subr.bf16.mxu0 %v742
        %774 = vmatpush1.bf16.msra.mxu0 %v741
        %775 = vmatprep.subr.bf16.mxu0 0
        %776 = vmatpush1.bf16.msra.mxu0 0
        %777 = vmatprep.subr.bf16.mxu0 0
        %778 = vmatpush1.bf16.msra.mxu0 0
        %779 = vmatprep.subr.bf16.mxu0 0
        %780 = vmatpush1.bf16.msra.mxu0 0
        %781 = vmatprep.subr.bf16.mxu0 0
        %782 = vmatpush1.bf16.msra.mxu0 0
        %783 = vmatprep.subr.bf16.mxu0 0
        %784 = vmatpush1.bf16.msra.mxu0 0
        %785 = vmatprep.subr.bf16.mxu0 0
        %786 = vmatpush1.bf16.msra.mxu0 0
        %787 = vmatprep.subr.bf16.mxu0 0
        %788 = vmatpush1.bf16.msra.mxu0 0
        %789 = vmatprep.subr.bf16.mxu0 0
        %790 = vmatpush1.bf16.msra.mxu0 0
        %791 = vmatprep.mubr.bf16.mxu0 0
        %792 = vmatmul.mubr.bf16.gmra.mrb[0].mxu0 %v662
        %v793 = vpop.f32.mrb[0].mxu0
        %v794 = vadd.f32 0.0, %v793
        %v795 = vpop.f32.mrb[0].mxu0
        %v796 = vadd.f32 0.0, %v795
        %v797 = vpop.f32.mrb[0].mxu0
        %v798 = vpop.f32.mrb[0].mxu0
        %799 = vdwg.mxu0
        %v800 = vrot.slane %v794, 4
        %v801 = vadd.f32 %v794, %v800
        %v802 = vrot.slane %v801, 2
        %v803 = vadd.f32 %v801, %v802
        %v804 = vrot.slane %v803, 1
        %v805 = vadd.f32 %v803, %v804
        %v806 = vrot.slane %v796, 4
        %v807 = vadd.f32 %v796, %v806
        %v808 = vrot.slane %v807, 2
        %v809 = vadd.f32 %v807, %v808
        %v810 = vrot.slane %v809, 1
        %v811 = vadd.f32 %v809, %v810
        %v812 = vrcp.pop 8.0
        %v813 = vmul.f32 %v805, %v812
        %v814 = vmul.f32 %v811, %v812
        %v815 = vsub.f32 %v794, %v813
        %v816 = vsub.f32 %v796, %v814
        %v817 = vmul.f32 %v815, %v815
        %v818 = vmul.f32 %v816, %v816
        %v819 = vrot.slane %v817, 4
        %v820 = vadd.f32 %v817, %v819
        %v821 = vrot.slane %v820, 2
        %v822 = vadd.f32 %v820, %v821
        %v823 = vrot.slane %v822, 1
        %v824 = vadd.f32 %v822, %v823
        %v825 = vrot.slane %v818, 4
        %v826 = vadd.f32 %v818, %v825
        %v827 = vrot.slane %v826, 2
        %v828 = vadd.f32 %v826, %v827
        %v829 = vrot.slane %v828, 1
        %v830 = vadd.f32 %v828, %v829
        %v831 = vmul.f32 %v824, %v812
        %v832 = vmul.f32 %v830, %v812
        %v833 = vadd.f32 %v831, 1e-05
        %v834 = vadd.f32 %v832, 1e-05
        %v835 = vrsqrt.pop %v833
        %v836 = vrsqrt.pop %v834
        %v837 = vmul.f32 %v815, %v835
        %v838 = vmul.f32 %v816, %v836
        %v840 = vlaneseq
        %v841 = vshrl.u32 %v840, 7
        %v842 = vsub.s32 0, %v841
        %v843 = vrot.slane %v552, %v842
        %v844 = vlaneseq
        %v845 = vshrl.u32 %v844, 7
        %v846 = vsub.s32 1, %v845
        %v847 = vrot.slane %v552, %v846
        %v850 = vmul.f32 %v837, %v843
        %v851 = vmul.f32 %v838, %v847
        %v853 = vlaneseq
        %v854 = vshrl.u32 %v853, 7
        %v855 = vsub.s32 0, %v854
        %v856 = vrot.slane %v553, %v855
        %v857 = vlaneseq
        %v858 = vshrl.u32 %v857, 7
        %v859 = vsub.s32 1, %v858
        %v860 = vrot.slane %v553, %v859
        %v863 = vadd.f32 %v850, %v856
        %v864 = vadd.f32 %v851, %v860
        %vm865 = vcmp.gt.f32.partialorder %v863, 0.0
        %vm866 = vcmp.gt.f32.partialorder %v864, 0.0
        %v867 = vmul.f32 %v863, 0.2
        %v868 = vmul.f32 %v864, 0.2
        %v869 = vsel %vm865, %v863, %v867
        %v870 = vsel %vm866, %v864, %v868
        %v871 = vpack.c.bf16 %v869, %v869
        %v872 = vpack.c.bf16 %v870, %v870
        %v873 = vld [vmem:[#allocation11] sm:$0xff]
        %v874 = vld [vmem:[#allocation11 + $0x8] sm:$0xff]
        %v875 = vld [vmem:[#allocation11 + $0x10] sm:$0xff]
        %v876 = vld [vmem:[#allocation11 + $0x18] sm:$0xff]
        %v877 = vld [vmem:[#allocation11 + $0x20] sm:$0xff]
        %v878 = vld [vmem:[#allocation11 + $0x28] sm:$0xff]
        %v879 = vld [vmem:[#allocation11 + $0x30] sm:$0xff]
        %v880 = vld [vmem:[#allocation11 + $0x38] sm:$0xff]
        %v881 = vld [vmem:[#allocation11 + $0x40] sm:$0xff]
        %v882 = vld [vmem:[#allocation11 + $0x48] sm:$0xff]
        %v883 = vld [vmem:[#allocation11 + $0x50] sm:$0xff]
        %v884 = vld [vmem:[#allocation11 + $0x58] sm:$0xff]
        %v885 = vld [vmem:[#allocation11 + $0x60] sm:$0xff]
        %v886 = vld [vmem:[#allocation11 + $0x68] sm:$0xff]
        %v887 = vld [vmem:[#allocation11 + $0x70] sm:$0xff]
        %v888 = vld [vmem:[#allocation11 + $0x78] sm:$0xff]
        %v889 = vld [vmem:[#allocation11 + $0x80] sm:$0xff]
        %v890 = vld [vmem:[#allocation11 + $0x88] sm:$0xff]
        %v891 = vld [vmem:[#allocation11 + $0x90] sm:$0xff]
        %v892 = vld [vmem:[#allocation11 + $0x98] sm:$0xff]
        %v893 = vld [vmem:[#allocation11 + $0xa0] sm:$0xff]
        %v894 = vld [vmem:[#allocation11 + $0xa8] sm:$0xff]
        %v895 = vld [vmem:[#allocation11 + $0xb0] sm:$0xff]
        %v896 = vld [vmem:[#allocation11 + $0xb8] sm:$0xff]
        %v897 = vld [vmem:[#allocation11 + $0xc0] sm:$0xff]
        %v898 = vld [vmem:[#allocation11 + $0xc8] sm:$0xff]
        %v899 = vld [vmem:[#allocation11 + $0xd0] sm:$0xff]
        %v900 = vld [vmem:[#allocation11 + $0xd8] sm:$0xff]
        %v901 = vld [vmem:[#allocation11 + $0xe0] sm:$0xff]
        %v902 = vld [vmem:[#allocation11 + $0xe8] sm:$0xff]
        %v903 = vld [vmem:[#allocation11 + $0xf0] sm:$0xff]
        %v904 = vld [vmem:[#allocation11 + $0xf8] sm:$0xff]
        %v905 = vld [vmem:[#allocation11 + $0x100] sm:$0xff]
        %v906 = vld [vmem:[#allocation11 + $0x108] sm:$0xff]
        %v907 = vld [vmem:[#allocation11 + $0x110] sm:$0xff]
        %v908 = vld [vmem:[#allocation11 + $0x118] sm:$0xff]
        %v909 = vld [vmem:[#allocation11 + $0x120] sm:$0xff]
        %v910 = vld [vmem:[#allocation11 + $0x128] sm:$0xff]
        %v911 = vld [vmem:[#allocation11 + $0x130] sm:$0xff]
        %v912 = vld [vmem:[#allocation11 + $0x138] sm:$0xff]
        %v913 = vld [vmem:[#allocation11 + $0x140] sm:$0xff]
        %v914 = vld [vmem:[#allocation11 + $0x148] sm:$0xff]
        %v915 = vld [vmem:[#allocation11 + $0x150] sm:$0xff]
        %v916 = vld [vmem:[#allocation11 + $0x158] sm:$0xff]
        %v917 = vld [vmem:[#allocation11 + $0x160] sm:$0xff]
        %v918 = vld [vmem:[#allocation11 + $0x168] sm:$0xff]
        %v919 = vld [vmem:[#allocation11 + $0x170] sm:$0xff]
        %v920 = vld [vmem:[#allocation11 + $0x178] sm:$0xff]
        %v921 = vld [vmem:[#allocation11 + $0x180] sm:$0xff]
        %v922 = vld [vmem:[#allocation11 + $0x188] sm:$0xff]
        %v923 = vld [vmem:[#allocation11 + $0x190] sm:$0xff]
        %v924 = vld [vmem:[#allocation11 + $0x198] sm:$0xff]
        %v925 = vld [vmem:[#allocation11 + $0x1a0] sm:$0xff]
        %v926 = vld [vmem:[#allocation11 + $0x1a8] sm:$0xff]
        %v927 = vld [vmem:[#allocation11 + $0x1b0] sm:$0xff]
        %v928 = vld [vmem:[#allocation11 + $0x1b8] sm:$0xff]
        %v929 = vld [vmem:[#allocation11 + $0x1c0] sm:$0xff]
        %v930 = vld [vmem:[#allocation11 + $0x1c8] sm:$0xff]
        %v931 = vld [vmem:[#allocation11 + $0x1d0] sm:$0xff]
        %v932 = vld [vmem:[#allocation11 + $0x1d8] sm:$0xff]
        %v933 = vld [vmem:[#allocation11 + $0x1e0] sm:$0xff]
        %v934 = vld [vmem:[#allocation11 + $0x1e8] sm:$0xff]
        %v935 = vld [vmem:[#allocation11 + $0x1f0] sm:$0xff]
        %v936 = vld [vmem:[#allocation11 + $0x1f8] sm:$0xff]
        %v1001 = vunpack.c.l.b16 %v873
        %v1002 = vunpack.c.h.b16 %v873
        %v1003 = vunpack.c.l.b16 %v874
        %v1004 = vunpack.c.h.b16 %v874
        %v1005 = vunpack.c.l.b16 %v875
        %v1006 = vunpack.c.h.b16 %v875
        %v1007 = vunpack.c.l.b16 %v876
        %v1008 = vunpack.c.h.b16 %v876
        %v1009 = vunpack.c.l.b16 %v877
        %v1010 = vunpack.c.h.b16 %v877
        %v1011 = vunpack.c.l.b16 %v878
        %v1012 = vunpack.c.h.b16 %v878
        %v1013 = vunpack.c.l.b16 %v879
        %v1014 = vunpack.c.h.b16 %v879
        %v1015 = vunpack.c.l.b16 %v880
        %v1016 = vunpack.c.h.b16 %v880
        %v1017 = vunpack.c.l.b16 %v881
        %v1018 = vunpack.c.h.b16 %v881
        %v1019 = vunpack.c.l.b16 %v882
        %v1020 = vunpack.c.h.b16 %v882
        %v1021 = vunpack.c.l.b16 %v883
        %v1022 = vunpack.c.h.b16 %v883
        %v1023 = vunpack.c.l.b16 %v884
        %v1024 = vunpack.c.h.b16 %v884
        %v1025 = vunpack.c.l.b16 %v885
        %v1026 = vunpack.c.h.b16 %v885
        %v1027 = vunpack.c.l.b16 %v886
        %v1028 = vunpack.c.h.b16 %v886
        %v1029 = vunpack.c.l.b16 %v887
        %v1030 = vunpack.c.h.b16 %v887
        %v1031 = vunpack.c.l.b16 %v888
        %v1032 = vunpack.c.h.b16 %v888
        %v1033 = vunpack.c.l.b16 %v889
        %v1034 = vunpack.c.h.b16 %v889
        %v1035 = vunpack.c.l.b16 %v890
        %v1036 = vunpack.c.h.b16 %v890
        %v1037 = vunpack.c.l.b16 %v891
        %v1038 = vunpack.c.h.b16 %v891
        %v1039 = vunpack.c.l.b16 %v892
        %v1040 = vunpack.c.h.b16 %v892
        %v1041 = vunpack.c.l.b16 %v893
        %v1042 = vunpack.c.h.b16 %v893
        %v1043 = vunpack.c.l.b16 %v894
        %v1044 = vunpack.c.h.b16 %v894
        %v1045 = vunpack.c.l.b16 %v895
        %v1046 = vunpack.c.h.b16 %v895
        %v1047 = vunpack.c.l.b16 %v896
        %v1048 = vunpack.c.h.b16 %v896
        %v1049 = vunpack.c.l.b16 %v897
        %v1050 = vunpack.c.h.b16 %v897
        %v1051 = vunpack.c.l.b16 %v898
        %v1052 = vunpack.c.h.b16 %v898
        %v1053 = vunpack.c.l.b16 %v899
        %v1054 = vunpack.c.h.b16 %v899
        %v1055 = vunpack.c.l.b16 %v900
        %v1056 = vunpack.c.h.b16 %v900
        %v1057 = vunpack.c.l.b16 %v901
        %v1058 = vunpack.c.h.b16 %v901
        %v1059 = vunpack.c.l.b16 %v902
        %v1060 = vunpack.c.h.b16 %v902
        %v1061 = vunpack.c.l.b16 %v903
        %v1062 = vunpack.c.h.b16 %v903
        %v1063 = vunpack.c.l.b16 %v904
        %v1064 = vunpack.c.h.b16 %v904
        %v1065 = vunpack.c.l.b16 %v905
        %v1066 = vunpack.c.h.b16 %v905
        %v1067 = vunpack.c.l.b16 %v906
        %v1068 = vunpack.c.h.b16 %v906
        %v1069 = vunpack.c.l.b16 %v907
        %v1070 = vunpack.c.h.b16 %v907
        %v1071 = vunpack.c.l.b16 %v908
        %v1072 = vunpack.c.h.b16 %v908
        %v1073 = vunpack.c.l.b16 %v909
        %v1074 = vunpack.c.h.b16 %v909
        %v1075 = vunpack.c.l.b16 %v910
        %v1076 = vunpack.c.h.b16 %v910
        %v1077 = vunpack.c.l.b16 %v911
        %v1078 = vunpack.c.h.b16 %v911
        %v1079 = vunpack.c.l.b16 %v912
        %v1080 = vunpack.c.h.b16 %v912
        %v1081 = vunpack.c.l.b16 %v913
        %v1082 = vunpack.c.h.b16 %v913
        %v1083 = vunpack.c.l.b16 %v914
        %v1084 = vunpack.c.h.b16 %v914
        %v1085 = vunpack.c.l.b16 %v915
        %v1086 = vunpack.c.h.b16 %v915
        %v1087 = vunpack.c.l.b16 %v916
        %v1088 = vunpack.c.h.b16 %v916
        %v1089 = vunpack.c.l.b16 %v917
        %v1090 = vunpack.c.h.b16 %v917
        %v1091 = vunpack.c.l.b16 %v918
        %v1092 = vunpack.c.h.b16 %v918
        %v1093 = vunpack.c.l.b16 %v919
        %v1094 = vunpack.c.h.b16 %v919
        %v1095 = vunpack.c.l.b16 %v920
        %v1096 = vunpack.c.h.b16 %v920
        %v1097 = vunpack.c.l.b16 %v921
        %v1098 = vunpack.c.h.b16 %v921
        %v1099 = vunpack.c.l.b16 %v922
        %v1100 = vunpack.c.h.b16 %v922
        %v1101 = vunpack.c.l.b16 %v923
        %v1102 = vunpack.c.h.b16 %v923
        %v1103 = vunpack.c.l.b16 %v924
        %v1104 = vunpack.c.h.b16 %v924
        %v1105 = vunpack.c.l.b16 %v925
        %v1106 = vunpack.c.h.b16 %v925
        %v1107 = vunpack.c.l.b16 %v926
        %v1108 = vunpack.c.h.b16 %v926
        %v1109 = vunpack.c.l.b16 %v927
        %v1110 = vunpack.c.h.b16 %v927
        %v1111 = vunpack.c.l.b16 %v928
        %v1112 = vunpack.c.h.b16 %v928
        %v1113 = vunpack.c.l.b16 %v929
        %v1114 = vunpack.c.h.b16 %v929
        %v1115 = vunpack.c.l.b16 %v930
        %v1116 = vunpack.c.h.b16 %v930
        %v1117 = vunpack.c.l.b16 %v931
        %v1118 = vunpack.c.h.b16 %v931
        %v1119 = vunpack.c.l.b16 %v932
        %v1120 = vunpack.c.h.b16 %v932
        %v1121 = vunpack.c.l.b16 %v933
        %v1122 = vunpack.c.h.b16 %v933
        %v1123 = vunpack.c.l.b16 %v934
        %v1124 = vunpack.c.h.b16 %v934
        %v1125 = vunpack.c.l.b16 %v935
        %v1126 = vunpack.c.h.b16 %v935
        %v1127 = vunpack.c.l.b16 %v936
        %v1128 = vunpack.c.h.b16 %v936
        %v1129 = vpack.c.b16 %v1005, %v1001
        %v1130 = vpack.c.b16 %v1006, %v1002
        %v1131 = vpack.c.b16 %v1007, %v1003
        %v1132 = vpack.c.b16 %v1008, %v1004
        %v1133 = vpack.c.b16 %v1013, %v1009
        %v1134 = vpack.c.b16 %v1014, %v1010
        %v1135 = vpack.c.b16 %v1015, %v1011
        %v1136 = vpack.c.b16 %v1016, %v1012
        %v1137 = vpack.c.b16 %v1021, %v1017
        %v1138 = vpack.c.b16 %v1022, %v1018
        %v1139 = vpack.c.b16 %v1023, %v1019
        %v1140 = vpack.c.b16 %v1024, %v1020
        %v1141 = vpack.c.b16 %v1029, %v1025
        %v1142 = vpack.c.b16 %v1030, %v1026
        %v1143 = vpack.c.b16 %v1031, %v1027
        %v1144 = vpack.c.b16 %v1032, %v1028
        %v1145 = vpack.c.b16 %v1037, %v1033
        %v1146 = vpack.c.b16 %v1038, %v1034
        %v1147 = vpack.c.b16 %v1039, %v1035
        %v1148 = vpack.c.b16 %v1040, %v1036
        %v1149 = vpack.c.b16 %v1045, %v1041
        %v1150 = vpack.c.b16 %v1046, %v1042
        %v1151 = vpack.c.b16 %v1047, %v1043
        %v1152 = vpack.c.b16 %v1048, %v1044
        %v1153 = vpack.c.b16 %v1053, %v1049
        %v1154 = vpack.c.b16 %v1054, %v1050
        %v1155 = vpack.c.b16 %v1055, %v1051
        %v1156 = vpack.c.b16 %v1056, %v1052
        %v1157 = vpack.c.b16 %v1061, %v1057
        %v1158 = vpack.c.b16 %v1062, %v1058
        %v1159 = vpack.c.b16 %v1063, %v1059
        %v1160 = vpack.c.b16 %v1064, %v1060
        %v1161 = vpack.c.b16 %v1069, %v1065
        %v1162 = vpack.c.b16 %v1070, %v1066
        %v1163 = vpack.c.b16 %v1071, %v1067
        %v1164 = vpack.c.b16 %v1072, %v1068
        %v1165 = vpack.c.b16 %v1077, %v1073
        %v1166 = vpack.c.b16 %v1078, %v1074
        %v1167 = vpack.c.b16 %v1079, %v1075
        %v1168 = vpack.c.b16 %v1080, %v1076
        %v1169 = vpack.c.b16 %v1085, %v1081
        %v1170 = vpack.c.b16 %v1086, %v1082
        %v1171 = vpack.c.b16 %v1087, %v1083
        %v1172 = vpack.c.b16 %v1088, %v1084
        %v1173 = vpack.c.b16 %v1093, %v1089
        %v1174 = vpack.c.b16 %v1094, %v1090
        %v1175 = vpack.c.b16 %v1095, %v1091
        %v1176 = vpack.c.b16 %v1096, %v1092
        %v1177 = vpack.c.b16 %v1101, %v1097
        %v1178 = vpack.c.b16 %v1102, %v1098
        %v1179 = vpack.c.b16 %v1103, %v1099
        %v1180 = vpack.c.b16 %v1104, %v1100
        %v1181 = vpack.c.b16 %v1109, %v1105
        %v1182 = vpack.c.b16 %v1110, %v1106
        %v1183 = vpack.c.b16 %v1111, %v1107
        %v1184 = vpack.c.b16 %v1112, %v1108
        %v1185 = vpack.c.b16 %v1117, %v1113
        %v1186 = vpack.c.b16 %v1118, %v1114
        %v1187 = vpack.c.b16 %v1119, %v1115
        %v1188 = vpack.c.b16 %v1120, %v1116
        %v1189 = vpack.c.b16 %v1125, %v1121
        %v1190 = vpack.c.b16 %v1126, %v1122
        %v1191 = vpack.c.b16 %v1127, %v1123
        %v1192 = vpack.c.b16 %v1128, %v1124
        %1257 = vmatprep.subr.bf16.mxu0 %v1130
        %1258 = vmatpush1.bf16.msra.mxu0 %v1129
        %1259 = vmatprep.subr.bf16.mxu0 %v1134
        %1260 = vmatpush1.bf16.msra.mxu0 %v1133
        %1261 = vmatprep.subr.bf16.mxu0 %v1138
        %1262 = vmatpush1.bf16.msra.mxu0 %v1137
        %1263 = vmatprep.subr.bf16.mxu0 %v1142
        %1264 = vmatpush1.bf16.msra.mxu0 %v1141
        %1265 = vmatprep.subr.bf16.mxu0 %v1146
        %1266 = vmatpush1.bf16.msra.mxu0 %v1145
        %1267 = vmatprep.subr.bf16.mxu0 %v1150
        %1268 = vmatpush1.bf16.msra.mxu0 %v1149
        %1269 = vmatprep.subr.bf16.mxu0 %v1154
        %1270 = vmatpush1.bf16.msra.mxu0 %v1153
        %1271 = vmatprep.subr.bf16.mxu0 %v1158
        %1272 = vmatpush1.bf16.msra.mxu0 %v1157
        %1273 = vmatprep.subr.bf16.mxu0 %v1162
        %1274 = vmatpush1.bf16.msra.mxu0 %v1161
        %1275 = vmatprep.subr.bf16.mxu0 %v1166
        %1276 = vmatpush1.bf16.msra.mxu0 %v1165
        %1277 = vmatprep.subr.bf16.mxu0 %v1170
        %1278 = vmatpush1.bf16.msra.mxu0 %v1169
        %1279 = vmatprep.subr.bf16.mxu0 %v1174
        %1280 = vmatpush1.bf16.msra.mxu0 %v1173
        %1281 = vmatprep.subr.bf16.mxu0 %v1178
        %1282 = vmatpush1.bf16.msra.mxu0 %v1177
        %1283 = vmatprep.subr.bf16.mxu0 %v1182
        %1284 = vmatpush1.bf16.msra.mxu0 %v1181
        %1285 = vmatprep.subr.bf16.mxu0 %v1186
        %1286 = vmatpush1.bf16.msra.mxu0 %v1185
        %1287 = vmatprep.subr.bf16.mxu0 %v1190
        %1288 = vmatpush1.bf16.msra.mxu0 %v1189
        %1289 = vmatprep.mubr.bf16.mxu0 %v872
        %1290 = vmatmul.mubr.bf16.gmra.mrb[0].mxu0 %v871
        %v1291 = vpop.f32.mrb[0].mxu0
        %v1292 = vadd.f32 0.0, %v1291
        %v1293 = vpop.f32.mrb[0].mxu0
        %v1294 = vadd.f32 0.0, %v1293
        %v1295 = vpop.f32.mrb[0].mxu0
        %v1296 = vpop.f32.mrb[0].mxu0
        %1297 = vdwg.mxu0
        %1298 = vmatprep.subr.bf16.mxu0 %v1132
        %1299 = vmatpush1.bf16.msra.mxu0 %v1131
        %1300 = vmatprep.subr.bf16.mxu0 %v1136
        %1301 = vmatpush1.bf16.msra.mxu0 %v1135
        %1302 = vmatprep.subr.bf16.mxu0 %v1140
        %1303 = vmatpush1.bf16.msra.mxu0 %v1139
        %1304 = vmatprep.subr.bf16.mxu0 %v1144
        %1305 = vmatpush1.bf16.msra.mxu0 %v1143
        %1306 = vmatprep.subr.bf16.mxu0 %v1148
        %1307 = vmatpush1.bf16.msra.mxu0 %v1147
        %1308 = vmatprep.subr.bf16.mxu0 %v1152
        %1309 = vmatpush1.bf16.msra.mxu0 %v1151
        %1310 = vmatprep.subr.bf16.mxu0 %v1156
        %1311 = vmatpush1.bf16.msra.mxu0 %v1155
        %1312 = vmatprep.subr.bf16.mxu0 %v1160
        %1313 = vmatpush1.bf16.msra.mxu0 %v1159
        %1314 = vmatprep.subr.bf16.mxu0 %v1164
        %1315 = vmatpush1.bf16.msra.mxu0 %v1163
        %1316 = vmatprep.subr.bf16.mxu0 %v1168
        %1317 = vmatpush1.bf16.msra.mxu0 %v1167
        %1318 = vmatprep.subr.bf16.mxu0 %v1172
        %1319 = vmatpush1.bf16.msra.mxu0 %v1171
        %1320 = vmatprep.subr.bf16.mxu0 %v1176
        %1321 = vmatpush1.bf16.msra.mxu0 %v1175
        %1322 = vmatprep.subr.bf16.mxu0 %v1180
        %1323 = vmatpush1.bf16.msra.mxu0 %v1179
        %1324 = vmatprep.subr.bf16.mxu0 %v1184
        %1325 = vmatpush1.bf16.msra.mxu0 %v1183
        %1326 = vmatprep.subr.bf16.mxu0 %v1188
        %1327 = vmatpush1.bf16.msra.mxu0 %v1187
        %1328 = vmatprep.subr.bf16.mxu0 %v1192
        %1329 = vmatpush1.bf16.msra.mxu0 %v1191
        %1330 = vmatprep.mubr.bf16.mxu0 %v872
        %1331 = vmatmul.mubr.bf16.gmra.mrb[0].mxu0 %v871
        %v1332 = vpop.f32.mrb[0].mxu0
        %v1333 = vadd.f32 0.0, %v1332
        %v1334 = vpop.f32.mrb[0].mxu0
        %v1335 = vadd.f32 0.0, %v1334
        %v1336 = vpop.f32.mrb[0].mxu0
        %v1337 = vpop.f32.mrb[0].mxu0
        %1338 = vdwg.mxu0
        %v1339 = vrot.slane %v1292, 4
        %v1340 = vadd.f32 %v1292, %v1339
        %v1341 = vrot.slane %v1340, 2
        %v1342 = vadd.f32 %v1340, %v1341
        %v1343 = vrot.slane %v1342, 1
        %v1344 = vadd.f32 %v1342, %v1343
        %v1345 = vrot.slane %v1294, 4
        %v1346 = vadd.f32 %v1294, %v1345
        %v1347 = vrot.slane %v1346, 2
        %v1348 = vadd.f32 %v1346, %v1347
        %v1349 = vrot.slane %v1348, 1
        %v1350 = vadd.f32 %v1348, %v1349
        %v1351 = vrot.slane %v1333, 4
        %v1352 = vadd.f32 %v1333, %v1351
        %v1353 = vrot.slane %v1352, 2
        %v1354 = vadd.f32 %v1352, %v1353
        %v1355 = vrot.slane %v1354, 1
        %v1356 = vadd.f32 %v1354, %v1355
        %v1357 = vrot.slane %v1335, 4
        %v1358 = vadd.f32 %v1335, %v1357
        %v1359 = vrot.slane %v1358, 2
        %v1360 = vadd.f32 %v1358, %v1359
        %v1361 = vrot.slane %v1360, 1
        %v1362 = vadd.f32 %v1360, %v1361
        %v1363 = vmul.f32 %v1344, %v812
        %v1364 = vmul.f32 %v1350, %v812
        %v1365 = vmul.f32 %v1356, %v812
        %v1366 = vmul.f32 %v1362, %v812
        %v1367 = vsub.f32 %v1292, %v1363
        %v1368 = vsub.f32 %v1294, %v1364
        %v1369 = vsub.f32 %v1333, %v1365
        %v1370 = vsub.f32 %v1335, %v1366
        %v1371 = vmul.f32 %v1367, %v1367
        %v1372 = vmul.f32 %v1368, %v1368
        %v1373 = vmul.f32 %v1369, %v1369
        %v1374 = vmul.f32 %v1370, %v1370
        %v1375 = vrot.slane %v1371, 4
        %v1376 = vadd.f32 %v1371, %v1375
        %v1377 = vrot.slane %v1376, 2
        %v1378 = vadd.f32 %v1376, %v1377
        %v1379 = vrot.slane %v1378, 1
        %v1380 = vadd.f32 %v1378, %v1379
        %v1381 = vrot.slane %v1372, 4
        %v1382 = vadd.f32 %v1372, %v1381
        %v1383 = vrot.slane %v1382, 2
        %v1384 = vadd.f32 %v1382, %v1383
        %v1385 = vrot.slane %v1384, 1
        %v1386 = vadd.f32 %v1384, %v1385
        %v1387 = vrot.slane %v1373, 4
        %v1388 = vadd.f32 %v1373, %v1387
        %v1389 = vrot.slane %v1388, 2
        %v1390 = vadd.f32 %v1388, %v1389
        %v1391 = vrot.slane %v1390, 1
        %v1392 = vadd.f32 %v1390, %v1391
        %v1393 = vrot.slane %v1374, 4
        %v1394 = vadd.f32 %v1374, %v1393
        %v1395 = vrot.slane %v1394, 2
        %v1396 = vadd.f32 %v1394, %v1395
        %v1397 = vrot.slane %v1396, 1
        %v1398 = vadd.f32 %v1396, %v1397
        %v1399 = vmul.f32 %v1380, %v812
        %v1400 = vmul.f32 %v1386, %v812
        %v1401 = vmul.f32 %v1392, %v812
        %v1402 = vmul.f32 %v1398, %v812
        %v1403 = vadd.f32 %v1399, 1e-05
        %v1404 = vadd.f32 %v1400, 1e-05
        %v1405 = vadd.f32 %v1401, 1e-05
        %v1406 = vadd.f32 %v1402, 1e-05
        %v1407 = vrsqrt.pop %v1403
        %v1408 = vrsqrt.pop %v1404
        %v1409 = vrsqrt.pop %v1405
        %v1410 = vrsqrt.pop %v1406
        %v1411 = vmul.f32 %v1367, %v1407
        %v1412 = vmul.f32 %v1368, %v1408
        %v1413 = vmul.f32 %v1369, %v1409
        %v1414 = vmul.f32 %v1370, %v1410
        %v1416 = vlaneseq
        %v1417 = vshrl.u32 %v1416, 7
        %v1418 = vsub.s32 0, %v1417
        %v1419 = vrot.slane %v554, %v1418
        %v1420 = vlaneseq
        %v1421 = vshrl.u32 %v1420, 7
        %v1422 = vsub.s32 1, %v1421
        %v1423 = vrot.slane %v554, %v1422
        %v1424 = vlaneseq
        %v1425 = vshrl.u32 %v1424, 7
        %v1426 = vsub.s32 2, %v1425
        %v1427 = vrot.slane %v554, %v1426
        %v1428 = vlaneseq
        %v1429 = vshrl.u32 %v1428, 7
        %v1430 = vsub.s32 3, %v1429
        %v1431 = vrot.slane %v554, %v1430
        %v1436 = vmul.f32 %v1411, %v1419
        %v1437 = vmul.f32 %v1412, %v1423
        %v1438 = vmul.f32 %v1413, %v1427
        %v1439 = vmul.f32 %v1414, %v1431
        %v1441 = vlaneseq
        %v1442 = vshrl.u32 %v1441, 7
        %v1443 = vsub.s32 0, %v1442
        %v1444 = vrot.slane %v555, %v1443
        %v1445 = vlaneseq
        %v1446 = vshrl.u32 %v1445, 7
        %v1447 = vsub.s32 1, %v1446
        %v1448 = vrot.slane %v555, %v1447
        %v1449 = vlaneseq
        %v1450 = vshrl.u32 %v1449, 7
        %v1451 = vsub.s32 2, %v1450
        %v1452 = vrot.slane %v555, %v1451
        %v1453 = vlaneseq
        %v1454 = vshrl.u32 %v1453, 7
        %v1455 = vsub.s32 3, %v1454
        %v1456 = vrot.slane %v555, %v1455
        %v1461 = vadd.f32 %v1436, %v1444
        %v1462 = vadd.f32 %v1437, %v1448
        %v1463 = vadd.f32 %v1438, %v1452
        %v1464 = vadd.f32 %v1439, %v1456
        %vm1465 = vcmp.gt.f32.partialorder %v1461, 0.0
        %vm1466 = vcmp.gt.f32.partialorder %v1462, 0.0
        %vm1467 = vcmp.gt.f32.partialorder %v1463, 0.0
        %vm1468 = vcmp.gt.f32.partialorder %v1464, 0.0
        %v1469 = vmul.f32 %v1461, 0.2
        %v1470 = vmul.f32 %v1462, 0.2
        %v1471 = vmul.f32 %v1463, 0.2
        %v1472 = vmul.f32 %v1464, 0.2
        %v1473 = vsel %vm1465, %v1461, %v1469
        %v1474 = vsel %vm1466, %v1462, %v1470
        %v1475 = vsel %vm1467, %v1463, %v1471
        %v1476 = vsel %vm1468, %v1464, %v1472
        %v1477 = vpack.c.bf16 %v1473, %v1473
        %v1478 = vpack.c.bf16 %v1474, %v1474
        %v1479 = vpack.c.bf16 %v1475, %v1475
        %v1480 = vpack.c.bf16 %v1476, %v1476
        %v1481 = vld [vmem:[#allocation12] sm:$0xff]
        %v1482 = vld [vmem:[#allocation12 + $0x8] sm:$0xff]
        %v1483 = vld [vmem:[#allocation12 + $0x10] sm:$0xff]
        %v1484 = vld [vmem:[#allocation12 + $0x18] sm:$0xff]
        %v1485 = vld [vmem:[#allocation12 + $0x20] sm:$0xff]
        %v1486 = vld [vmem:[#allocation12 + $0x28] sm:$0xff]
        %v1487 = vld [vmem:[#allocation12 + $0x30] sm:$0xff]
        %v1488 = vld [vmem:[#allocation12 + $0x38] sm:$0xff]
        %v1489 = vld [vmem:[#allocation12 + $0x40] sm:$0xff]
        %v1490 = vld [vmem:[#allocation12 + $0x48] sm:$0xff]
        %v1491 = vld [vmem:[#allocation12 + $0x50] sm:$0xff]
        %v1492 = vld [vmem:[#allocation12 + $0x58] sm:$0xff]
        %v1493 = vld [vmem:[#allocation12 + $0x60] sm:$0xff]
        %v1494 = vld [vmem:[#allocation12 + $0x68] sm:$0xff]
        %v1495 = vld [vmem:[#allocation12 + $0x70] sm:$0xff]
        %v1496 = vld [vmem:[#allocation12 + $0x78] sm:$0xff]
        %v1497 = vld [vmem:[#allocation12 + $0x80] sm:$0xff]
        %v1498 = vld [vmem:[#allocation12 + $0x88] sm:$0xff]
        %v1499 = vld [vmem:[#allocation12 + $0x90] sm:$0xff]
        %v1500 = vld [vmem:[#allocation12 + $0x98] sm:$0xff]
        %v1501 = vld [vmem:[#allocation12 + $0xa0] sm:$0xff]
        %v1502 = vld [vmem:[#allocation12 + $0xa8] sm:$0xff]
        %v1503 = vld [vmem:[#allocation12 + $0xb0] sm:$0xff]
        %v1504 = vld [vmem:[#allocation12 + $0xb8] sm:$0xff]
        %v1505 = vld [vmem:[#allocation12 + $0xc0] sm:$0xff]
        %v1506 = vld [vmem:[#allocation12 + $0xc8] sm:$0xff]
        %v1507 = vld [vmem:[#allocation12 + $0xd0] sm:$0xff]
        %v1508 = vld [vmem:[#allocation12 + $0xd8] sm:$0xff]
        %v1509 = vld [vmem:[#allocation12 + $0xe0] sm:$0xff]
        %v1510 = vld [vmem:[#allocation12 + $0xe8] sm:$0xff]
        %v1511 = vld [vmem:[#allocation12 + $0xf0] sm:$0xff]
        %v1512 = vld [vmem:[#allocation12 + $0xf8] sm:$0xff]
        %v1513 = vld [vmem:[#allocation12 + $0x100] sm:$0xff]
        %v1514 = vld [vmem:[#allocation12 + $0x108] sm:$0xff]
        %v1515 = vld [vmem:[#allocation12 + $0x110] sm:$0xff]
        %v1516 = vld [vmem:[#allocation12 + $0x118] sm:$0xff]
        %v1517 = vld [vmem:[#allocation12 + $0x120] sm:$0xff]
        %v1518 = vld [vmem:[#allocation12 + $0x128] sm:$0xff]
        %v1519 = vld [vmem:[#allocation12 + $0x130] sm:$0xff]
        %v1520 = vld [vmem:[#allocation12 + $0x138] sm:$0xff]
        %v1521 = vld [vmem:[#allocation12 + $0x140] sm:$0xff]
        %v1522 = vld [vmem:[#allocation12 + $0x148] sm:$0xff]
        %v1523 = vld [vmem:[#allocation12 + $0x150] sm:$0xff]
        %v1524 = vld [vmem:[#allocation12 + $0x158] sm:$0xff]
        %v1525 = vld [vmem:[#allocation12 + $0x160] sm:$0xff]
        %v1526 = vld [vmem:[#allocation12 + $0x168] sm:$0xff]
        %v1527 = vld [vmem:[#allocation12 + $0x170] sm:$0xff]
        %v1528 = vld [vmem:[#allocation12 + $0x178] sm:$0xff]
        %v1529 = vld [vmem:[#allocation12 + $0x180] sm:$0xff]
        %v1530 = vld [vmem:[#allocation12 + $0x188] sm:$0xff]
        %v1531 = vld [vmem:[#allocation12 + $0x190] sm:$0xff]
        %v1532 = vld [vmem:[#allocation12 + $0x198] sm:$0xff]
        %v1533 = vld [vmem:[#allocation12 + $0x1a0] sm:$0xff]
        %v1534 = vld [vmem:[#allocation12 + $0x1a8] sm:$0xff]
        %v1535 = vld [vmem:[#allocation12 + $0x1b0] sm:$0xff]
        %v1536 = vld [vmem:[#allocation12 + $0x1b8] sm:$0xff]
        %v1537 = vld [vmem:[#allocation12 + $0x1c0] sm:$0xff]
        %v1538 = vld [vmem:[#allocation12 + $0x1c8] sm:$0xff]
        %v1539 = vld [vmem:[#allocation12 + $0x1d0] sm:$0xff]
        %v1540 = vld [vmem:[#allocation12 + $0x1d8] sm:$0xff]
        %v1541 = vld [vmem:[#allocation12 + $0x1e0] sm:$0xff]
        %v1542 = vld [vmem:[#allocation12 + $0x1e8] sm:$0xff]
        %v1543 = vld [vmem:[#allocation12 + $0x1f0] sm:$0xff]
        %v1544 = vld [vmem:[#allocation12 + $0x1f8] sm:$0xff]
        %v1545 = vld [vmem:[#allocation12 + $0x200] sm:$0xff]
        %v1546 = vld [vmem:[#allocation12 + $0x208] sm:$0xff]
        %v1547 = vld [vmem:[#allocation12 + $0x210] sm:$0xff]
        %v1548 = vld [vmem:[#allocation12 + $0x218] sm:$0xff]
        %v1549 = vld [vmem:[#allocation12 + $0x220] sm:$0xff]
        %v1550 = vld [vmem:[#allocation12 + $0x228] sm:$0xff]
        %v1551 = vld [vmem:[#allocation12 + $0x230] sm:$0xff]
        %v1552 = vld [vmem:[#allocation12 + $0x238] sm:$0xff]
        %v1553 = vld [vmem:[#allocation12 + $0x240] sm:$0xff]
        %v1554 = vld [vmem:[#allocation12 + $0x248] sm:$0xff]
        %v1555 = vld [vmem:[#allocation12 + $0x250] sm:$0xff]
        %v1556 = vld [vmem:[#allocation12 + $0x258] sm:$0xff]
        %v1557 = vld [vmem:[#allocation12 + $0x260] sm:$0xff]
        %v1558 = vld [vmem:[#allocation12 + $0x268] sm:$0xff]
        %v1559 = vld [vmem:[#allocation12 + $0x270] sm:$0xff]
        %v1560 = vld [vmem:[#allocation12 + $0x278] sm:$0xff]
        %v1561 = vld [vmem:[#allocation12 + $0x280] sm:$0xff]
        %v1562 = vld [vmem:[#allocation12 + $0x288] sm:$0xff]
        %v1563 = vld [vmem:[#allocation12 + $0x290] sm:$0xff]
        %v1564 = vld [vmem:[#allocation12 + $0x298] sm:$0xff]
        %v1565 = vld [vmem:[#allocation12 + $0x2a0] sm:$0xff]
        %v1566 = vld [vmem:[#allocation12 + $0x2a8] sm:$0xff]
        %v1567 = vld [vmem:[#allocation12 + $0x2b0] sm:$0xff]
        %v1568 = vld [vmem:[#allocation12 + $0x2b8] sm:$0xff]
        %v1569 = vld [vmem:[#allocation12 + $0x2c0] sm:$0xff]
        %v1570 = vld [vmem:[#allocation12 + $0x2c8] sm:$0xff]
        %v1571 = vld [vmem:[#allocation12 + $0x2d0] sm:$0xff]
        %v1572 = vld [vmem:[#allocation12 + $0x2d8] sm:$0xff]
        %v1573 = vld [vmem:[#allocation12 + $0x2e0] sm:$0xff]
        %v1574 = vld [vmem:[#allocation12 + $0x2e8] sm:$0xff]
        %v1575 = vld [vmem:[#allocation12 + $0x2f0] sm:$0xff]
        %v1576 = vld [vmem:[#allocation12 + $0x2f8] sm:$0xff]
        %v1577 = vld [vmem:[#allocation12 + $0x300] sm:$0xff]
        %v1578 = vld [vmem:[#allocation12 + $0x308] sm:$0xff]
        %v1579 = vld [vmem:[#allocation12 + $0x310] sm:$0xff]
        %v1580 = vld [vmem:[#allocation12 + $0x318] sm:$0xff]
        %v1581 = vld [vmem:[#allocation12 + $0x320] sm:$0xff]
        %v1582 = vld [vmem:[#allocation12 + $0x328] sm:$0xff]
        %v1583 = vld [vmem:[#allocation12 + $0x330] sm:$0xff]
        %v1584 = vld [vmem:[#allocation12 + $0x338] sm:$0xff]
        %v1585 = vld [vmem:[#allocation12 + $0x340] sm:$0xff]
        %v1586 = vld [vmem:[#allocation12 + $0x348] sm:$0xff]
        %v1587 = vld [vmem:[#allocation12 + $0x350] sm:$0xff]
        %v1588 = vld [vmem:[#allocation12 + $0x358] sm:$0xff]
        %v1589 = vld [vmem:[#allocation12 + $0x360] sm:$0xff]
        %v1590 = vld [vmem:[#allocation12 + $0x368] sm:$0xff]
        %v1591 = vld [vmem:[#allocation12 + $0x370] sm:$0xff]
        %v1592 = vld [vmem:[#allocation12 + $0x378] sm:$0xff]
        %v1593 = vld [vmem:[#allocation12 + $0x380] sm:$0xff]
        %v1594 = vld [vmem:[#allocation12 + $0x388] sm:$0xff]
        %v1595 = vld [vmem:[#allocation12 + $0x390] sm:$0xff]
        %v1596 = vld [vmem:[#allocation12 + $0x398] sm:$0xff]
        %v1597 = vld [vmem:[#allocation12 + $0x3a0] sm:$0xff]
        %v1598 = vld [vmem:[#allocation12 + $0x3a8] sm:$0xff]
        %v1599 = vld [vmem:[#allocation12 + $0x3b0] sm:$0xff]
        %v1600 = vld [vmem:[#allocation12 + $0x3b8] sm:$0xff]
        %v1601 = vld [vmem:[#allocation12 + $0x3c0] sm:$0xff]
        %v1602 = vld [vmem:[#allocation12 + $0x3c8] sm:$0xff]
        %v1603 = vld [vmem:[#allocation12 + $0x3d0] sm:$0xff]
        %v1604 = vld [vmem:[#allocation12 + $0x3d8] sm:$0xff]
        %v1605 = vld [vmem:[#allocation12 + $0x3e0] sm:$0xff]
        %v1606 = vld [vmem:[#allocation12 + $0x3e8] sm:$0xff]
        %v1607 = vld [vmem:[#allocation12 + $0x3f0] sm:$0xff]
        %v1608 = vld [vmem:[#allocation12 + $0x3f8] sm:$0xff]
        %v1609 = vld [vmem:[#allocation12 + $0x400] sm:$0xff]
        %v1610 = vld [vmem:[#allocation12 + $0x408] sm:$0xff]
        %v1611 = vld [vmem:[#allocation12 + $0x410] sm:$0xff]
        %v1612 = vld [vmem:[#allocation12 + $0x418] sm:$0xff]
        %v1613 = vld [vmem:[#allocation12 + $0x420] sm:$0xff]
        %v1614 = vld [vmem:[#allocation12 + $0x428] sm:$0xff]
        %v1615 = vld [vmem:[#allocation12 + $0x430] sm:$0xff]
        %v1616 = vld [vmem:[#allocation12 + $0x438] sm:$0xff]
        %v1617 = vld [vmem:[#allocation12 + $0x440] sm:$0xff]
        %v1618 = vld [vmem:[#allocation12 + $0x448] sm:$0xff]
        %v1619 = vld [vmem:[#allocation12 + $0x450] sm:$0xff]
        %v1620 = vld [vmem:[#allocation12 + $0x458] sm:$0xff]
        %v1621 = vld [vmem:[#allocation12 + $0x460] sm:$0xff]
        %v1622 = vld [vmem:[#allocation12 + $0x468] sm:$0xff]
        %v1623 = vld [vmem:[#allocation12 + $0x470] sm:$0xff]
        %v1624 = vld [vmem:[#allocation12 + $0x478] sm:$0xff]
        %v1625 = vld [vmem:[#allocation12 + $0x480] sm:$0xff]
        %v1626 = vld [vmem:[#allocation12 + $0x488] sm:$0xff]
        %v1627 = vld [vmem:[#allocation12 + $0x490] sm:$0xff]
        %v1628 = vld [vmem:[#allocation12 + $0x498] sm:$0xff]
        %v1629 = vld [vmem:[#allocation12 + $0x4a0] sm:$0xff]
        %v1630 = vld [vmem:[#allocation12 + $0x4a8] sm:$0xff]
        %v1631 = vld [vmem:[#allocation12 + $0x4b0] sm:$0xff]
        %v1632 = vld [vmem:[#allocation12 + $0x4b8] sm:$0xff]
        %v1633 = vld [vmem:[#allocation12 + $0x4c0] sm:$0xff]
        %v1634 = vld [vmem:[#allocation12 + $0x4c8] sm:$0xff]
        %v1635 = vld [vmem:[#allocation12 + $0x4d0] sm:$0xff]
        %v1636 = vld [vmem:[#allocation12 + $0x4d8] sm:$0xff]
        %v1637 = vld [vmem:[#allocation12 + $0x4e0] sm:$0xff]
        %v1638 = vld [vmem:[#allocation12 + $0x4e8] sm:$0xff]
        %v1639 = vld [vmem:[#allocation12 + $0x4f0] sm:$0xff]
        %v1640 = vld [vmem:[#allocation12 + $0x4f8] sm:$0xff]
        %v1641 = vld [vmem:[#allocation12 + $0x500] sm:$0xff]
        %v1642 = vld [vmem:[#allocation12 + $0x508] sm:$0xff]
        %v1643 = vld [vmem:[#allocation12 + $0x510] sm:$0xff]
        %v1644 = vld [vmem:[#allocation12 + $0x518] sm:$0xff]
        %v1645 = vld [vmem:[#allocation12 + $0x520] sm:$0xff]
        %v1646 = vld [vmem:[#allocation12 + $0x528] sm:$0xff]
        %v1647 = vld [vmem:[#allocation12 + $0x530] sm:$0xff]
        %v1648 = vld [vmem:[#allocation12 + $0x538] sm:$0xff]
        %v1649 = vld [vmem:[#allocation12 + $0x540] sm:$0xff]
        %v1650 = vld [vmem:[#allocation12 + $0x548] sm:$0xff]
        %v1651 = vld [vmem:[#allocation12 + $0x550] sm:$0xff]
        %v1652 = vld [vmem:[#allocation12 + $0x558] sm:$0xff]
        %v1653 = vld [vmem:[#allocation12 + $0x560] sm:$0xff]
        %v1654 = vld [vmem:[#allocation12 + $0x568] sm:$0xff]
        %v1655 = vld [vmem:[#allocation12 + $0x570] sm:$0xff]
        %v1656 = vld [vmem:[#allocation12 + $0x578] sm:$0xff]
        %v1657 = vld [vmem:[#allocation12 + $0x580] sm:$0xff]
        %v1658 = vld [vmem:[#allocation12 + $0x588] sm:$0xff]
        %v1659 = vld [vmem:[#allocation12 + $0x590] sm:$0xff]
        %v1660 = vld [vmem:[#allocation12 + $0x598] sm:$0xff]
        %v1661 = vld [vmem:[#allocation12 + $0x5a0] sm:$0xff]
        %v1662 = vld [vmem:[#allocation12 + $0x5a8] sm:$0xff]
        %v1663 = vld [vmem:[#allocation12 + $0x5b0] sm:$0xff]
        %v1664 = vld [vmem:[#allocation12 + $0x5b8] sm:$0xff]
        %v1665 = vld [vmem:[#allocation12 + $0x5c0] sm:$0xff]
        %v1666 = vld [vmem:[#allocation12 + $0x5c8] sm:$0xff]
        %v1667 = vld [vmem:[#allocation12 + $0x5d0] sm:$0xff]
        %v1668 = vld [vmem:[#allocation12 + $0x5d8] sm:$0xff]
        %v1669 = vld [vmem:[#allocation12 + $0x5e0] sm:$0xff]
        %v1670 = vld [vmem:[#allocation12 + $0x5e8] sm:$0xff]
        %v1671 = vld [vmem:[#allocation12 + $0x5f0] sm:$0xff]
        %v1672 = vld [vmem:[#allocation12 + $0x5f8] sm:$0xff]
        %v1673 = vld [vmem:[#allocation12 + $0x600] sm:$0xff]
        %v1674 = vld [vmem:[#allocation12 + $0x608] sm:$0xff]
        %v1675 = vld [vmem:[#allocation12 + $0x610] sm:$0xff]
        %v1676 = vld [vmem:[#allocation12 + $0x618] sm:$0xff]
        %v1677 = vld [vmem:[#allocation12 + $0x620] sm:$0xff]
        %v1678 = vld [vmem:[#allocation12 + $0x628] sm:$0xff]
        %v1679 = vld [vmem:[#allocation12 + $0x630] sm:$0xff]
        %v1680 = vld [vmem:[#allocation12 + $0x638] sm:$0xff]
        %v1681 = vld [vmem:[#allocation12 + $0x640] sm:$0xff]
        %v1682 = vld [vmem:[#allocation12 + $0x648] sm:$0xff]
        %v1683 = vld [vmem:[#allocation12 + $0x650] sm:$0xff]
        %v1684 = vld [vmem:[#allocation12 + $0x658] sm:$0xff]
        %v1685 = vld [vmem:[#allocation12 + $0x660] sm:$0xff]
        %v1686 = vld [vmem:[#allocation12 + $0x668] sm:$0xff]
        %v1687 = vld [vmem:[#allocation12 + $0x670] sm:$0xff]
        %v1688 = vld [vmem:[#allocation12 + $0x678] sm:$0xff]
        %v1689 = vld [vmem:[#allocation12 + $0x680] sm:$0xff]
        %v1690 = vld [vmem:[#allocation12 + $0x688] sm:$0xff]
        %v1691 = vld [vmem:[#allocation12 + $0x690] sm:$0xff]
        %v1692 = vld [vmem:[#allocation12 + $0x698] sm:$0xff]
        %v1693 = vld [vmem:[#allocation12 + $0x6a0] sm:$0xff]
        %v1694 = vld [vmem:[#allocation12 + $0x6a8] sm:$0xff]
        %v1695 = vld [vmem:[#allocation12 + $0x6b0] sm:$0xff]
        %v1696 = vld [vmem:[#allocation12 + $0x6b8] sm:$0xff]
        %v1697 = vld [vmem:[#allocation12 + $0x6c0] sm:$0xff]
        %v1698 = vld [vmem:[#allocation12 + $0x6c8] sm:$0xff]
        %v1699 = vld [vmem:[#allocation12 + $0x6d0] sm:$0xff]
        %v1700 = vld [vmem:[#allocation12 + $0x6d8] sm:$0xff]
        %v1701 = vld [vmem:[#allocation12 + $0x6e0] sm:$0xff]
        %v1702 = vld [vmem:[#allocation12 + $0x6e8] sm:$0xff]
        %v1703 = vld [vmem:[#allocation12 + $0x6f0] sm:$0xff]
        %v1704 = vld [vmem:[#allocation12 + $0x6f8] sm:$0xff]
        %v1705 = vld [vmem:[#allocation12 + $0x700] sm:$0xff]
        %v1706 = vld [vmem:[#allocation12 + $0x708] sm:$0xff]
        %v1707 = vld [vmem:[#allocation12 + $0x710] sm:$0xff]
        %v1708 = vld [vmem:[#allocation12 + $0x718] sm:$0xff]
        %v1709 = vld [vmem:[#allocation12 + $0x720] sm:$0xff]
        %v1710 = vld [vmem:[#allocation12 + $0x728] sm:$0xff]
        %v1711 = vld [vmem:[#allocation12 + $0x730] sm:$0xff]
        %v1712 = vld [vmem:[#allocation12 + $0x738] sm:$0xff]
        %v1713 = vld [vmem:[#allocation12 + $0x740] sm:$0xff]
        %v1714 = vld [vmem:[#allocation12 + $0x748] sm:$0xff]
        %v1715 = vld [vmem:[#allocation12 + $0x750] sm:$0xff]
        %v1716 = vld [vmem:[#allocation12 + $0x758] sm:$0xff]
        %v1717 = vld [vmem:[#allocation12 + $0x760] sm:$0xff]
        %v1718 = vld [vmem:[#allocation12 + $0x768] sm:$0xff]
        %v1719 = vld [vmem:[#allocation12 + $0x770] sm:$0xff]
        %v1720 = vld [vmem:[#allocation12 + $0x778] sm:$0xff]
        %v1721 = vld [vmem:[#allocation12 + $0x780] sm:$0xff]
        %v1722 = vld [vmem:[#allocation12 + $0x788] sm:$0xff]
        %v1723 = vld [vmem:[#allocation12 + $0x790] sm:$0xff]
        %v1724 = vld [vmem:[#allocation12 + $0x798] sm:$0xff]
        %v1725 = vld [vmem:[#allocation12 + $0x7a0] sm:$0xff]
        %v1726 = vld [vmem:[#allocation12 + $0x7a8] sm:$0xff]
        %v1727 = vld [vmem:[#allocation12 + $0x7b0] sm:$0xff]
        %v1728 = vld [vmem:[#allocation12 + $0x7b8] sm:$0xff]
        %v1729 = vld [vmem:[#allocation12 + $0x7c0] sm:$0xff]
        %v1730 = vld [vmem:[#allocation12 + $0x7c8] sm:$0xff]
        %v1731 = vld [vmem:[#allocation12 + $0x7d0] sm:$0xff]
        %v1732 = vld [vmem:[#allocation12 + $0x7d8] sm:$0xff]
        %v1733 = vld [vmem:[#allocation12 + $0x7e0] sm:$0xff]
        %v1734 = vld [vmem:[#allocation12 + $0x7e8] sm:$0xff]
        %v1735 = vld [vmem:[#allocation12 + $0x7f0] sm:$0xff]
        %v1736 = vld [vmem:[#allocation12 + $0x7f8] sm:$0xff]
        %v1993 = vunpack.c.l.b16 %v1481
        %v1994 = vunpack.c.h.b16 %v1481
        %v1995 = vunpack.c.l.b16 %v1482
        %v1996 = vunpack.c.h.b16 %v1482
        %v1997 = vunpack.c.l.b16 %v1483
        %v1998 = vunpack.c.h.b16 %v1483
        %v1999 = vunpack.c.l.b16 %v1484
        %v2000 = vunpack.c.h.b16 %v1484
        %v2001 = vunpack.c.l.b16 %v1485
        %v2002 = vunpack.c.h.b16 %v1485
        %v2003 = vunpack.c.l.b16 %v1486
        %v2004 = vunpack.c.h.b16 %v1486
        %v2005 = vunpack.c.l.b16 %v1487
        %v2006 = vunpack.c.h.b16 %v1487
        %v2007 = vunpack.c.l.b16 %v1488
        %v2008 = vunpack.c.h.b16 %v1488
        %v2009 = vunpack.c.l.b16 %v1489
        %v2010 = vunpack.c.h.b16 %v1489
        %v2011 = vunpack.c.l.b16 %v1490
        %v2012 = vunpack.c.h.b16 %v1490
        %v2013 = vunpack.c.l.b16 %v1491
        %v2014 = vunpack.c.h.b16 %v1491
        %v2015 = vunpack.c.l.b16 %v1492
        %v2016 = vunpack.c.h.b16 %v1492
        %v2017 = vunpack.c.l.b16 %v1493
        %v2018 = vunpack.c.h.b16 %v1493
        %v2019 = vunpack.c.l.b16 %v1494
        %v2020 = vunpack.c.h.b16 %v1494
        %v2021 = vunpack.c.l.b16 %v1495
        %v2022 = vunpack.c.h.b16 %v1495
        %v2023 = vunpack.c.l.b16 %v1496
        %v2024 = vunpack.c.h.b16 %v1496
        %v2025 = vunpack.c.l.b16 %v1497
        %v2026 = vunpack.c.h.b16 %v1497
        %v2027 = vunpack.c.l.b16 %v1498
        %v2028 = vunpack.c.h.b16 %v1498
        %v2029 = vunpack.c.l.b16 %v1499
        %v2030 = vunpack.c.h.b16 %v1499
        %v2031 = vunpack.c.l.b16 %v1500
        %v2032 = vunpack.c.h.b16 %v1500
        %v2033 = vunpack.c.l.b16 %v1501
        %v2034 = vunpack.c.h.b16 %v1501
        %v2035 = vunpack.c.l.b16 %v1502
        %v2036 = vunpack.c.h.b16 %v1502
        %v2037 = vunpack.c.l.b16 %v1503
        %v2038 = vunpack.c.h.b16 %v1503
        %v2039 = vunpack.c.l.b16 %v1504
        %v2040 = vunpack.c.h.b16 %v1504
        %v2041 = vunpack.c.l.b16 %v1505
        %v2042 = vunpack.c.h.b16 %v1505
        %v2043 = vunpack.c.l.b16 %v1506
        %v2044 = vunpack.c.h.b16 %v1506
        %v2045 = vunpack.c.l.b16 %v1507
        %v2046 = vunpack.c.h.b16 %v1507
        %v2047 = vunpack.c.l.b16 %v1508
        %v2048 = vunpack.c.h.b16 %v1508
        %v2049 = vunpack.c.l.b16 %v1509
        %v2050 = vunpack.c.h.b16 %v1509
        %v2051 = vunpack.c.l.b16 %v1510
        %v2052 = vunpack.c.h.b16 %v1510
        %v2053 = vunpack.c.l.b16 %v1511
        %v2054 = vunpack.c.h.b16 %v1511
        %v2055 = vunpack.c.l.b16 %v1512
        %v2056 = vunpack.c.h.b16 %v1512
        %v2057 = vunpack.c.l.b16 %v1513
        %v2058 = vunpack.c.h.b16 %v1513
        %v2059 = vunpack.c.l.b16 %v1514
        %v2060 = vunpack.c.h.b16 %v1514
        %v2061 = vunpack.c.l.b16 %v1515
        %v2062 = vunpack.c.h.b16 %v1515
        %v2063 = vunpack.c.l.b16 %v1516
        %v2064 = vunpack.c.h.b16 %v1516
        %v2065 = vunpack.c.l.b16 %v1517
        %v2066 = vunpack.c.h.b16 %v1517
        %v2067 = vunpack.c.l.b16 %v1518
        %v2068 = vunpack.c.h.b16 %v1518
        %v2069 = vunpack.c.l.b16 %v1519
        %v2070 = vunpack.c.h.b16 %v1519
        %v2071 = vunpack.c.l.b16 %v1520
        %v2072 = vunpack.c.h.b16 %v1520
        %v2073 = vunpack.c.l.b16 %v1521
        %v2074 = vunpack.c.h.b16 %v1521
        %v2075 = vunpack.c.l.b16 %v1522
        %v2076 = vunpack.c.h.b16 %v1522
        %v2077 = vunpack.c.l.b16 %v1523
        %v2078 = vunpack.c.h.b16 %v1523
        %v2079 = vunpack.c.l.b16 %v1524
        %v2080 = vunpack.c.h.b16 %v1524
        %v2081 = vunpack.c.l.b16 %v1525
        %v2082 = vunpack.c.h.b16 %v1525
        %v2083 = vunpack.c.l.b16 %v1526
        %v2084 = vunpack.c.h.b16 %v1526
        %v2085 = vunpack.c.l.b16 %v1527
        %v2086 = vunpack.c.h.b16 %v1527
        %v2087 = vunpack.c.l.b16 %v1528
        %v2088 = vunpack.c.h.b16 %v1528
        %v2089 = vunpack.c.l.b16 %v1529
        %v2090 = vunpack.c.h.b16 %v1529
        %v2091 = vunpack.c.l.b16 %v1530
        %v2092 = vunpack.c.h.b16 %v1530
        %v2093 = vunpack.c.l.b16 %v1531
        %v2094 = vunpack.c.h.b16 %v1531
        %v2095 = vunpack.c.l.b16 %v1532
        %v2096 = vunpack.c.h.b16 %v1532
        %v2097 = vunpack.c.l.b16 %v1533
        %v2098 = vunpack.c.h.b16 %v1533
        %v2099 = vunpack.c.l.b16 %v1534
        %v2100 = vunpack.c.h.b16 %v1534
        %v2101 = vunpack.c.l.b16 %v1535
        %v2102 = vunpack.c.h.b16 %v1535
        %v2103 = vunpack.c.l.b16 %v1536
        %v2104 = vunpack.c.h.b16 %v1536
        %v2105 = vunpack.c.l.b16 %v1537
        %v2106 = vunpack.c.h.b16 %v1537
        %v2107 = vunpack.c.l.b16 %v1538
        %v2108 = vunpack.c.h.b16 %v1538
        %v2109 = vunpack.c.l.b16 %v1539
        %v2110 = vunpack.c.h.b16 %v1539
        %v2111 = vunpack.c.l.b16 %v1540
        %v2112 = vunpack.c.h.b16 %v1540
        %v2113 = vunpack.c.l.b16 %v1541
        %v2114 = vunpack.c.h.b16 %v1541
        %v2115 = vunpack.c.l.b16 %v1542
        %v2116 = vunpack.c.h.b16 %v1542
        %v2117 = vunpack.c.l.b16 %v1543
        %v2118 = vunpack.c.h.b16 %v1543
        %v2119 = vunpack.c.l.b16 %v1544
        %v2120 = vunpack.c.h.b16 %v1544
        %v2121 = vunpack.c.l.b16 %v1545
        %v2122 = vunpack.c.h.b16 %v1545
        %v2123 = vunpack.c.l.b16 %v1546
        %v2124 = vunpack.c.h.b16 %v1546
        %v2125 = vunpack.c.l.b16 %v1547
        %v2126 = vunpack.c.h.b16 %v1547
        %v2127 = vunpack.c.l.b16 %v1548
        %v2128 = vunpack.c.h.b16 %v1548
        %v2129 = vunpack.c.l.b16 %v1549
        %v2130 = vunpack.c.h.b16 %v1549
        %v2131 = vunpack.c.l.b16 %v1550
        %v2132 = vunpack.c.h.b16 %v1550
        %v2133 = vunpack.c.l.b16 %v1551
        %v2134 = vunpack.c.h.b16 %v1551
        %v2135 = vunpack.c.l.b16 %v1552
        %v2136 = vunpack.c.h.b16 %v1552
        %v2137 = vunpack.c.l.b16 %v1553
        %v2138 = vunpack.c.h.b16 %v1553
        %v2139 = vunpack.c.l.b16 %v1554
        %v2140 = vunpack.c.h.b16 %v1554
        %v2141 = vunpack.c.l.b16 %v1555
        %v2142 = vunpack.c.h.b16 %v1555
        %v2143 = vunpack.c.l.b16 %v1556
        %v2144 = vunpack.c.h.b16 %v1556
        %v2145 = vunpack.c.l.b16 %v1557
        %v2146 = vunpack.c.h.b16 %v1557
        %v2147 = vunpack.c.l.b16 %v1558
        %v2148 = vunpack.c.h.b16 %v1558
        %v2149 = vunpack.c.l.b16 %v1559
        %v2150 = vunpack.c.h.b16 %v1559
        %v2151 = vunpack.c.l.b16 %v1560
        %v2152 = vunpack.c.h.b16 %v1560
        %v2153 = vunpack.c.l.b16 %v1561
        %v2154 = vunpack.c.h.b16 %v1561
        %v2155 = vunpack.c.l.b16 %v1562
        %v2156 = vunpack.c.h.b16 %v1562
        %v2157 = vunpack.c.l.b16 %v1563
        %v2158 = vunpack.c.h.b16 %v1563
        %v2159 = vunpack.c.l.b16 %v1564
        %v2160 = vunpack.c.h.b16 %v1564
        %v2161 = vunpack.c.l.b16 %v1565
        %v2162 = vunpack.c.h.b16 %v1565
        %v2163 = vunpack.c.l.b16 %v1566
        %v2164 = vunpack.c.h.b16 %v1566
        %v2165 = vunpack.c.l.b16 %v1567
        %v2166 = vunpack.c.h.b16 %v1567
        %v2167 = vunpack.c.l.b16 %v1568
        %v2168 = vunpack.c.h.b16 %v1568
        %v2169 = vunpack.c.l.b16 %v1569
        %v2170 = vunpack.c.h.b16 %v1569
        %v2171 = vunpack.c.l.b16 %v1570
        %v2172 = vunpack.c.h.b16 %v1570
        %v2173 = vunpack.c.l.b16 %v1571
        %v2174 = vunpack.c.h.b16 %v1571
        %v2175 = vunpack.c.l.b16 %v1572
        %v2176 = vunpack.c.h.b16 %v1572
        %v2177 = vunpack.c.l.b16 %v1573
        %v2178 = vunpack.c.h.b16 %v1573
        %v2179 = vunpack.c.l.b16 %v1574
        %v2180 = vunpack.c.h.b16 %v1574
        %v2181 = vunpack.c.l.b16 %v1575
        %v2182 = vunpack.c.h.b16 %v1575
        %v2183 = vunpack.c.l.b16 %v1576
        %v2184 = vunpack.c.h.b16 %v1576
        %v2185 = vunpack.c.l.b16 %v1577
        %v2186 = vunpack.c.h.b16 %v1577
        %v2187 = vunpack.c.l.b16 %v1578
        %v2188 = vunpack.c.h.b16 %v1578
        %v2189 = vunpack.c.l.b16 %v1579
        %v2190 = vunpack.c.h.b16 %v1579
        %v2191 = vunpack.c.l.b16 %v1580
        %v2192 = vunpack.c.h.b16 %v1580
        %v2193 = vunpack.c.l.b16 %v1581
        %v2194 = vunpack.c.h.b16 %v1581
        %v2195 = vunpack.c.l.b16 %v1582
        %v2196 = vunpack.c.h.b16 %v1582
        %v2197 = vunpack.c.l.b16 %v1583
        %v2198 = vunpack.c.h.b16 %v1583
        %v2199 = vunpack.c.l.b16 %v1584
        %v2200 = vunpack.c.h.b16 %v1584
        %v2201 = vunpack.c.l.b16 %v1585
        %v2202 = vunpack.c.h.b16 %v1585
        %v2203 = vunpack.c.l.b16 %v1586
        %v2204 = vunpack.c.h.b16 %v1586
        %v2205 = vunpack.c.l.b16 %v1587
        %v2206 = vunpack.c.h.b16 %v1587
        %v2207 = vunpack.c.l.b16 %v1588
        %v2208 = vunpack.c.h.b16 %v1588
        %v2209 = vunpack.c.l.b16 %v1589
        %v2210 = vunpack.c.h.b16 %v1589
        %v2211 = vunpack.c.l.b16 %v1590
        %v2212 = vunpack.c.h.b16 %v1590
        %v2213 = vunpack.c.l.b16 %v1591
        %v2214 = vunpack.c.h.b16 %v1591
        %v2215 = vunpack.c.l.b16 %v1592
        %v2216 = vunpack.c.h.b16 %v1592
        %v2217 = vunpack.c.l.b16 %v1593
        %v2218 = vunpack.c.h.b16 %v1593
        %v2219 = vunpack.c.l.b16 %v1594
        %v2220 = vunpack.c.h.b16 %v1594
        %v2221 = vunpack.c.l.b16 %v1595
        %v2222 = vunpack.c.h.b16 %v1595
        %v2223 = vunpack.c.l.b16 %v1596
        %v2224 = vunpack.c.h.b16 %v1596
        %v2225 = vunpack.c.l.b16 %v1597
        %v2226 = vunpack.c.h.b16 %v1597
        %v2227 = vunpack.c.l.b16 %v1598
        %v2228 = vunpack.c.h.b16 %v1598
        %v2229 = vunpack.c.l.b16 %v1599
        %v2230 = vunpack.c.h.b16 %v1599
        %v2231 = vunpack.c.l.b16 %v1600
        %v2232 = vunpack.c.h.b16 %v1600
        %v2233 = vunpack.c.l.b16 %v1601
        %v2234 = vunpack.c.h.b16 %v1601
        %v2235 = vunpack.c.l.b16 %v1602
        %v2236 = vunpack.c.h.b16 %v1602
        %v2237 = vunpack.c.l.b16 %v1603
        %v2238 = vunpack.c.h.b16 %v1603
        %v2239 = vunpack.c.l.b16 %v1604
        %v2240 = vunpack.c.h.b16 %v1604
        %v2241 = vunpack.c.l.b16 %v1605
        %v2242 = vunpack.c.h.b16 %v1605
        %v2243 = vunpack.c.l.b16 %v1606
        %v2244 = vunpack.c.h.b16 %v1606
        %v2245 = vunpack.c.l.b16 %v1607
        %v2246 = vunpack.c.h.b16 %v1607
        %v2247 = vunpack.c.l.b16 %v1608
        %v2248 = vunpack.c.h.b16 %v1608
        %v2249 = vunpack.c.l.b16 %v1609
        %v2250 = vunpack.c.h.b16 %v1609
        %v2251 = vunpack.c.l.b16 %v1610
        %v2252 = vunpack.c.h.b16 %v1610
        %v2253 = vunpack.c.l.b16 %v1611
        %v2254 = vunpack.c.h.b16 %v1611
        %v2255 = vunpack.c.l.b16 %v1612
        %v2256 = vunpack.c.h.b16 %v1612
        %v2257 = vunpack.c.l.b16 %v1613
        %v2258 = vunpack.c.h.b16 %v1613
        %v2259 = vunpack.c.l.b16 %v1614
        %v2260 = vunpack.c.h.b16 %v1614
        %v2261 = vunpack.c.l.b16 %v1615
        %v2262 = vunpack.c.h.b16 %v1615
        %v2263 = vunpack.c.l.b16 %v1616
        %v2264 = vunpack.c.h.b16 %v1616
        %v2265 = vunpack.c.l.b16 %v1617
        %v2266 = vunpack.c.h.b16 %v1617
        %v2267 = vunpack.c.l.b16 %v1618
        %v2268 = vunpack.c.h.b16 %v1618
        %v2269 = vunpack.c.l.b16 %v1619
        %v2270 = vunpack.c.h.b16 %v1619
        %v2271 = vunpack.c.l.b16 %v1620
        %v2272 = vunpack.c.h.b16 %v1620
        %v2273 = vunpack.c.l.b16 %v1621
        %v2274 = vunpack.c.h.b16 %v1621
        %v2275 = vunpack.c.l.b16 %v1622
        %v2276 = vunpack.c.h.b16 %v1622
        %v2277 = vunpack.c.l.b16 %v1623
        %v2278 = vunpack.c.h.b16 %v1623
        %v2279 = vunpack.c.l.b16 %v1624
        %v2280 = vunpack.c.h.b16 %v1624
        %v2281 = vunpack.c.l.b16 %v1625
        %v2282 = vunpack.c.h.b16 %v1625
        %v2283 = vunpack.c.l.b16 %v1626
        %v2284 = vunpack.c.h.b16 %v1626
        %v2285 = vunpack.c.l.b16 %v1627
        %v2286 = vunpack.c.h.b16 %v1627
        %v2287 = vunpack.c.l.b16 %v1628
        %v2288 = vunpack.c.h.b16 %v1628
        %v2289 = vunpack.c.l.b16 %v1629
        %v2290 = vunpack.c.h.b16 %v1629
        %v2291 = vunpack.c.l.b16 %v1630
        %v2292 = vunpack.c.h.b16 %v1630
        %v2293 = vunpack.c.l.b16 %v1631
        %v2294 = vunpack.c.h.b16 %v1631
        %v2295 = vunpack.c.l.b16 %v1632
        %v2296 = vunpack.c.h.b16 %v1632
        %v2297 = vunpack.c.l.b16 %v1633
        %v2298 = vunpack.c.h.b16 %v1633
        %v2299 = vunpack.c.l.b16 %v1634
        %v2300 = vunpack.c.h.b16 %v1634
        %v2301 = vunpack.c.l.b16 %v1635
        %v2302 = vunpack.c.h.b16 %v1635
        %v2303 = vunpack.c.l.b16 %v1636
        %v2304 = vunpack.c.h.b16 %v1636
        %v2305 = vunpack.c.l.b16 %v1637
        %v2306 = vunpack.c.h.b16 %v1637
        %v2307 = vunpack.c.l.b16 %v1638
        %v2308 = vunpack.c.h.b16 %v1638
        %v2309 = vunpack.c.l.b16 %v1639
        %v2310 = vunpack.c.h.b16 %v1639
        %v2311 = vunpack.c.l.b16 %v1640
        %v2312 = vunpack.c.h.b16 %v1640
        %v2313 = vunpack.c.l.b16 %v1641
        %v2314 = vunpack.c.h.b16 %v1641
        %v2315 = vunpack.c.l.b16 %v1642
        %v2316 = vunpack.c.h.b16 %v1642
        %v2317 = vunpack.c.l.b16 %v1643
        %v2318 = vunpack.c.h.b16 %v1643
        %v2319 = vunpack.c.l.b16 %v1644
        %v2320 = vunpack.c.h.b16 %v1644
        %v2321 = vunpack.c.l.b16 %v1645
        %v2322 = vunpack.c.h.b16 %v1645
        %v2323 = vunpack.c.l.b16 %v1646
        %v2324 = vunpack.c.h.b16 %v1646
        %v2325 = vunpack.c.l.b16 %v1647
        %v2326 = vunpack.c.h.b16 %v1647
        %v2327 = vunpack.c.l.b16 %v1648
        %v2328 = vunpack.c.h.b16 %v1648
        %v2329 = vunpack.c.l.b16 %v1649
        %v2330 = vunpack.c.h.b16 %v1649
        %v2331 = vunpack.c.l.b16 %v1650
        %v2332 = vunpack.c.h.b16 %v1650
        %v2333 = vunpack.c.l.b16 %v1651
        %v2334 = vunpack.c.h.b16 %v1651
        %v2335 = vunpack.c.l.b16 %v1652
        %v2336 = vunpack.c.h.b16 %v1652
        %v2337 = vunpack.c.l.b16 %v1653
        %v2338 = vunpack.c.h.b16 %v1653
        %v2339 = vunpack.c.l.b16 %v1654
        %v2340 = vunpack.c.h.b16 %v1654
        %v2341 = vunpack.c.l.b16 %v1655
        %v2342 = vunpack.c.h.b16 %v1655
        %v2343 = vunpack.c.l.b16 %v1656
        %v2344 = vunpack.c.h.b16 %v1656
        %v2345 = vunpack.c.l.b16 %v1657
        %v2346 = vunpack.c.h.b16 %v1657
        %v2347 = vunpack.c.l.b16 %v1658
        %v2348 = vunpack.c.h.b16 %v1658
        %v2349 = vunpack.c.l.b16 %v1659
        %v2350 = vunpack.c.h.b16 %v1659
        %v2351 = vunpack.c.l.b16 %v1660
        %v2352 = vunpack.c.h.b16 %v1660
        %v2353 = vunpack.c.l.b16 %v1661
        %v2354 = vunpack.c.h.b16 %v1661
        %v2355 = vunpack.c.l.b16 %v1662
        %v2356 = vunpack.c.h.b16 %v1662
        %v2357 = vunpack.c.l.b16 %v1663
        %v2358 = vunpack.c.h.b16 %v1663
        %v2359 = vunpack.c.l.b16 %v1664
        %v2360 = vunpack.c.h.b16 %v1664
        %v2361 = vunpack.c.l.b16 %v1665
        %v2362 = vunpack.c.h.b16 %v1665
        %v2363 = vunpack.c.l.b16 %v1666
        %v2364 = vunpack.c.h.b16 %v1666
        %v2365 = vunpack.c.l.b16 %v1667
        %v2366 = vunpack.c.h.b16 %v1667
        %v2367 = vunpack.c.l.b16 %v1668
        %v2368 = vunpack.c.h.b16 %v1668
        %v2369 = vunpack.c.l.b16 %v1669
        %v2370 = vunpack.c.h.b16 %v1669
        %v2371 = vunpack.c.l.b16 %v1670
        %v2372 = vunpack.c.h.b16 %v1670
        %v2373 = vunpack.c.l.b16 %v1671
        %v2374 = vunpack.c.h.b16 %v1671
        %v2375 = vunpack.c.l.b16 %v1672
        %v2376 = vunpack.c.h.b16 %v1672
        %v2377 = vunpack.c.l.b16 %v1673
        %v2378 = vunpack.c.h.b16 %v1673
        %v2379 = vunpack.c.l.b16 %v1674
        %v2380 = vunpack.c.h.b16 %v1674
        %v2381 = vunpack.c.l.b16 %v1675
        %v2382 = vunpack.c.h.b16 %v1675
        %v2383 = vunpack.c.l.b16 %v1676
        %v2384 = vunpack.c.h.b16 %v1676
        %v2385 = vunpack.c.l.b16 %v1677
        %v2386 = vunpack.c.h.b16 %v1677
        %v2387 = vunpack.c.l.b16 %v1678
        %v2388 = vunpack.c.h.b16 %v1678
        %v2389 = vunpack.c.l.b16 %v1679
        %v2390 = vunpack.c.h.b16 %v1679
        %v2391 = vunpack.c.l.b16 %v1680
        %v2392 = vunpack.c.h.b16 %v1680
        %v2393 = vunpack.c.l.b16 %v1681
        %v2394 = vunpack.c.h.b16 %v1681
        %v2395 = vunpack.c.l.b16 %v1682
        %v2396 = vunpack.c.h.b16 %v1682
        %v2397 = vunpack.c.l.b16 %v1683
        %v2398 = vunpack.c.h.b16 %v1683
        %v2399 = vunpack.c.l.b16 %v1684
        %v2400 = vunpack.c.h.b16 %v1684
        %v2401 = vunpack.c.l.b16 %v1685
        %v2402 = vunpack.c.h.b16 %v1685
        %v2403 = vunpack.c.l.b16 %v1686
        %v2404 = vunpack.c.h.b16 %v1686
        %v2405 = vunpack.c.l.b16 %v1687
        %v2406 = vunpack.c.h.b16 %v1687
        %v2407 = vunpack.c.l.b16 %v1688
        %v2408 = vunpack.c.h.b16 %v1688
        %v2409 = vunpack.c.l.b16 %v1689
        %v2410 = vunpack.c.h.b16 %v1689
        %v2411 = vunpack.c.l.b16 %v1690
        %v2412 = vunpack.c.h.b16 %v1690
        %v2413 = vunpack.c.l.b16 %v1691
        %v2414 = vunpack.c.h.b16 %v1691
        %v2415 = vunpack.c.l.b16 %v1692
        %v2416 = vunpack.c.h.b16 %v1692
        %v2417 = vunpack.c.l.b16 %v1693
        %v2418 = vunpack.c.h.b16 %v1693
        %v2419 = vunpack.c.l.b16 %v1694
        %v2420 = vunpack.c.h.b16 %v1694
        %v2421 = vunpack.c.l.b16 %v1695
        %v2422 = vunpack.c.h.b16 %v1695
        %v2423 = vunpack.c.l.b16 %v1696
        %v2424 = vunpack.c.h.b16 %v1696
        %v2425 = vunpack.c.l.b16 %v1697
        %v2426 = vunpack.c.h.b16 %v1697
        %v2427 = vunpack.c.l.b16 %v1698
        %v2428 = vunpack.c.h.b16 %v1698
        %v2429 = vunpack.c.l.b16 %v1699
        %v2430 = vunpack.c.h.b16 %v1699
        %v2431 = vunpack.c.l.b16 %v1700
        %v2432 = vunpack.c.h.b16 %v1700
        %v2433 = vunpack.c.l.b16 %v1701
        %v2434 = vunpack.c.h.b16 %v1701
        %v2435 = vunpack.c.l.b16 %v1702
        %v2436 = vunpack.c.h.b16 %v1702
        %v2437 = vunpack.c.l.b16 %v1703
        %v2438 = vunpack.c.h.b16 %v1703
        %v2439 = vunpack.c.l.b16 %v1704
        %v2440 = vunpack.c.h.b16 %v1704
        %v2441 = vunpack.c.l.b16 %v1705
        %v2442 = vunpack.c.h.b16 %v1705
        %v2443 = vunpack.c.l.b16 %v1706
        %v2444 = vunpack.c.h.b16 %v1706
        %v2445 = vunpack.c.l.b16 %v1707
        %v2446 = vunpack.c.h.b16 %v1707
        %v2447 = vunpack.c.l.b16 %v1708
        %v2448 = vunpack.c.h.b16 %v1708
        %v2449 = vunpack.c.l.b16 %v1709
        %v2450 = vunpack.c.h.b16 %v1709
        %v2451 = vunpack.c.l.b16 %v1710
        %v2452 = vunpack.c.h.b16 %v1710
        %v2453 = vunpack.c.l.b16 %v1711
        %v2454 = vunpack.c.h.b16 %v1711
        %v2455 = vunpack.c.l.b16 %v1712
        %v2456 = vunpack.c.h.b16 %v1712
        %v2457 = vunpack.c.l.b16 %v1713
        %v2458 = vunpack.c.h.b16 %v1713
        %v2459 = vunpack.c.l.b16 %v1714
        %v2460 = vunpack.c.h.b16 %v1714
        %v2461 = vunpack.c.l.b16 %v1715
        %v2462 = vunpack.c.h.b16 %v1715
        %v2463 = vunpack.c.l.b16 %v1716
        %v2464 = vunpack.c.h.b16 %v1716
        %v2465 = vunpack.c.l.b16 %v1717
        %v2466 = vunpack.c.h.b16 %v1717
        %v2467 = vunpack.c.l.b16 %v1718
        %v2468 = vunpack.c.h.b16 %v1718
        %v2469 = vunpack.c.l.b16 %v1719
        %v2470 = vunpack.c.h.b16 %v1719
        %v2471 = vunpack.c.l.b16 %v1720
        %v2472 = vunpack.c.h.b16 %v1720
        %v2473 = vunpack.c.l.b16 %v1721
        %v2474 = vunpack.c.h.b16 %v1721
        %v2475 = vunpack.c.l.b16 %v1722
        %v2476 = vunpack.c.h.b16 %v1722
        %v2477 = vunpack.c.l.b16 %v1723
        %v2478 = vunpack.c.h.b16 %v1723
        %v2479 = vunpack.c.l.b16 %v1724
        %v2480 = vunpack.c.h.b16 %v1724
        %v2481 = vunpack.c.l.b16 %v1725
        %v2482 = vunpack.c.h.b16 %v1725
        %v2483 = vunpack.c.l.b16 %v1726
        %v2484 = vunpack.c.h.b16 %v1726
        %v2485 = vunpack.c.l.b16 %v1727
        %v2486 = vunpack.c.h.b16 %v1727
        %v2487 = vunpack.c.l.b16 %v1728
        %v2488 = vunpack.c.h.b16 %v1728
        %v2489 = vunpack.c.l.b16 %v1729
        %v2490 = vunpack.c.h.b16 %v1729
        %v2491 = vunpack.c.l.b16 %v1730
        %v2492 = vunpack.c.h.b16 %v1730
        %v2493 = vunpack.c.l.b16 %v1731
        %v2494 = vunpack.c.h.b16 %v1731
        %v2495 = vunpack.c.l.b16 %v1732
        %v2496 = vunpack.c.h.b16 %v1732
        %v2497 = vunpack.c.l.b16 %v1733
        %v2498 = vunpack.c.h.b16 %v1733
        %v2499 = vunpack.c.l.b16 %v1734
        %v2500 = vunpack.c.h.b16 %v1734
        %v2501 = vunpack.c.l.b16 %v1735
        %v2502 = vunpack.c.h.b16 %v1735
        %v2503 = vunpack.c.l.b16 %v1736
        %v2504 = vunpack.c.h.b16 %v1736
        %v2505 = vpack.c.b16 %v2001, %v1993
        %v2506 = vpack.c.b16 %v2002, %v1994
        %v2507 = vpack.c.b16 %v2003, %v1995
        %v2508 = vpack.c.b16 %v2004, %v1996
        %v2509 = vpack.c.b16 %v2005, %v1997
        %v2510 = vpack.c.b16 %v2006, %v1998
        %v2511 = vpack.c.b16 %v2007, %v1999
        %v2512 = vpack.c.b16 %v2008, %v2000
        %v2513 = vpack.c.b16 %v2017, %v2009
        %v2514 = vpack.c.b16 %v2018, %v2010
        %v2515 = vpack.c.b16 %v2019, %v2011
        %v2516 = vpack.c.b16 %v2020, %v2012
        %v2517 = vpack.c.b16 %v2021, %v2013
        %v2518 = vpack.c.b16 %v2022, %v2014
        %v2519 = vpack.c.b16 %v2023, %v2015
        %v2520 = vpack.c.b16 %v2024, %v2016
        %v2521 = vpack.c.b16 %v2033, %v2025
        %v2522 = vpack.c.b16 %v2034, %v2026
        %v2523 = vpack.c.b16 %v2035, %v2027
        %v2524 = vpack.c.b16 %v2036, %v2028
        %v2525 = vpack.c.b16 %v2037, %v2029
        %v2526 = vpack.c.b16 %v2038, %v2030
        %v2527 = vpack.c.b16 %v2039, %v2031
        %v2528 = vpack.c.b16 %v2040, %v2032
        %v2529 = vpack.c.b16 %v2049, %v2041
        %v2530 = vpack.c.b16 %v2050, %v2042
        %v2531 = vpack.c.b16 %v2051, %v2043
        %v2532 = vpack.c.b16 %v2052, %v2044
        %v2533 = vpack.c.b16 %v2053, %v2045
        %v2534 = vpack.c.b16 %v2054, %v2046
        %v2535 = vpack.c.b16 %v2055, %v2047
        %v2536 = vpack.c.b16 %v2056, %v2048
        %v2537 = vpack.c.b16 %v2065, %v2057
        %v2538 = vpack.c.b16 %v2066, %v2058
        %v2539 = vpack.c.b16 %v2067, %v2059
        %v2540 = vpack.c.b16 %v2068, %v2060
        %v2541 = vpack.c.b16 %v2069, %v2061
        %v2542 = vpack.c.b16 %v2070, %v2062
        %v2543 = vpack.c.b16 %v2071, %v2063
        %v2544 = vpack.c.b16 %v2072, %v2064
        %v2545 = vpack.c.b16 %v2081, %v2073
        %v2546 = vpack.c.b16 %v2082, %v2074
        %v2547 = vpack.c.b16 %v2083, %v2075
        %v2548 = vpack.c.b16 %v2084, %v2076
        %v2549 = vpack.c.b16 %v2085, %v2077
        %v2550 = vpack.c.b16 %v2086, %v2078
        %v2551 = vpack.c.b16 %v2087, %v2079
        %v2552 = vpack.c.b16 %v2088, %v2080
        %v2553 = vpack.c.b16 %v2097, %v2089
        %v2554 = vpack.c.b16 %v2098, %v2090
        %v2555 = vpack.c.b16 %v2099, %v2091
        %v2556 = vpack.c.b16 %v2100, %v2092
        %v2557 = vpack.c.b16 %v2101, %v2093
        %v2558 = vpack.c.b16 %v2102, %v2094
        %v2559 = vpack.c.b16 %v2103, %v2095
        %v2560 = vpack.c.b16 %v2104, %v2096
        %v2561 = vpack.c.b16 %v2113, %v2105
        %v2562 = vpack.c.b16 %v2114, %v2106
        %v2563 = vpack.c.b16 %v2115, %v2107
        %v2564 = vpack.c.b16 %v2116, %v2108
        %v2565 = vpack.c.b16 %v2117, %v2109
        %v2566 = vpack.c.b16 %v2118, %v2110
        %v2567 = vpack.c.b16 %v2119, %v2111
        %v2568 = vpack.c.b16 %v2120, %v2112
        %v2569 = vpack.c.b16 %v2129, %v2121
        %v2570 = vpack.c.b16 %v2130, %v2122
        %v2571 = vpack.c.b16 %v2131, %v2123
        %v2572 = vpack.c.b16 %v2132, %v2124
        %v2573 = vpack.c.b16 %v2133, %v2125
        %v2574 = vpack.c.b16 %v2134, %v2126
        %v2575 = vpack.c.b16 %v2135, %v2127
        %v2576 = vpack.c.b16 %v2136, %v2128
        %v2577 = vpack.c.b16 %v2145, %v2137
        %v2578 = vpack.c.b16 %v2146, %v2138
        %v2579 = vpack.c.b16 %v2147, %v2139
        %v2580 = vpack.c.b16 %v2148, %v2140
        %v2581 = vpack.c.b16 %v2149, %v2141
        %v2582 = vpack.c.b16 %v2150, %v2142
        %v2583 = vpack.c.b16 %v2151, %v2143
        %v2584 = vpack.c.b16 %v2152, %v2144
        %v2585 = vpack.c.b16 %v2161, %v2153
        %v2586 = vpack.c.b16 %v2162, %v2154
        %v2587 = vpack.c.b16 %v2163, %v2155
        %v2588 = vpack.c.b16 %v2164, %v2156
        %v2589 = vpack.c.b16 %v2165, %v2157
        %v2590 = vpack.c.b16 %v2166, %v2158
        %v2591 = vpack.c.b16 %v2167, %v2159
        %v2592 = vpack.c.b16 %v2168, %v2160
        %v2593 = vpack.c.b16 %v2177, %v2169
        %v2594 = vpack.c.b16 %v2178, %v2170
        %v2595 = vpack.c.b16 %v2179, %v2171
        %v2596 = vpack.c.b16 %v2180, %v2172
        %v2597 = vpack.c.b16 %v2181, %v2173
        %v2598 = vpack.c.b16 %v2182, %v2174
        %v2599 = vpack.c.b16 %v2183, %v2175
        %v2600 = vpack.c.b16 %v2184, %v2176
        %v2601 = vpack.c.b16 %v2193, %v2185
        %v2602 = vpack.c.b16 %v2194, %v2186
        %v2603 = vpack.c.b16 %v2195, %v2187
        %v2604 = vpack.c.b16 %v2196, %v2188
        %v2605 = vpack.c.b16 %v2197, %v2189
        %v2606 = vpack.c.b16 %v2198, %v2190
        %v2607 = vpack.c.b16 %v2199, %v2191
        %v2608 = vpack.c.b16 %v2200, %v2192
        %v2609 = vpack.c.b16 %v2209, %v2201
        %v2610 = vpack.c.b16 %v2210, %v2202
        %v2611 = vpack.c.b16 %v2211, %v2203
        %v2612 = vpack.c.b16 %v2212, %v2204
        %v2613 = vpack.c.b16 %v2213, %v2205
        %v2614 = vpack.c.b16 %v2214, %v2206
        %v2615 = vpack.c.b16 %v2215, %v2207
        %v2616 = vpack.c.b16 %v2216, %v2208
        %v2617 = vpack.c.b16 %v2225, %v2217
        %v2618 = vpack.c.b16 %v2226, %v2218
        %v2619 = vpack.c.b16 %v2227, %v2219
        %v2620 = vpack.c.b16 %v2228, %v2220
        %v2621 = vpack.c.b16 %v2229, %v2221
        %v2622 = vpack.c.b16 %v2230, %v2222
        %v2623 = vpack.c.b16 %v2231, %v2223
        %v2624 = vpack.c.b16 %v2232, %v2224
        %v2625 = vpack.c.b16 %v2241, %v2233
        %v2626 = vpack.c.b16 %v2242, %v2234
        %v2627 = vpack.c.b16 %v2243, %v2235
        %v2628 = vpack.c.b16 %v2244, %v2236
        %v2629 = vpack.c.b16 %v2245, %v2237
        %v2630 = vpack.c.b16 %v2246, %v2238
        %v2631 = vpack.c.b16 %v2247, %v2239
        %v2632 = vpack.c.b16 %v2248, %v2240
        %v2633 = vpack.c.b16 %v2257, %v2249
        %v2634 = vpack.c.b16 %v2258, %v2250
        %v2635 = vpack.c.b16 %v2259, %v2251
        %v2636 = vpack.c.b16 %v2260, %v2252
        %v2637 = vpack.c.b16 %v2261, %v2253
        %v2638 = vpack.c.b16 %v2262, %v2254
        %v2639 = vpack.c.b16 %v2263, %v2255
        %v2640 = vpack.c.b16 %v2264, %v2256
        %v2641 = vpack.c.b16 %v2273, %v2265
        %v2642 = vpack.c.b16 %v2274, %v2266
        %v2643 = vpack.c.b16 %v2275, %v2267
        %v2644 = vpack.c.b16 %v2276, %v2268
        %v2645 = vpack.c.b16 %v2277, %v2269
        %v2646 = vpack.c.b16 %v2278, %v2270
        %v2647 = vpack.c.b16 %v2279, %v2271
        %v2648 = vpack.c.b16 %v2280, %v2272
        %v2649 = vpack.c.b16 %v2289, %v2281
        %v2650 = vpack.c.b16 %v2290, %v2282
        %v2651 = vpack.c.b16 %v2291, %v2283
        %v2652 = vpack.c.b16 %v2292, %v2284
        %v2653 = vpack.c.b16 %v2293, %v2285
        %v2654 = vpack.c.b16 %v2294, %v2286
        %v2655 = vpack.c.b16 %v2295, %v2287
        %v2656 = vpack.c.b16 %v2296, %v2288
        %v2657 = vpack.c.b16 %v2305, %v2297
        %v2658 = vpack.c.b16 %v2306, %v2298
        %v2659 = vpack.c.b16 %v2307, %v2299
        %v2660 = vpack.c.b16 %v2308, %v2300
        %v2661 = vpack.c.b16 %v2309, %v2301
        %v2662 = vpack.c.b16 %v2310, %v2302
        %v2663 = vpack.c.b16 %v2311, %v2303
        %v2664 = vpack.c.b16 %v2312, %v2304
        %v2665 = vpack.c.b16 %v2321, %v2313
        %v2666 = vpack.c.b16 %v2322, %v2314
        %v2667 = vpack.c.b16 %v2323, %v2315
        %v2668 = vpack.c.b16 %v2324, %v2316
        %v2669 = vpack.c.b16 %v2325, %v2317
        %v2670 = vpack.c.b16 %v2326, %v2318
        %v2671 = vpack.c.b16 %v2327, %v2319
        %v2672 = vpack.c.b16 %v2328, %v2320
        %v2673 = vpack.c.b16 %v2337, %v2329
        %v2674 = vpack.c.b16 %v2338, %v2330
        %v2675 = vpack.c.b16 %v2339, %v2331
        %v2676 = vpack.c.b16 %v2340, %v2332
        %v2677 = vpack.c.b16 %v2341, %v2333
        %v2678 = vpack.c.b16 %v2342, %v2334
        %v2679 = vpack.c.b16 %v2343, %v2335
        %v2680 = vpack.c.b16 %v2344, %v2336
        %v2681 = vpack.c.b16 %v2353, %v2345
        %v2682 = vpack.c.b16 %v2354, %v2346
        %v2683 = vpack.c.b16 %v2355, %v2347
        %v2684 = vpack.c.b16 %v2356, %v2348
        %v2685 = vpack.c.b16 %v2357, %v2349
        %v2686 = vpack.c.b16 %v2358, %v2350
        %v2687 = vpack.c.b16 %v2359, %v2351
        %v2688 = vpack.c.b16 %v2360, %v2352
        %v2689 = vpack.c.b16 %v2369, %v2361
        %v2690 = vpack.c.b16 %v2370, %v2362
        %v2691 = vpack.c.b16 %v2371, %v2363
        %v2692 = vpack.c.b16 %v2372, %v2364
        %v2693 = vpack.c.b16 %v2373, %v2365
        %v2694 = vpack.c.b16 %v2374, %v2366
        %v2695 = vpack.c.b16 %v2375, %v2367
        %v2696 = vpack.c.b16 %v2376, %v2368
        %v2697 = vpack.c.b16 %v2385, %v2377
        %v2698 = vpack.c.b16 %v2386, %v2378
        %v2699 = vpack.c.b16 %v2387, %v2379
        %v2700 = vpack.c.b16 %v2388, %v2380
        %v2701 = vpack.c.b16 %v2389, %v2381
        %v2702 = vpack.c.b16 %v2390, %v2382
        %v2703 = vpack.c.b16 %v2391, %v2383
        %v2704 = vpack.c.b16 %v2392, %v2384
        %v2705 = vpack.c.b16 %v2401, %v2393
        %v2706 = vpack.c.b16 %v2402, %v2394
        %v2707 = vpack.c.b16 %v2403, %v2395
        %v2708 = vpack.c.b16 %v2404, %v2396
        %v2709 = vpack.c.b16 %v2405, %v2397
        %v2710 = vpack.c.b16 %v2406, %v2398
        %v2711 = vpack.c.b16 %v2407, %v2399
        %v2712 = vpack.c.b16 %v2408, %v2400
        %v2713 = vpack.c.b16 %v2417, %v2409
        %v2714 = vpack.c.b16 %v2418, %v2410
        %v2715 = vpack.c.b16 %v2419, %v2411
        %v2716 = vpack.c.b16 %v2420, %v2412
        %v2717 = vpack.c.b16 %v2421, %v2413
        %v2718 = vpack.c.b16 %v2422, %v2414
        %v2719 = vpack.c.b16 %v2423, %v2415
        %v2720 = vpack.c.b16 %v2424, %v2416
        %v2721 = vpack.c.b16 %v2433, %v2425
        %v2722 = vpack.c.b16 %v2434, %v2426
        %v2723 = vpack.c.b16 %v2435, %v2427
        %v2724 = vpack.c.b16 %v2436, %v2428
        %v2725 = vpack.c.b16 %v2437, %v2429
        %v2726 = vpack.c.b16 %v2438, %v2430
        %v2727 = vpack.c.b16 %v2439, %v2431
        %v2728 = vpack.c.b16 %v2440, %v2432
        %v2729 = vpack.c.b16 %v2449, %v2441
        %v2730 = vpack.c.b16 %v2450, %v2442
        %v2731 = vpack.c.b16 %v2451, %v2443
        %v2732 = vpack.c.b16 %v2452, %v2444
        %v2733 = vpack.c.b16 %v2453, %v2445
        %v2734 = vpack.c.b16 %v2454, %v2446
        %v2735 = vpack.c.b16 %v2455, %v2447
        %v2736 = vpack.c.b16 %v2456, %v2448
        %v2737 = vpack.c.b16 %v2465, %v2457
        %v2738 = vpack.c.b16 %v2466, %v2458
        %v2739 = vpack.c.b16 %v2467, %v2459
        %v2740 = vpack.c.b16 %v2468, %v2460
        %v2741 = vpack.c.b16 %v2469, %v2461
        %v2742 = vpack.c.b16 %v2470, %v2462
        %v2743 = vpack.c.b16 %v2471, %v2463
        %v2744 = vpack.c.b16 %v2472, %v2464
        %v2745 = vpack.c.b16 %v2481, %v2473
        %v2746 = vpack.c.b16 %v2482, %v2474
        %v2747 = vpack.c.b16 %v2483, %v2475
        %v2748 = vpack.c.b16 %v2484, %v2476
        %v2749 = vpack.c.b16 %v2485, %v2477
        %v2750 = vpack.c.b16 %v2486, %v2478
        %v2751 = vpack.c.b16 %v2487, %v2479
        %v2752 = vpack.c.b16 %v2488, %v2480
        %v2753 = vpack.c.b16 %v2497, %v2489
        %v2754 = vpack.c.b16 %v2498, %v2490
        %v2755 = vpack.c.b16 %v2499, %v2491
        %v2756 = vpack.c.b16 %v2500, %v2492
        %v2757 = vpack.c.b16 %v2501, %v2493
        %v2758 = vpack.c.b16 %v2502, %v2494
        %v2759 = vpack.c.b16 %v2503, %v2495
        %v2760 = vpack.c.b16 %v2504, %v2496
        %3017 = vmatprep.subr.bf16.mxu0 %v2506
        %3018 = vmatpush1.bf16.msra.mxu0 %v2505
        %3019 = vmatprep.subr.bf16.mxu0 %v2514
        %3020 = vmatpush1.bf16.msra.mxu0 %v2513
        %3021 = vmatprep.subr.bf16.mxu0 %v2522
        %3022 = vmatpush1.bf16.msra.mxu0 %v2521
        %3023 = vmatprep.subr.bf16.mxu0 %v2530
        %3024 = vmatpush1.bf16.msra.mxu0 %v2529
        %3025 = vmatprep.subr.bf16.mxu0 %v2538
        %3026 = vmatpush1.bf16.msra.mxu0 %v2537
        %3027 = vmatprep.subr.bf16.mxu0 %v2546
        %3028 = vmatpush1.bf16.msra.mxu0 %v2545
        %3029 = vmatprep.subr.bf16.mxu0 %v2554
        %3030 = vmatpush1.bf16.msra.mxu0 %v2553
        %3031 = vmatprep.subr.bf16.mxu0 %v2562
        %3032 = vmatpush1.bf16.msra.mxu0 %v2561
        %3033 = vmatprep.subr.bf16.mxu0 %v2570
        %3034 = vmatpush1.bf16.msra.mxu0 %v2569
        %3035 = vmatprep.subr.bf16.mxu0 %v2578
        %3036 = vmatpush1.bf16.msra.mxu0 %v2577
        %3037 = vmatprep.subr.bf16.mxu0 %v2586
        %3038 = vmatpush1.bf16.msra.mxu0 %v2585
        %3039 = vmatprep.subr.bf16.mxu0 %v2594
        %3040 = vmatpush1.bf16.msra.mxu0 %v2593
        %3041 = vmatprep.subr.bf16.mxu0 %v2602
        %3042 = vmatpush1.bf16.msra.mxu0 %v2601
        %3043 = vmatprep.subr.bf16.mxu0 %v2610
        %3044 = vmatpush1.bf16.msra.mxu0 %v2609
        %3045 = vmatprep.subr.bf16.mxu0 %v2618
        %3046 = vmatpush1.bf16.msra.mxu0 %v2617
        %3047 = vmatprep.subr.bf16.mxu0 %v2626
        %3048 = vmatpush1.bf16.msra.mxu0 %v2625
        %3049 = vmatprep.mubr.bf16.mxu0 %v1478
        %3050 = vmatmul.mubr.bf16.gmra.mrb[0].mxu0 %v1477
        %v3051 = vpop.f32.mrb[0].mxu0
        %v3052 = vadd.f32 0.0, %v3051
        %v3053 = vpop.f32.mrb[0].mxu0
        %v3054 = vadd.f32 0.0, %v3053
        %v3055 = vpop.f32.mrb[0].mxu0
        %v3056 = vpop.f32.mrb[0].mxu0
        %3057 = vdwg.mxu0
        %3058 = vmatprep.subr.bf16.mxu0 %v2634
        %3059 = vmatpush1.bf16.msra.mxu0 %v2633
        %3060 = vmatprep.subr.bf16.mxu0 %v2642
        %3061 = vmatpush1.bf16.msra.mxu0 %v2641
        %3062 = vmatprep.subr.bf16.mxu0 %v2650
        %3063 = vmatpush1.bf16.msra.mxu0 %v2649
        %3064 = vmatprep.subr.bf16.mxu0 %v2658
        %3065 = vmatpush1.bf16.msra.mxu0 %v2657
        %3066 = vmatprep.subr.bf16.mxu0 %v2666
        %3067 = vmatpush1.bf16.msra.mxu0 %v2665
        %3068 = vmatprep.subr.bf16.mxu0 %v2674
        %3069 = vmatpush1.bf16.msra.mxu0 %v2673
        %3070 = vmatprep.subr.bf16.mxu0 %v2682
        %3071 = vmatpush1.bf16.msra.mxu0 %v2681
        %3072 = vmatprep.subr.bf16.mxu0 %v2690
        %3073 = vmatpush1.bf16.msra.mxu0 %v2689
        %3074 = vmatprep.subr.bf16.mxu0 %v2698
        %3075 = vmatpush1.bf16.msra.mxu0 %v2697
        %3076 = vmatprep.subr.bf16.mxu0 %v2706
        %3077 = vmatpush1.bf16.msra.mxu0 %v2705
        %3078 = vmatprep.subr.bf16.mxu0 %v2714
        %3079 = vmatpush1.bf16.msra.mxu0 %v2713
        %3080 = vmatprep.subr.bf16.mxu0 %v2722
        %3081 = vmatpush1.bf16.msra.mxu0 %v2721
        %3082 = vmatprep.subr.bf16.mxu0 %v2730
        %3083 = vmatpush1.bf16.msra.mxu0 %v2729
        %3084 = vmatprep.subr.bf16.mxu0 %v2738
        %3085 = vmatpush1.bf16.msra.mxu0 %v2737
        %3086 = vmatprep.subr.bf16.mxu0 %v2746
        %3087 = vmatpush1.bf16.msra.mxu0 %v2745
        %3088 = vmatprep.subr.bf16.mxu0 %v2754
        %3089 = vmatpush1.bf16.msra.mxu0 %v2753
        %3090 = vmatprep.mubr.bf16.mxu0 %v1480
        %3091 = vmatmul.mubr.bf16.gmra.mrb[0].mxu0 %v1479
        %v3092 = vpop.f32.mrb[0].mxu0
        %v3093 = vadd.f32 %v3052, %v3092
        %v3094 = vpop.f32.mrb[0].mxu0
        %v3095 = vadd.f32 %v3054, %v3094
        %v3096 = vpop.f32.mrb[0].mxu0
        %v3097 = vpop.f32.mrb[0].mxu0
        %3098 = vdwg.mxu0
        %3099 = vmatprep.subr.bf16.mxu0 %v2508
        %3100 = vmatpush1.bf16.msra.mxu0 %v2507
        %3101 = vmatprep.subr.bf16.mxu0 %v2516
        %3102 = vmatpush1.bf16.msra.mxu0 %v2515
        %3103 = vmatprep.subr.bf16.mxu0 %v2524
        %3104 = vmatpush1.bf16.msra.mxu0 %v2523
        %3105 = vmatprep.subr.bf16.mxu0 %v2532
        %3106 = vmatpush1.bf16.msra.mxu0 %v2531
        %3107 = vmatprep.subr.bf16.mxu0 %v2540
        %3108 = vmatpush1.bf16.msra.mxu0 %v2539
        %3109 = vmatprep.subr.bf16.mxu0 %v2548
        %3110 = vmatpush1.bf16.msra.mxu0 %v2547
        %3111 = vmatprep.subr.bf16.mxu0 %v2556
        %3112 = vmatpush1.bf16.msra.mxu0 %v2555
        %3113 = vmatprep.subr.bf16.mxu0 %v2564
        %3114 = vmatpush1.bf16.msra.mxu0 %v2563
        %3115 = vmatprep.subr.bf16.mxu0 %v2572
        %3116 = vmatpush1.bf16.msra.mxu0 %v2571
        %3117 = vmatprep.subr.bf16.mxu0 %v2580
        %3118 = vmatpush1.bf16.msra.mxu0 %v2579
        %3119 = vmatprep.subr.bf16.mxu0 %v2588
        %3120 = vmatpush1.bf16.msra.mxu0 %v2587
        %3121 = vmatprep.subr.bf16.mxu0 %v2596
        %3122 = vmatpush1.bf16.msra.mxu0 %v2595
        %3123 = vmatprep.subr.bf16.mxu0 %v2604
        %3124 = vmatpush1.bf16.msra.mxu0 %v2603
        %3125 = vmatprep.subr.bf16.mxu0 %v2612
        %3126 = vmatpush1.bf16.msra.mxu0 %v2611
        %3127 = vmatprep.subr.bf16.mxu0 %v2620
        %3128 = vmatpush1.bf16.msra.mxu0 %v2619
        %3129 = vmatprep.subr.bf16.mxu0 %v2628
        %3130 = vmatpush1.bf16.msra.mxu0 %v2627
        %3131 = vmatprep.mubr.bf16.mxu0 %v1478
        %3132 = vmatmul.mubr.bf16.gmra.mrb[0].mxu0 %v1477
        %v3133 = vpop.f32.mrb[0].mxu0
        %v3134 = vadd.f32 0.0, %v3133
        %v3135 = vpop.f32.mrb[0].mxu0
        %v3136 = vadd.f32 0.0, %v3135
        %v3137 = vpop.f32.mrb[0].mxu0
        %v3138 = vpop.f32.mrb[0].mxu0
        %3139 = vdwg.mxu0
        %3140 = vmatprep.subr.bf16.mxu0 %v2636
        %3141 = vmatpush1.bf16.msra.mxu0 %v2635
        %3142 = vmatprep.subr.bf16.mxu0 %v2644
        %3143 = vmatpush1.bf16.msra.mxu0 %v2643
        %3144 = vmatprep.subr.bf16.mxu0 %v2652
        %3145 = vmatpush1.bf16.msra.mxu0 %v2651
        %3146 = vmatprep.subr.bf16.mxu0 %v2660
        %3147 = vmatpush1.bf16.msra.mxu0 %v2659
        %3148 = vmatprep.subr.bf16.mxu0 %v2668
        %3149 = vmatpush1.bf16.msra.mxu0 %v2667
        %3150 = vmatprep.subr.bf16.mxu0 %v2676
        %3151 = vmatpush1.bf16.msra.mxu0 %v2675
        %3152 = vmatprep.subr.bf16.mxu0 %v2684
        %3153 = vmatpush1.bf16.msra.mxu0 %v2683
        %3154 = vmatprep.subr.bf16.mxu0 %v2692
        %3155 = vmatpush1.bf16.msra.mxu0 %v2691
        %3156 = vmatprep.subr.bf16.mxu0 %v2700
        %3157 = vmatpush1.bf16.msra.mxu0 %v2699
        %3158 = vmatprep.subr.bf16.mxu0 %v2708
        %3159 = vmatpush1.bf16.msra.mxu0 %v2707
        %3160 = vmatprep.subr.bf16.mxu0 %v2716
        %3161 = vmatpush1.bf16.msra.mxu0 %v2715
        %3162 = vmatprep.subr.bf16.mxu0 %v2724
        %3163 = vmatpush1.bf16.msra.mxu0 %v2723
        %3164 = vmatprep.subr.bf16.mxu0 %v2732
        %3165 = vmatpush1.bf16.msra.mxu0 %v2731
        %3166 = vmatprep.subr.bf16.mxu0 %v2740
        %3167 = vmatpush1.bf16.msra.mxu0 %v2739
        %3168 = vmatprep.subr.bf16.mxu0 %v2748
        %3169 = vmatpush1.bf16.msra.mxu0 %v2747
        %3170 = vmatprep.subr.bf16.mxu0 %v2756
        %3171 = vmatpush1.bf16.msra.mxu0 %v2755
        %3172 = vmatprep.mubr.bf16.mxu0 %v1480
        %3173 = vmatmul.mubr.bf16.gmra.mrb[0].mxu0 %v1479
        %v3174 = vpop.f32.mrb[0].mxu0
        %v3175 = vadd.f32 %v3134, %v3174
        %v3176 = vpop.f32.mrb[0].mxu0
        %v3177 = vadd.f32 %v3136, %v3176
        %v3178 = vpop.f32.mrb[0].mxu0
        %v3179 = vpop.f32.mrb[0].mxu0
        %3180 = vdwg.mxu0
        %3181 = vmatprep.subr.bf16.mxu0 %v2510
        %3182 = vmatpush1.bf16.msra.mxu0 %v2509
        %3183 = vmatprep.subr.bf16.mxu0 %v2518
        %3184 = vmatpush1.bf16.msra.mxu0 %v2517
        %3185 = vmatprep.subr.bf16.mxu0 %v2526
        %3186 = vmatpush1.bf16.msra.mxu0 %v2525
        %3187 = vmatprep.subr.bf16.mxu0 %v2534
        %3188 = vmatpush1.bf16.msra.mxu0 %v2533
        %3189 = vmatprep.subr.bf16.mxu0 %v2542
        %3190 = vmatpush1.bf16.msra.mxu0 %v2541
        %3191 = vmatprep.subr.bf16.mxu0 %v2550
        %3192 = vmatpush1.bf16.msra.mxu0 %v2549
        %3193 = vmatprep.subr.bf16.mxu0 %v2558
        %3194 = vmatpush1.bf16.msra.mxu0 %v2557
        %3195 = vmatprep.subr.bf16.mxu0 %v2566
        %3196 = vmatpush1.bf16.msra.mxu0 %v2565
        %3197 = vmatprep.subr.bf16.mxu0 %v2574
        %3198 = vmatpush1.bf16.msra.mxu0 %v2573
        %3199 = vmatprep.subr.bf16.mxu0 %v2582
        %3200 = vmatpush1.bf16.msra.mxu0 %v2581
        %3201 = vmatprep.subr.bf16.mxu0 %v2590
        %3202 = vmatpush1.bf16.msra.mxu0 %v2589
        %3203 = vmatprep.subr.bf16.mxu0 %v2598
        %3204 = vmatpush1.bf16.msra.mxu0 %v2597
        %3205 = vmatprep.subr.bf16.mxu0 %v2606
        %3206 = vmatpush1.bf16.msra.mxu0 %v2605
        %3207 = vmatprep.subr.bf16.mxu0 %v2614
        %3208 = vmatpush1.bf16.msra.mxu0 %v2613
        %3209 = vmatprep.subr.bf16.mxu0 %v2622
        %3210 = vmatpush1.bf16.msra.mxu0 %v2621
        %3211 = vmatprep.subr.bf16.mxu0 %v2630
        %3212 = vmatpush1.bf16.msra.mxu0 %v2629
        %3213 = vmatprep.mubr.bf16.mxu0 %v1478
        %3214 = vmatmul.mubr.bf16.gmra.mrb[0].mxu0 %v1477
        %v3215 = vpop.f32.mrb[0].mxu0
        %v3216 = vadd.f32 0.0, %v3215
        %v3217 = vpop.f32.mrb[0].mxu0
        %v3218 = vadd.f32 0.0, %v3217
        %v3219 = vpop.f32.mrb[0].mxu0
        %v3220 = vpop.f32.mrb[0].mxu0
        %3221 = vdwg.mxu0
        %3222 = vmatprep.subr.bf16.mxu0 %v2638
        %3223 = vmatpush1.bf16.msra.mxu0 %v2637
        %3224 = vmatprep.subr.bf16.mxu0 %v2646
        %3225 = vmatpush1.bf16.msra.mxu0 %v2645
        %3226 = vmatprep.subr.bf16.mxu0 %v2654
        %3227 = vmatpush1.bf16.msra.mxu0 %v2653
        %3228 = vmatprep.subr.bf16.mxu0 %v2662
        %3229 = vmatpush1.bf16.msra.mxu0 %v2661
        %3230 = vmatprep.subr.bf16.mxu0 %v2670
        %3231 = vmatpush1.bf16.msra.mxu0 %v2669
        %3232 = vmatprep.subr.bf16.mxu0 %v2678
        %3233 = vmatpush1.bf16.msra.mxu0 %v2677
        %3234 = vmatprep.subr.bf16.mxu0 %v2686
        %3235 = vmatpush1.bf16.msra.mxu0 %v2685
        %3236 = vmatprep.subr.bf16.mxu0 %v2694
        %3237 = vmatpush1.bf16.msra.mxu0 %v2693
        %3238 = vmatprep.subr.bf16.mxu0 %v2702
        %3239 = vmatpush1.bf16.msra.mxu0 %v2701
        %3240 = vmatprep.subr.bf16.mxu0 %v2710
        %3241 = vmatpush1.bf16.msra.mxu0 %v2709
        %3242 = vmatprep.subr.bf16.mxu0 %v2718
        %3243 = vmatpush1.bf16.msra.mxu0 %v2717
        %3244 = vmatprep.subr.bf16.mxu0 %v2726
        %3245 = vmatpush1.bf16.msra.mxu0 %v2725
        %3246 = vmatprep.subr.bf16.mxu0 %v2734
        %3247 = vmatpush1.bf16.msra.mxu0 %v2733
        %3248 = vmatprep.subr.bf16.mxu0 %v2742
        %3249 = vmatpush1.bf16.msra.mxu0 %v2741
        %3250 = vmatprep.subr.bf16.mxu0 %v2750
        %3251 = vmatpush1.bf16.msra.mxu0 %v2749
        %3252 = vmatprep.subr.bf16.mxu0 %v2758
        %3253 = vmatpush1.bf16.msra.mxu0 %v2757
        %3254 = vmatprep.mubr.bf16.mxu0 %v1480
        %3255 = vmatmul.mubr.bf16.gmra.mrb[0].mxu0 %v1479
        %v3256 = vpop.f32.mrb[0].mxu0
        %v3257 = vadd.f32 %v3216, %v3256
        %v3258 = vpop.f32.mrb[0].mxu0
        %v3259 = vadd.f32 %v3218, %v3258
        %v3260 = vpop.f32.mrb[0].mxu0
        %v3261 = vpop.f32.mrb[0].mxu0
        %3262 = vdwg.mxu0
        %3263 = vmatprep.subr.bf16.mxu0 %v2512
        %3264 = vmatpush1.bf16.msra.mxu0 %v2511
        %3265 = vmatprep.subr.bf16.mxu0 %v2520
        %3266 = vmatpush1.bf16.msra.mxu0 %v2519
        %3267 = vmatprep.subr.bf16.mxu0 %v2528
        %3268 = vmatpush1.bf16.msra.mxu0 %v2527
        %3269 = vmatprep.subr.bf16.mxu0 %v2536
        %3270 = vmatpush1.bf16.msra.mxu0 %v2535
        %3271 = vmatprep.subr.bf16.mxu0 %v2544
        %3272 = vmatpush1.bf16.msra.mxu0 %v2543
        %3273 = vmatprep.subr.bf16.mxu0 %v2552
        %3274 = vmatpush1.bf16.msra.mxu0 %v2551
        %3275 = vmatprep.subr.bf16.mxu0 %v2560
        %3276 = vmatpush1.bf16.msra.mxu0 %v2559
        %3277 = vmatprep.subr.bf16.mxu0 %v2568
        %3278 = vmatpush1.bf16.msra.mxu0 %v2567
        %3279 = vmatprep.subr.bf16.mxu0 %v2576
        %3280 = vmatpush1.bf16.msra.mxu0 %v2575
        %3281 = vmatprep.subr.bf16.mxu0 %v2584
        %3282 = vmatpush1.bf16.msra.mxu0 %v2583
        %3283 = vmatprep.subr.bf16.mxu0 %v2592
        %3284 = vmatpush1.bf16.msra.mxu0 %v2591
        %3285 = vmatprep.subr.bf16.mxu0 %v2600
        %3286 = vmatpush1.bf16.msra.mxu0 %v2599
        %3287 = vmatprep.subr.bf16.mxu0 %v2608
        %3288 = vmatpush1.bf16.msra.mxu0 %v2607
        %3289 = vmatprep.subr.bf16.mxu0 %v2616
        %3290 = vmatpush1.bf16.msra.mxu0 %v2615
        %3291 = vmatprep.subr.bf16.mxu0 %v2624
        %3292 = vmatpush1.bf16.msra.mxu0 %v2623
        %3293 = vmatprep.subr.bf16.mxu0 %v2632
        %3294 = vmatpush1.bf16.msra.mxu0 %v2631
        %3295 = vmatprep.mubr.bf16.mxu0 %v1478
        %3296 = vmatmul.mubr.bf16.gmra.mrb[0].mxu0 %v1477
        %v3297 = vpop.f32.mrb[0].mxu0
        %v3298 = vadd.f32 0.0, %v3297
        %v3299 = vpop.f32.mrb[0].mxu0
        %v3300 = vadd.f32 0.0, %v3299
        %v3301 = vpop.f32.mrb[0].mxu0
        %v3302 = vpop.f32.mrb[0].mxu0
        %3303 = vdwg.mxu0
        %3304 = vmatprep.subr.bf16.mxu0 %v2640
        %3305 = vmatpush1.bf16.msra.mxu0 %v2639
        %3306 = vmatprep.subr.bf16.mxu0 %v2648
        %3307 = vmatpush1.bf16.msra.mxu0 %v2647
        %3308 = vmatprep.subr.bf16.mxu0 %v2656
        %3309 = vmatpush1.bf16.msra.mxu0 %v2655
        %3310 = vmatprep.subr.bf16.mxu0 %v2664
        %3311 = vmatpush1.bf16.msra.mxu0 %v2663
        %3312 = vmatprep.subr.bf16.mxu0 %v2672
        %3313 = vmatpush1.bf16.msra.mxu0 %v2671
        %3314 = vmatprep.subr.bf16.mxu0 %v2680
        %3315 = vmatpush1.bf16.msra.mxu0 %v2679
        %3316 = vmatprep.subr.bf16.mxu0 %v2688
        %3317 = vmatpush1.bf16.msra.mxu0 %v2687
        %3318 = vmatprep.subr.bf16.mxu0 %v2696
        %3319 = vmatpush1.bf16.msra.mxu0 %v2695
        %3320 = vmatprep.subr.bf16.mxu0 %v2704
        %3321 = vmatpush1.bf16.msra.mxu0 %v2703
        %3322 = vmatprep.subr.bf16.mxu0 %v2712
        %3323 = vmatpush1.bf16.msra.mxu0 %v2711
        %3324 = vmatprep.subr.bf16.mxu0 %v2720
        %3325 = vmatpush1.bf16.msra.mxu0 %v2719
        %3326 = vmatprep.subr.bf16.mxu0 %v2728
        %3327 = vmatpush1.bf16.msra.mxu0 %v2727
        %3328 = vmatprep.subr.bf16.mxu0 %v2736
        %3329 = vmatpush1.bf16.msra.mxu0 %v2735
        %3330 = vmatprep.subr.bf16.mxu0 %v2744
        %3331 = vmatpush1.bf16.msra.mxu0 %v2743
        %3332 = vmatprep.subr.bf16.mxu0 %v2752
        %3333 = vmatpush1.bf16.msra.mxu0 %v2751
        %3334 = vmatprep.subr.bf16.mxu0 %v2760
        %3335 = vmatpush1.bf16.msra.mxu0 %v2759
        %3336 = vmatprep.mubr.bf16.mxu0 %v1480
        %3337 = vmatmul.mubr.bf16.gmra.mrb[0].mxu0 %v1479
        %v3338 = vpop.f32.mrb[0].mxu0
        %v3339 = vadd.f32 %v3298, %v3338
        %v3340 = vpop.f32.mrb[0].mxu0
        %v3341 = vadd.f32 %v3300, %v3340
        %v3342 = vpop.f32.mrb[0].mxu0
        %v3343 = vpop.f32.mrb[0].mxu0
        %3344 = vdwg.mxu0
        %v3345 = vrot.slane %v3093, 4
        %v3346 = vadd.f32 %v3093, %v3345
        %v3347 = vrot.slane %v3346, 2
        %v3348 = vadd.f32 %v3346, %v3347
        %v3349 = vrot.slane %v3348, 1
        %v3350 = vadd.f32 %v3348, %v3349
        %v3351 = vrot.slane %v3095, 4
        %v3352 = vadd.f32 %v3095, %v3351
        %v3353 = vrot.slane %v3352, 2
        %v3354 = vadd.f32 %v3352, %v3353
        %v3355 = vrot.slane %v3354, 1
        %v3356 = vadd.f32 %v3354, %v3355
        %v3357 = vrot.slane %v3175, 4
        %v3358 = vadd.f32 %v3175, %v3357
        %v3359 = vrot.slane %v3358, 2
        %v3360 = vadd.f32 %v3358, %v3359
        %v3361 = vrot.slane %v3360, 1
        %v3362 = vadd.f32 %v3360, %v3361
        %v3363 = vrot.slane %v3177, 4
        %v3364 = vadd.f32 %v3177, %v3363
        %v3365 = vrot.slane %v3364, 2
        %v3366 = vadd.f32 %v3364, %v3365
        %v3367 = vrot.slane %v3366, 1
        %v3368 = vadd.f32 %v3366, %v3367
        %v3369 = vrot.slane %v3257, 4
        %v3370 = vadd.f32 %v3257, %v3369
        %v3371 = vrot.slane %v3370, 2
        %v3372 = vadd.f32 %v3370, %v3371
        %v3373 = vrot.slane %v3372, 1
        %v3374 = vadd.f32 %v3372, %v3373
        %v3375 = vrot.slane %v3259, 4
        %v3376 = vadd.f32 %v3259, %v3375
        %v3377 = vrot.slane %v3376, 2
        %v3378 = vadd.f32 %v3376, %v3377
        %v3379 = vrot.slane %v3378, 1
        %v3380 = vadd.f32 %v3378, %v3379
        %v3381 = vrot.slane %v3339, 4
        %v3382 = vadd.f32 %v3339, %v3381
        %v3383 = vrot.slane %v3382, 2
        %v3384 = vadd.f32 %v3382, %v3383
        %v3385 = vrot.slane %v3384, 1
        %v3386 = vadd.f32 %v3384, %v3385
        %v3387 = vrot.slane %v3341, 4
        %v3388 = vadd.f32 %v3341, %v3387
        %v3389 = vrot.slane %v3388, 2
        %v3390 = vadd.f32 %v3388, %v3389
        %v3391 = vrot.slane %v3390, 1
        %v3392 = vadd.f32 %v3390, %v3391
        %v3393 = vmul.f32 %v3350, %v812
        %v3394 = vmul.f32 %v3356, %v812
        %v3395 = vmul.f32 %v3362, %v812
        %v3396 = vmul.f32 %v3368, %v812
        %v3397 = vmul.f32 %v3374, %v812
        %v3398 = vmul.f32 %v3380, %v812
        %v3399 = vmul.f32 %v3386, %v812
        %v3400 = vmul.f32 %v3392, %v812
        %v3401 = vsub.f32 %v3093, %v3393
        %v3402 = vsub.f32 %v3095, %v3394
        %v3403 = vsub.f32 %v3175, %v3395
        %v3404 = vsub.f32 %v3177, %v3396
        %v3405 = vsub.f32 %v3257, %v3397
        %v3406 = vsub.f32 %v3259, %v3398
        %v3407 = vsub.f32 %v3339, %v3399
        %v3408 = vsub.f32 %v3341, %v3400
        %v3409 = vmul.f32 %v3401, %v3401
        %v3410 = vmul.f32 %v3402, %v3402
        %v3411 = vmul.f32 %v3403, %v3403
        %v3412 = vmul.f32 %v3404, %v3404
        %v3413 = vmul.f32 %v3405, %v3405
        %v3414 = vmul.f32 %v3406, %v3406
        %v3415 = vmul.f32 %v3407, %v3407
        %v3416 = vmul.f32 %v3408, %v3408
        %v3417 = vrot.slane %v3409, 4
        %v3418 = vadd.f32 %v3409, %v3417
        %v3419 = vrot.slane %v3418, 2
        %v3420 = vadd.f32 %v3418, %v3419
        %v3421 = vrot.slane %v3420, 1
        %v3422 = vadd.f32 %v3420, %v3421
        %v3423 = vrot.slane %v3410, 4
        %v3424 = vadd.f32 %v3410, %v3423
        %v3425 = vrot.slane %v3424, 2
        %v3426 = vadd.f32 %v3424, %v3425
        %v3427 = vrot.slane %v3426, 1
        %v3428 = vadd.f32 %v3426, %v3427
        %v3429 = vrot.slane %v3411, 4
        %v3430 = vadd.f32 %v3411, %v3429
        %v3431 = vrot.slane %v3430, 2
        %v3432 = vadd.f32 %v3430, %v3431
        %v3433 = vrot.slane %v3432, 1
        %v3434 = vadd.f32 %v3432, %v3433
        %v3435 = vrot.slane %v3412, 4
        %v3436 = vadd.f32 %v3412, %v3435
        %v3437 = vrot.slane %v3436, 2
        %v3438 = vadd.f32 %v3436, %v3437
        %v3439 = vrot.slane %v3438, 1
        %v3440 = vadd.f32 %v3438, %v3439
        %v3441 = vrot.slane %v3413, 4
        %v3442 = vadd.f32 %v3413, %v3441
        %v3443 = vrot.slane %v3442, 2
        %v3444 = vadd.f32 %v3442, %v3443
        %v3445 = vrot.slane %v3444, 1
        %v3446 = vadd.f32 %v3444, %v3445
        %v3447 = vrot.slane %v3414, 4
        %v3448 = vadd.f32 %v3414, %v3447
        %v3449 = vrot.slane %v3448, 2
        %v3450 = vadd.f32 %v3448, %v3449
        %v3451 = vrot.slane %v3450, 1
        %v3452 = vadd.f32 %v3450, %v3451
        %v3453 = vrot.slane %v3415, 4
        %v3454 = vadd.f32 %v3415, %v3453
        %v3455 = vrot.slane %v3454, 2
        %v3456 = vadd.f32 %v3454, %v3455
        %v3457 = vrot.slane %v3456, 1
        %v3458 = vadd.f32 %v3456, %v3457
        %v3459 = vrot.slane %v3416, 4
        %v3460 = vadd.f32 %v3416, %v3459
        %v3461 = vrot.slane %v3460, 2
        %v3462 = vadd.f32 %v3460, %v3461
        %v3463 = vrot.slane %v3462, 1
        %v3464 = vadd.f32 %v3462, %v3463
        %v3465 = vmul.f32 %v3422, %v812
        %v3466 = vmul.f32 %v3428, %v812
        %v3467 = vmul.f32 %v3434, %v812
        %v3468 = vmul.f32 %v3440, %v812
        %v3469 = vmul.f32 %v3446, %v812
        %v3470 = vmul.f32 %v3452, %v812
        %v3471 = vmul.f32 %v3458, %v812
        %v3472 = vmul.f32 %v3464, %v812
        %v3473 = vadd.f32 %v3465, 1e-05
        %v3474 = vadd.f32 %v3466, 1e-05
        %v3475 = vadd.f32 %v3467, 1e-05
        %v3476 = vadd.f32 %v3468, 1e-05
        %v3477 = vadd.f32 %v3469, 1e-05
        %v3478 = vadd.f32 %v3470, 1e-05
        %v3479 = vadd.f32 %v3471, 1e-05
        %v3480 = vadd.f32 %v3472, 1e-05
        %v3481 = vrsqrt.pop %v3473
        %v3482 = vrsqrt.pop %v3474
        %v3483 = vrsqrt.pop %v3475
        %v3484 = vrsqrt.pop %v3476
        %v3485 = vrsqrt.pop %v3477
        %v3486 = vrsqrt.pop %v3478
        %v3487 = vrsqrt.pop %v3479
        %v3488 = vrsqrt.pop %v3480
        %v3489 = vmul.f32 %v3401, %v3481
        %v3490 = vmul.f32 %v3402, %v3482
        %v3491 = vmul.f32 %v3403, %v3483
        %v3492 = vmul.f32 %v3404, %v3484
        %v3493 = vmul.f32 %v3405, %v3485
        %v3494 = vmul.f32 %v3406, %v3486
        %v3495 = vmul.f32 %v3407, %v3487
        %v3496 = vmul.f32 %v3408, %v3488
        %v3498 = vlaneseq
        %v3499 = vshrl.u32 %v3498, 7
        %v3500 = vsub.s32 0, %v3499
        %v3501 = vrot.slane %v556, %v3500
        %v3502 = vlaneseq
        %v3503 = vshrl.u32 %v3502, 7
        %v3504 = vsub.s32 1, %v3503
        %v3505 = vrot.slane %v556, %v3504
        %v3506 = vlaneseq
        %v3507 = vshrl.u32 %v3506, 7
        %v3508 = vsub.s32 2, %v3507
        %v3509 = vrot.slane %v556, %v3508
        %v3510 = vlaneseq
        %v3511 = vshrl.u32 %v3510, 7
        %v3512 = vsub.s32 3, %v3511
        %v3513 = vrot.slane %v556, %v3512
        %v3514 = vlaneseq
        %v3515 = vshrl.u32 %v3514, 7
        %v3516 = vsub.s32 4, %v3515
        %v3517 = vrot.slane %v556, %v3516
        %v3518 = vlaneseq
        %v3519 = vshrl.u32 %v3518, 7
        %v3520 = vsub.s32 5, %v3519
        %v3521 = vrot.slane %v556, %v3520
        %v3522 = vlaneseq
        %v3523 = vshrl.u32 %v3522, 7
        %v3524 = vsub.s32 6, %v3523
        %v3525 = vrot.slane %v556, %v3524
        %v3526 = vlaneseq
        %v3527 = vshrl.u32 %v3526, 7
        %v3528 = vsub.s32 7, %v3527
        %v3529 = vrot.slane %v556, %v3528
        %v3538 = vmul.f32 %v3489, %v3501
        %v3539 = vmul.f32 %v3490, %v3505
        %v3540 = vmul.f32 %v3491, %v3509
        %v3541 = vmul.f32 %v3492, %v3513
        %v3542 = vmul.f32 %v3493, %v3517
        %v3543 = vmul.f32 %v3494, %v3521
        %v3544 = vmul.f32 %v3495, %v3525
        %v3545 = vmul.f32 %v3496, %v3529
        %v3547 = vlaneseq
        %v3548 = vshrl.u32 %v3547, 7
        %v3549 = vsub.s32 0, %v3548
        %v3550 = vrot.slane %v557, %v3549
        %v3551 = vlaneseq
        %v3552 = vshrl.u32 %v3551, 7
        %v3553 = vsub.s32 1, %v3552
        %v3554 = vrot.slane %v557, %v3553
        %v3555 = vlaneseq
        %v3556 = vshrl.u32 %v3555, 7
        %v3557 = vsub.s32 2, %v3556
        %v3558 = vrot.slane %v557, %v3557
        %v3559 = vlaneseq
        %v3560 = vshrl.u32 %v3559, 7
        %v3561 = vsub.s32 3, %v3560
        %v3562 = vrot.slane %v557, %v3561
        %v3563 = vlaneseq
        %v3564 = vshrl.u32 %v3563, 7
        %v3565 = vsub.s32 4, %v3564
        %v3566 = vrot.slane %v557, %v3565
        %v3567 = vlaneseq
        %v3568 = vshrl.u32 %v3567, 7
        %v3569 = vsub.s32 5, %v3568
        %v3570 = vrot.slane %v557, %v3569
        %v3571 = vlaneseq
        %v3572 = vshrl.u32 %v3571, 7
        %v3573 = vsub.s32 6, %v3572
        %v3574 = vrot.slane %v557, %v3573
        %v3575 = vlaneseq
        %v3576 = vshrl.u32 %v3575, 7
        %v3577 = vsub.s32 7, %v3576
        %v3578 = vrot.slane %v557, %v3577
        %v3587 = vadd.f32 %v3538, %v3550
        %v3588 = vadd.f32 %v3539, %v3554
        %v3589 = vadd.f32 %v3540, %v3558
        %v3590 = vadd.f32 %v3541, %v3562
        %v3591 = vadd.f32 %v3542, %v3566
        %v3592 = vadd.f32 %v3543, %v3570
        %v3593 = vadd.f32 %v3544, %v3574
        %v3594 = vadd.f32 %v3545, %v3578
        %vm3595 = vcmp.gt.f32.partialorder %v3587, 0.0
        %vm3596 = vcmp.gt.f32.partialorder %v3588, 0.0
        %vm3597 = vcmp.gt.f32.partialorder %v3589, 0.0
        %vm3598 = vcmp.gt.f32.partialorder %v3590, 0.0
        %vm3599 = vcmp.gt.f32.partialorder %v3591, 0.0
        %vm3600 = vcmp.gt.f32.partialorder %v3592, 0.0
        %vm3601 = vcmp.gt.f32.partialorder %v3593, 0.0
        %vm3602 = vcmp.gt.f32.partialorder %v3594, 0.0
        %v3603 = vmul.f32 %v3587, 0.2
        %v3604 = vmul.f32 %v3588, 0.2
        %v3605 = vmul.f32 %v3589, 0.2
        %v3606 = vmul.f32 %v3590, 0.2
        %v3607 = vmul.f32 %v3591, 0.2
        %v3608 = vmul.f32 %v3592, 0.2
        %v3609 = vmul.f32 %v3593, 0.2
        %v3610 = vmul.f32 %v3594, 0.2
        %v3611 = vsel %vm3595, %v3587, %v3603
        %v3612 = vsel %vm3596, %v3588, %v3604
        %v3613 = vsel %vm3597, %v3589, %v3605
        %v3614 = vsel %vm3598, %v3590, %v3606
        %v3615 = vsel %vm3599, %v3591, %v3607
        %v3616 = vsel %vm3600, %v3592, %v3608
        %v3617 = vsel %vm3601, %v3593, %v3609
        %v3618 = vsel %vm3602, %v3594, %v3610
        %v3619 = vld [vmem:[%s437] sm:$0xff]
        %v3620 = vld [vmem:[%s437 + $0x8] sm:$0xff]
        %v3621 = vld [vmem:[%s437 + $0x10] sm:$0xff]
        %v3622 = vld [vmem:[%s437 + $0x18] sm:$0xff]
        %v3623 = vld [vmem:[%s437 + $0x20] sm:$0xff]
        %v3624 = vld [vmem:[%s437 + $0x28] sm:$0xff]
        %v3625 = vld [vmem:[%s437 + $0x30] sm:$0xff]
        %v3626 = vld [vmem:[%s437 + $0x38] sm:$0xff]
        %v3627 = vld [vmem:[%s437 + $0x40] sm:$0xff]
        %v3628 = vld [vmem:[%s437 + $0x48] sm:$0xff]
        %v3629 = vld [vmem:[%s437 + $0x50] sm:$0xff]
        %v3630 = vld [vmem:[%s437 + $0x58] sm:$0xff]
        %v3631 = vld [vmem:[%s437 + $0x60] sm:$0xff]
        %v3632 = vld [vmem:[%s437 + $0x68] sm:$0xff]
        %v3633 = vld [vmem:[%s437 + $0x70] sm:$0xff]
        %v3634 = vld [vmem:[%s437 + $0x78] sm:$0xff]
        %v3635 = vld [vmem:[%s437 + $0x80] sm:$0xff]
        %v3636 = vld [vmem:[%s437 + $0x88] sm:$0xff]
        %v3637 = vld [vmem:[%s437 + $0x90] sm:$0xff]
        %v3638 = vld [vmem:[%s437 + $0x98] sm:$0xff]
        %v3639 = vld [vmem:[%s437 + $0xa0] sm:$0xff]
        %v3640 = vld [vmem:[%s437 + $0xa8] sm:$0xff]
        %v3641 = vld [vmem:[%s437 + $0xb0] sm:$0xff]
        %v3642 = vld [vmem:[%s437 + $0xb8] sm:$0xff]
        %v3643 = vld [vmem:[%s437 + $0xc0] sm:$0xff]
        %v3644 = vld [vmem:[%s437 + $0xc8] sm:$0xff]
        %v3645 = vld [vmem:[%s437 + $0xd0] sm:$0xff]
        %v3646 = vld [vmem:[%s437 + $0xd8] sm:$0xff]
        %v3647 = vld [vmem:[%s437 + $0xe0] sm:$0xff]
        %v3648 = vld [vmem:[%s437 + $0xe8] sm:$0xff]
        %v3649 = vld [vmem:[%s437 + $0xf0] sm:$0xff]
        %v3650 = vld [vmem:[%s437 + $0xf8] sm:$0xff]
        %v3651 = vld [vmem:[%s437 + $0x100] sm:$0xff]
        %v3652 = vld [vmem:[%s437 + $0x108] sm:$0xff]
        %v3653 = vld [vmem:[%s437 + $0x110] sm:$0xff]
        %v3654 = vld [vmem:[%s437 + $0x118] sm:$0xff]
        %v3655 = vld [vmem:[%s437 + $0x120] sm:$0xff]
        %v3656 = vld [vmem:[%s437 + $0x128] sm:$0xff]
        %v3657 = vld [vmem:[%s437 + $0x130] sm:$0xff]
        %v3658 = vld [vmem:[%s437 + $0x138] sm:$0xff]
        %v3659 = vld [vmem:[%s437 + $0x140] sm:$0xff]
        %v3660 = vld [vmem:[%s437 + $0x148] sm:$0xff]
        %v3661 = vld [vmem:[%s437 + $0x150] sm:$0xff]
        %v3662 = vld [vmem:[%s437 + $0x158] sm:$0xff]
        %v3663 = vld [vmem:[%s437 + $0x160] sm:$0xff]
        %v3664 = vld [vmem:[%s437 + $0x168] sm:$0xff]
        %v3665 = vld [vmem:[%s437 + $0x170] sm:$0xff]
        %v3666 = vld [vmem:[%s437 + $0x178] sm:$0xff]
        %v3667 = vld [vmem:[%s437 + $0x180] sm:$0xff]
        %v3668 = vld [vmem:[%s437 + $0x188] sm:$0xff]
        %v3669 = vld [vmem:[%s437 + $0x190] sm:$0xff]
        %v3670 = vld [vmem:[%s437 + $0x198] sm:$0xff]
        %v3671 = vld [vmem:[%s437 + $0x1a0] sm:$0xff]
        %v3672 = vld [vmem:[%s437 + $0x1a8] sm:$0xff]
        %v3673 = vld [vmem:[%s437 + $0x1b0] sm:$0xff]
        %v3674 = vld [vmem:[%s437 + $0x1b8] sm:$0xff]
        %v3675 = vld [vmem:[%s437 + $0x1c0] sm:$0xff]
        %v3676 = vld [vmem:[%s437 + $0x1c8] sm:$0xff]
        %v3677 = vld [vmem:[%s437 + $0x1d0] sm:$0xff]
        %v3678 = vld [vmem:[%s437 + $0x1d8] sm:$0xff]
        %v3679 = vld [vmem:[%s437 + $0x1e0] sm:$0xff]
        %v3680 = vld [vmem:[%s437 + $0x1e8] sm:$0xff]
        %v3681 = vld [vmem:[%s437 + $0x1f0] sm:$0xff]
        %v3682 = vld [vmem:[%s437 + $0x1f8] sm:$0xff]
        %v3683 = vld [vmem:[%s437 + $0x200] sm:$0xff]
        %v3684 = vld [vmem:[%s437 + $0x208] sm:$0xff]
        %v3685 = vld [vmem:[%s437 + $0x210] sm:$0xff]
        %v3686 = vld [vmem:[%s437 + $0x218] sm:$0xff]
        %v3687 = vld [vmem:[%s437 + $0x220] sm:$0xff]
        %v3688 = vld [vmem:[%s437 + $0x228] sm:$0xff]
        %v3689 = vld [vmem:[%s437 + $0x230] sm:$0xff]
        %v3690 = vld [vmem:[%s437 + $0x238] sm:$0xff]
        %v3691 = vld [vmem:[%s437 + $0x240] sm:$0xff]
        %v3692 = vld [vmem:[%s437 + $0x248] sm:$0xff]
        %v3693 = vld [vmem:[%s437 + $0x250] sm:$0xff]
        %v3694 = vld [vmem:[%s437 + $0x258] sm:$0xff]
        %v3695 = vld [vmem:[%s437 + $0x260] sm:$0xff]
        %v3696 = vld [vmem:[%s437 + $0x268] sm:$0xff]
        %v3697 = vld [vmem:[%s437 + $0x270] sm:$0xff]
        %v3698 = vld [vmem:[%s437 + $0x278] sm:$0xff]
        %v3699 = vld [vmem:[%s437 + $0x280] sm:$0xff]
        %v3700 = vld [vmem:[%s437 + $0x288] sm:$0xff]
        %v3701 = vld [vmem:[%s437 + $0x290] sm:$0xff]
        %v3702 = vld [vmem:[%s437 + $0x298] sm:$0xff]
        %v3703 = vld [vmem:[%s437 + $0x2a0] sm:$0xff]
        %v3704 = vld [vmem:[%s437 + $0x2a8] sm:$0xff]
        %v3705 = vld [vmem:[%s437 + $0x2b0] sm:$0xff]
        %v3706 = vld [vmem:[%s437 + $0x2b8] sm:$0xff]
        %v3707 = vld [vmem:[%s437 + $0x2c0] sm:$0xff]
        %v3708 = vld [vmem:[%s437 + $0x2c8] sm:$0xff]
        %v3709 = vld [vmem:[%s437 + $0x2d0] sm:$0xff]
        %v3710 = vld [vmem:[%s437 + $0x2d8] sm:$0xff]
        %v3711 = vld [vmem:[%s437 + $0x2e0] sm:$0xff]
        %v3712 = vld [vmem:[%s437 + $0x2e8] sm:$0xff]
        %v3713 = vld [vmem:[%s437 + $0x2f0] sm:$0xff]
        %v3714 = vld [vmem:[%s437 + $0x2f8] sm:$0xff]
        %v3715 = vld [vmem:[%s437 + $0x300] sm:$0xff]
        %v3716 = vld [vmem:[%s437 + $0x308] sm:$0xff]
        %v3717 = vld [vmem:[%s437 + $0x310] sm:$0xff]
        %v3718 = vld [vmem:[%s437 + $0x318] sm:$0xff]
        %v3719 = vld [vmem:[%s437 + $0x320] sm:$0xff]
        %v3720 = vld [vmem:[%s437 + $0x328] sm:$0xff]
        %v3721 = vld [vmem:[%s437 + $0x330] sm:$0xff]
        %v3722 = vld [vmem:[%s437 + $0x338] sm:$0xff]
        %v3723 = vld [vmem:[%s437 + $0x340] sm:$0xff]
        %v3724 = vld [vmem:[%s437 + $0x348] sm:$0xff]
        %v3725 = vld [vmem:[%s437 + $0x350] sm:$0xff]
        %v3726 = vld [vmem:[%s437 + $0x358] sm:$0xff]
        %v3727 = vld [vmem:[%s437 + $0x360] sm:$0xff]
        %v3728 = vld [vmem:[%s437 + $0x368] sm:$0xff]
        %v3729 = vld [vmem:[%s437 + $0x370] sm:$0xff]
        %v3730 = vld [vmem:[%s437 + $0x378] sm:$0xff]
        %v3731 = vld [vmem:[%s437 + $0x380] sm:$0xff]
        %v3732 = vld [vmem:[%s437 + $0x388] sm:$0xff]
        %v3733 = vld [vmem:[%s437 + $0x390] sm:$0xff]
        %v3734 = vld [vmem:[%s437 + $0x398] sm:$0xff]
        %v3735 = vld [vmem:[%s437 + $0x3a0] sm:$0xff]
        %v3736 = vld [vmem:[%s437 + $0x3a8] sm:$0xff]
        %v3737 = vld [vmem:[%s437 + $0x3b0] sm:$0xff]
        %v3738 = vld [vmem:[%s437 + $0x3b8] sm:$0xff]
        %v3739 = vld [vmem:[%s437 + $0x3c0] sm:$0xff]
        %v3740 = vld [vmem:[%s437 + $0x3c8] sm:$0xff]
        %v3741 = vld [vmem:[%s437 + $0x3d0] sm:$0xff]
        %v3742 = vld [vmem:[%s437 + $0x3d8] sm:$0xff]
        %v3743 = vld [vmem:[%s437 + $0x3e0] sm:$0xff]
        %v3744 = vld [vmem:[%s437 + $0x3e8] sm:$0xff]
        %v3745 = vld [vmem:[%s437 + $0x3f0] sm:$0xff]
        %v3746 = vld [vmem:[%s437 + $0x3f8] sm:$0xff]
        %v3747 = vld [vmem:[%s437 + $0x400] sm:$0xff]
        %v3748 = vld [vmem:[%s437 + $0x408] sm:$0xff]
        %v3749 = vld [vmem:[%s437 + $0x410] sm:$0xff]
        %v3750 = vld [vmem:[%s437 + $0x418] sm:$0xff]
        %v3751 = vld [vmem:[%s437 + $0x420] sm:$0xff]
        %v3752 = vld [vmem:[%s437 + $0x428] sm:$0xff]
        %v3753 = vld [vmem:[%s437 + $0x430] sm:$0xff]
        %v3754 = vld [vmem:[%s437 + $0x438] sm:$0xff]
        %v3755 = vld [vmem:[%s437 + $0x440] sm:$0xff]
        %v3756 = vld [vmem:[%s437 + $0x448] sm:$0xff]
        %v3757 = vld [vmem:[%s437 + $0x450] sm:$0xff]
        %v3758 = vld [vmem:[%s437 + $0x458] sm:$0xff]
        %v3759 = vld [vmem:[%s437 + $0x460] sm:$0xff]
        %v3760 = vld [vmem:[%s437 + $0x468] sm:$0xff]
        %v3761 = vld [vmem:[%s437 + $0x470] sm:$0xff]
        %v3762 = vld [vmem:[%s437 + $0x478] sm:$0xff]
        %v3763 = vld [vmem:[%s437 + $0x480] sm:$0xff]
        %v3764 = vld [vmem:[%s437 + $0x488] sm:$0xff]
        %v3765 = vld [vmem:[%s437 + $0x490] sm:$0xff]
        %v3766 = vld [vmem:[%s437 + $0x498] sm:$0xff]
        %v3767 = vld [vmem:[%s437 + $0x4a0] sm:$0xff]
        %v3768 = vld [vmem:[%s437 + $0x4a8] sm:$0xff]
        %v3769 = vld [vmem:[%s437 + $0x4b0] sm:$0xff]
        %v3770 = vld [vmem:[%s437 + $0x4b8] sm:$0xff]
        %v3771 = vld [vmem:[%s437 + $0x4c0] sm:$0xff]
        %v3772 = vld [vmem:[%s437 + $0x4c8] sm:$0xff]
        %v3773 = vld [vmem:[%s437 + $0x4d0] sm:$0xff]
        %v3774 = vld [vmem:[%s437 + $0x4d8] sm:$0xff]
        %v3775 = vld [vmem:[%s437 + $0x4e0] sm:$0xff]
        %v3776 = vld [vmem:[%s437 + $0x4e8] sm:$0xff]
        %v3777 = vld [vmem:[%s437 + $0x4f0] sm:$0xff]
        %v3778 = vld [vmem:[%s437 + $0x4f8] sm:$0xff]
        %v3779 = vld [vmem:[%s437 + $0x500] sm:$0xff]
        %v3780 = vld [vmem:[%s437 + $0x508] sm:$0xff]
        %v3781 = vld [vmem:[%s437 + $0x510] sm:$0xff]
        %v3782 = vld [vmem:[%s437 + $0x518] sm:$0xff]
        %v3783 = vld [vmem:[%s437 + $0x520] sm:$0xff]
        %v3784 = vld [vmem:[%s437 + $0x528] sm:$0xff]
        %v3785 = vld [vmem:[%s437 + $0x530] sm:$0xff]
        %v3786 = vld [vmem:[%s437 + $0x538] sm:$0xff]
        %v3787 = vld [vmem:[%s437 + $0x540] sm:$0xff]
        %v3788 = vld [vmem:[%s437 + $0x548] sm:$0xff]
        %v3789 = vld [vmem:[%s437 + $0x550] sm:$0xff]
        %v3790 = vld [vmem:[%s437 + $0x558] sm:$0xff]
        %v3791 = vld [vmem:[%s437 + $0x560] sm:$0xff]
        %v3792 = vld [vmem:[%s437 + $0x568] sm:$0xff]
        %v3793 = vld [vmem:[%s437 + $0x570] sm:$0xff]
        %v3794 = vld [vmem:[%s437 + $0x578] sm:$0xff]
        %v3795 = vld [vmem:[%s437 + $0x580] sm:$0xff]
        %v3796 = vld [vmem:[%s437 + $0x588] sm:$0xff]
        %v3797 = vld [vmem:[%s437 + $0x590] sm:$0xff]
        %v3798 = vld [vmem:[%s437 + $0x598] sm:$0xff]
        %v3799 = vld [vmem:[%s437 + $0x5a0] sm:$0xff]
        %v3800 = vld [vmem:[%s437 + $0x5a8] sm:$0xff]
        %v3801 = vld [vmem:[%s437 + $0x5b0] sm:$0xff]
        %v3802 = vld [vmem:[%s437 + $0x5b8] sm:$0xff]
        %v3803 = vld [vmem:[%s437 + $0x5c0] sm:$0xff]
        %v3804 = vld [vmem:[%s437 + $0x5c8] sm:$0xff]
        %v3805 = vld [vmem:[%s437 + $0x5d0] sm:$0xff]
        %v3806 = vld [vmem:[%s437 + $0x5d8] sm:$0xff]
        %v3807 = vld [vmem:[%s437 + $0x5e0] sm:$0xff]
        %v3808 = vld [vmem:[%s437 + $0x5e8] sm:$0xff]
        %v3809 = vld [vmem:[%s437 + $0x5f0] sm:$0xff]
        %v3810 = vld [vmem:[%s437 + $0x5f8] sm:$0xff]
        %v3811 = vld [vmem:[%s437 + $0x600] sm:$0xff]
        %v3812 = vld [vmem:[%s437 + $0x608] sm:$0xff]
        %v3813 = vld [vmem:[%s437 + $0x610] sm:$0xff]
        %v3814 = vld [vmem:[%s437 + $0x618] sm:$0xff]
        %v3815 = vld [vmem:[%s437 + $0x620] sm:$0xff]
        %v3816 = vld [vmem:[%s437 + $0x628] sm:$0xff]
        %v3817 = vld [vmem:[%s437 + $0x630] sm:$0xff]
        %v3818 = vld [vmem:[%s437 + $0x638] sm:$0xff]
        %v3819 = vld [vmem:[%s437 + $0x640] sm:$0xff]
        %v3820 = vld [vmem:[%s437 + $0x648] sm:$0xff]
        %v3821 = vld [vmem:[%s437 + $0x650] sm:$0xff]
        %v3822 = vld [vmem:[%s437 + $0x658] sm:$0xff]
        %v3823 = vld [vmem:[%s437 + $0x660] sm:$0xff]
        %v3824 = vld [vmem:[%s437 + $0x668] sm:$0xff]
        %v3825 = vld [vmem:[%s437 + $0x670] sm:$0xff]
        %v3826 = vld [vmem:[%s437 + $0x678] sm:$0xff]
        %v3827 = vld [vmem:[%s437 + $0x680] sm:$0xff]
        %v3828 = vld [vmem:[%s437 + $0x688] sm:$0xff]
        %v3829 = vld [vmem:[%s437 + $0x690] sm:$0xff]
        %v3830 = vld [vmem:[%s437 + $0x698] sm:$0xff]
        %v3831 = vld [vmem:[%s437 + $0x6a0] sm:$0xff]
        %v3832 = vld [vmem:[%s437 + $0x6a8] sm:$0xff]
        %v3833 = vld [vmem:[%s437 + $0x6b0] sm:$0xff]
        %v3834 = vld [vmem:[%s437 + $0x6b8] sm:$0xff]
        %v3835 = vld [vmem:[%s437 + $0x6c0] sm:$0xff]
        %v3836 = vld [vmem:[%s437 + $0x6c8] sm:$0xff]
        %v3837 = vld [vmem:[%s437 + $0x6d0] sm:$0xff]
        %v3838 = vld [vmem:[%s437 + $0x6d8] sm:$0xff]
        %v3839 = vld [vmem:[%s437 + $0x6e0] sm:$0xff]
        %v3840 = vld [vmem:[%s437 + $0x6e8] sm:$0xff]
        %v3841 = vld [vmem:[%s437 + $0x6f0] sm:$0xff]
        %v3842 = vld [vmem:[%s437 + $0x6f8] sm:$0xff]
        %v3843 = vld [vmem:[%s437 + $0x700] sm:$0xff]
        %v3844 = vld [vmem:[%s437 + $0x708] sm:$0xff]
        %v3845 = vld [vmem:[%s437 + $0x710] sm:$0xff]
        %v3846 = vld [vmem:[%s437 + $0x718] sm:$0xff]
        %v3847 = vld [vmem:[%s437 + $0x720] sm:$0xff]
        %v3848 = vld [vmem:[%s437 + $0x728] sm:$0xff]
        %v3849 = vld [vmem:[%s437 + $0x730] sm:$0xff]
        %v3850 = vld [vmem:[%s437 + $0x738] sm:$0xff]
        %v3851 = vld [vmem:[%s437 + $0x740] sm:$0xff]
        %v3852 = vld [vmem:[%s437 + $0x748] sm:$0xff]
        %v3853 = vld [vmem:[%s437 + $0x750] sm:$0xff]
        %v3854 = vld [vmem:[%s437 + $0x758] sm:$0xff]
        %v3855 = vld [vmem:[%s437 + $0x760] sm:$0xff]
        %v3856 = vld [vmem:[%s437 + $0x768] sm:$0xff]
        %v3857 = vld [vmem:[%s437 + $0x770] sm:$0xff]
        %v3858 = vld [vmem:[%s437 + $0x778] sm:$0xff]
        %v3859 = vld [vmem:[%s437 + $0x780] sm:$0xff]
        %v3860 = vld [vmem:[%s437 + $0x788] sm:$0xff]
        %v3861 = vld [vmem:[%s437 + $0x790] sm:$0xff]
        %v3862 = vld [vmem:[%s437 + $0x798] sm:$0xff]
        %v3863 = vld [vmem:[%s437 + $0x7a0] sm:$0xff]
        %v3864 = vld [vmem:[%s437 + $0x7a8] sm:$0xff]
        %v3865 = vld [vmem:[%s437 + $0x7b0] sm:$0xff]
        %v3866 = vld [vmem:[%s437 + $0x7b8] sm:$0xff]
        %v3867 = vld [vmem:[%s437 + $0x7c0] sm:$0xff]
        %v3868 = vld [vmem:[%s437 + $0x7c8] sm:$0xff]
        %v3869 = vld [vmem:[%s437 + $0x7d0] sm:$0xff]
        %v3870 = vld [vmem:[%s437 + $0x7d8] sm:$0xff]
        %v3871 = vld [vmem:[%s437 + $0x7e0] sm:$0xff]
        %v3872 = vld [vmem:[%s437 + $0x7e8] sm:$0xff]
        %v3873 = vld [vmem:[%s437 + $0x7f0] sm:$0xff]
        %v3874 = vld [vmem:[%s437 + $0x7f8] sm:$0xff]
        %v3875 = vunpack.c.l.s8.bf16 %v3619
        %v3876 = vunpack.c.l.s8.bf16 %v3620
        %v3877 = vunpack.c.l.s8.bf16 %v3621
        %v3878 = vunpack.c.l.s8.bf16 %v3622
        %v3879 = vunpack.c.l.s8.bf16 %v3623
        %v3880 = vunpack.c.l.s8.bf16 %v3624
        %v3881 = vunpack.c.l.s8.bf16 %v3625
        %v3882 = vunpack.c.l.s8.bf16 %v3626
        %v3883 = vunpack.c.h.s8.bf16 %v3619
        %v3884 = vunpack.c.h.s8.bf16 %v3620
        %v3885 = vunpack.c.h.s8.bf16 %v3621
        %v3886 = vunpack.c.h.s8.bf16 %v3622
        %v3887 = vunpack.c.h.s8.bf16 %v3623
        %v3888 = vunpack.c.h.s8.bf16 %v3624
        %v3889 = vunpack.c.h.s8.bf16 %v3625
        %v3890 = vunpack.c.h.s8.bf16 %v3626
        %v3891 = vunpack.c.l.s8.bf16 %v3627
        %v3892 = vunpack.c.l.s8.bf16 %v3628
        %v3893 = vunpack.c.l.s8.bf16 %v3629
        %v3894 = vunpack.c.l.s8.bf16 %v3630
        %v3895 = vunpack.c.l.s8.bf16 %v3631
        %v3896 = vunpack.c.l.s8.bf16 %v3632
        %v3897 = vunpack.c.l.s8.bf16 %v3633
        %v3898 = vunpack.c.l.s8.bf16 %v3634
        %v3899 = vunpack.c.h.s8.bf16 %v3627
        %v3900 = vunpack.c.h.s8.bf16 %v3628
        %v3901 = vunpack.c.h.s8.bf16 %v3629
        %v3902 = vunpack.c.h.s8.bf16 %v3630
        %v3903 = vunpack.c.h.s8.bf16 %v3631
        %v3904 = vunpack.c.h.s8.bf16 %v3632
        %v3905 = vunpack.c.h.s8.bf16 %v3633
        %v3906 = vunpack.c.h.s8.bf16 %v3634
        %v3907 = vunpack.c.l.s8.bf16 %v3635
        %v3908 = vunpack.c.l.s8.bf16 %v3636
        %v3909 = vunpack.c.l.s8.bf16 %v3637
        %v3910 = vunpack.c.l.s8.bf16 %v3638
        %v3911 = vunpack.c.l.s8.bf16 %v3639
        %v3912 = vunpack.c.l.s8.bf16 %v3640
        %v3913 = vunpack.c.l.s8.bf16 %v3641
        %v3914 = vunpack.c.l.s8.bf16 %v3642
        %v3915 = vunpack.c.h.s8.bf16 %v3635
        %v3916 = vunpack.c.h.s8.bf16 %v3636
        %v3917 = vunpack.c.h.s8.bf16 %v3637
        %v3918 = vunpack.c.h.s8.bf16 %v3638
        %v3919 = vunpack.c.h.s8.bf16 %v3639
        %v3920 = vunpack.c.h.s8.bf16 %v3640
        %v3921 = vunpack.c.h.s8.bf16 %v3641
        %v3922 = vunpack.c.h.s8.bf16 %v3642
        %v3923 = vunpack.c.l.s8.bf16 %v3643
        %v3924 = vunpack.c.l.s8.bf16 %v3644
        %v3925 = vunpack.c.l.s8.bf16 %v3645
        %v3926 = vunpack.c.l.s8.bf16 %v3646
        %v3927 = vunpack.c.l.s8.bf16 %v3647
        %v3928 = vunpack.c.l.s8.bf16 %v3648
        %v3929 = vunpack.c.l.s8.bf16 %v3649
        %v3930 = vunpack.c.l.s8.bf16 %v3650
        %v3931 = vunpack.c.h.s8.bf16 %v3643
        %v3932 = vunpack.c.h.s8.bf16 %v3644
        %v3933 = vunpack.c.h.s8.bf16 %v3645
        %v3934 = vunpack.c.h.s8.bf16 %v3646
        %v3935 = vunpack.c.h.s8.bf16 %v3647
        %v3936 = vunpack.c.h.s8.bf16 %v3648
        %v3937 = vunpack.c.h.s8.bf16 %v3649
        %v3938 = vunpack.c.h.s8.bf16 %v3650
        %v3939 = vunpack.c.l.s8.bf16 %v3651
        %v3940 = vunpack.c.l.s8.bf16 %v3652
        %v3941 = vunpack.c.l.s8.bf16 %v3653
        %v3942 = vunpack.c.l.s8.bf16 %v3654
        %v3943 = vunpack.c.l.s8.bf16 %v3655
        %v3944 = vunpack.c.l.s8.bf16 %v3656
        %v3945 = vunpack.c.l.s8.bf16 %v3657
        %v3946 = vunpack.c.l.s8.bf16 %v3658
        %v3947 = vunpack.c.h.s8.bf16 %v3651
        %v3948 = vunpack.c.h.s8.bf16 %v3652
        %v3949 = vunpack.c.h.s8.bf16 %v3653
        %v3950 = vunpack.c.h.s8.bf16 %v3654
        %v3951 = vunpack.c.h.s8.bf16 %v3655
        %v3952 = vunpack.c.h.s8.bf16 %v3656
        %v3953 = vunpack.c.h.s8.bf16 %v3657
        %v3954 = vunpack.c.h.s8.bf16 %v3658
        %v3955 = vunpack.c.l.s8.bf16 %v3659
        %v3956 = vunpack.c.l.s8.bf16 %v3660
        %v3957 = vunpack.c.l.s8.bf16 %v3661
        %v3958 = vunpack.c.l.s8.bf16 %v3662
        %v3959 = vunpack.c.l.s8.bf16 %v3663
        %v3960 = vunpack.c.l.s8.bf16 %v3664
        %v3961 = vunpack.c.l.s8.bf16 %v3665
        %v3962 = vunpack.c.l.s8.bf16 %v3666
        %v3963 = vunpack.c.h.s8.bf16 %v3659
        %v3964 = vunpack.c.h.s8.bf16 %v3660
        %v3965 = vunpack.c.h.s8.bf16 %v3661
        %v3966 = vunpack.c.h.s8.bf16 %v3662
        %v3967 = vunpack.c.h.s8.bf16 %v3663
        %v3968 = vunpack.c.h.s8.bf16 %v3664
        %v3969 = vunpack.c.h.s8.bf16 %v3665
        %v3970 = vunpack.c.h.s8.bf16 %v3666
        %v3971 = vunpack.c.l.s8.bf16 %v3667
        %v3972 = vunpack.c.l.s8.bf16 %v3668
        %v3973 = vunpack.c.l.s8.bf16 %v3669
        %v3974 = vunpack.c.l.s8.bf16 %v3670
        %v3975 = vunpack.c.l.s8.bf16 %v3671
        %v3976 = vunpack.c.l.s8.bf16 %v3672
        %v3977 = vunpack.c.l.s8.bf16 %v3673
        %v3978 = vunpack.c.l.s8.bf16 %v3674
        %v3979 = vunpack.c.h.s8.bf16 %v3667
        %v3980 = vunpack.c.h.s8.bf16 %v3668
        %v3981 = vunpack.c.h.s8.bf16 %v3669
        %v3982 = vunpack.c.h.s8.bf16 %v3670
        %v3983 = vunpack.c.h.s8.bf16 %v3671
        %v3984 = vunpack.c.h.s8.bf16 %v3672
        %v3985 = vunpack.c.h.s8.bf16 %v3673
        %v3986 = vunpack.c.h.s8.bf16 %v3674
        %v3987 = vunpack.c.l.s8.bf16 %v3675
        %v3988 = vunpack.c.l.s8.bf16 %v3676
        %v3989 = vunpack.c.l.s8.bf16 %v3677
        %v3990 = vunpack.c.l.s8.bf16 %v3678
        %v3991 = vunpack.c.l.s8.bf16 %v3679
        %v3992 = vunpack.c.l.s8.bf16 %v3680
        %v3993 = vunpack.c.l.s8.bf16 %v3681
        %v3994 = vunpack.c.l.s8.bf16 %v3682
        %v3995 = vunpack.c.h.s8.bf16 %v3675
        %v3996 = vunpack.c.h.s8.bf16 %v3676
        %v3997 = vunpack.c.h.s8.bf16 %v3677
        %v3998 = vunpack.c.h.s8.bf16 %v3678
        %v3999 = vunpack.c.h.s8.bf16 %v3679
        %v4000 = vunpack.c.h.s8.bf16 %v3680
        %v4001 = vunpack.c.h.s8.bf16 %v3681
        %v4002 = vunpack.c.h.s8.bf16 %v3682
        %v4003 = vunpack.c.l.s8.bf16 %v3683
        %v4004 = vunpack.c.l.s8.bf16 %v3684
        %v4005 = vunpack.c.l.s8.bf16 %v3685
        %v4006 = vunpack.c.l.s8.bf16 %v3686
        %v4007 = vunpack.c.l.s8.bf16 %v3687
        %v4008 = vunpack.c.l.s8.bf16 %v3688
        %v4009 = vunpack.c.l.s8.bf16 %v3689
        %v4010 = vunpack.c.l.s8.bf16 %v3690
        %v4011 = vunpack.c.h.s8.bf16 %v3683
        %v4012 = vunpack.c.h.s8.bf16 %v3684
        %v4013 = vunpack.c.h.s8.bf16 %v3685
        %v4014 = vunpack.c.h.s8.bf16 %v3686
        %v4015 = vunpack.c.h.s8.bf16 %v3687
        %v4016 = vunpack.c.h.s8.bf16 %v3688
        %v4017 = vunpack.c.h.s8.bf16 %v3689
        %v4018 = vunpack.c.h.s8.bf16 %v3690
        %v4019 = vunpack.c.l.s8.bf16 %v3691
        %v4020 = vunpack.c.l.s8.bf16 %v3692
        %v4021 = vunpack.c.l.s8.bf16 %v3693
        %v4022 = vunpack.c.l.s8.bf16 %v3694
        %v4023 = vunpack.c.l.s8.bf16 %v3695
        %v4024 = vunpack.c.l.s8.bf16 %v3696
        %v4025 = vunpack.c.l.s8.bf16 %v3697
        %v4026 = vunpack.c.l.s8.bf16 %v3698
        %v4027 = vunpack.c.h.s8.bf16 %v3691
        %v4028 = vunpack.c.h.s8.bf16 %v3692
        %v4029 = vunpack.c.h.s8.bf16 %v3693
        %v4030 = vunpack.c.h.s8.bf16 %v3694
        %v4031 = vunpack.c.h.s8.bf16 %v3695
        %v4032 = vunpack.c.h.s8.bf16 %v3696
        %v4033 = vunpack.c.h.s8.bf16 %v3697
        %v4034 = vunpack.c.h.s8.bf16 %v3698
        %v4035 = vunpack.c.l.s8.bf16 %v3699
        %v4036 = vunpack.c.l.s8.bf16 %v3700
        %v4037 = vunpack.c.l.s8.bf16 %v3701
        %v4038 = vunpack.c.l.s8.bf16 %v3702
        %v4039 = vunpack.c.l.s8.bf16 %v3703
        %v4040 = vunpack.c.l.s8.bf16 %v3704
        %v4041 = vunpack.c.l.s8.bf16 %v3705
        %v4042 = vunpack.c.l.s8.bf16 %v3706
        %v4043 = vunpack.c.h.s8.bf16 %v3699
        %v4044 = vunpack.c.h.s8.bf16 %v3700
        %v4045 = vunpack.c.h.s8.bf16 %v3701
        %v4046 = vunpack.c.h.s8.bf16 %v3702
        %v4047 = vunpack.c.h.s8.bf16 %v3703
        %v4048 = vunpack.c.h.s8.bf16 %v3704
        %v4049 = vunpack.c.h.s8.bf16 %v3705
        %v4050 = vunpack.c.h.s8.bf16 %v3706
        %v4051 = vunpack.c.l.s8.bf16 %v3707
        %v4052 = vunpack.c.l.s8.bf16 %v3708
        %v4053 = vunpack.c.l.s8.bf16 %v3709
        %v4054 = vunpack.c.l.s8.bf16 %v3710
        %v4055 = vunpack.c.l.s8.bf16 %v3711
        %v4056 = vunpack.c.l.s8.bf16 %v3712
        %v4057 = vunpack.c.l.s8.bf16 %v3713
        %v4058 = vunpack.c.l.s8.bf16 %v3714
        %v4059 = vunpack.c.h.s8.bf16 %v3707
        %v4060 = vunpack.c.h.s8.bf16 %v3708
        %v4061 = vunpack.c.h.s8.bf16 %v3709
        %v4062 = vunpack.c.h.s8.bf16 %v3710
        %v4063 = vunpack.c.h.s8.bf16 %v3711
        %v4064 = vunpack.c.h.s8.bf16 %v3712
        %v4065 = vunpack.c.h.s8.bf16 %v3713
        %v4066 = vunpack.c.h.s8.bf16 %v3714
        %v4067 = vunpack.c.l.s8.bf16 %v3715
        %v4068 = vunpack.c.l.s8.bf16 %v3716
        %v4069 = vunpack.c.l.s8.bf16 %v3717
        %v4070 = vunpack.c.l.s8.bf16 %v3718
        %v4071 = vunpack.c.l.s8.bf16 %v3719
        %v4072 = vunpack.c.l.s8.bf16 %v3720
        %v4073 = vunpack.c.l.s8.bf16 %v3721
        %v4074 = vunpack.c.l.s8.bf16 %v3722
        %v4075 = vunpack.c.h.s8.bf16 %v3715
        %v4076 = vunpack.c.h.s8.bf16 %v3716
        %v4077 = vunpack.c.h.s8.bf16 %v3717
        %v4078 = vunpack.c.h.s8.bf16 %v3718
        %v4079 = vunpack.c.h.s8.bf16 %v3719
        %v4080 = vunpack.c.h.s8.bf16 %v3720
        %v4081 = vunpack.c.h.s8.bf16 %v3721
        %v4082 = vunpack.c.h.s8.bf16 %v3722
        %v4083 = vunpack.c.l.s8.bf16 %v3723
        %v4084 = vunpack.c.l.s8.bf16 %v3724
        %v4085 = vunpack.c.l.s8.bf16 %v3725
        %v4086 = vunpack.c.l.s8.bf16 %v3726
        %v4087 = vunpack.c.l.s8.bf16 %v3727
        %v4088 = vunpack.c.l.s8.bf16 %v3728
        %v4089 = vunpack.c.l.s8.bf16 %v3729
        %v4090 = vunpack.c.l.s8.bf16 %v3730
        %v4091 = vunpack.c.h.s8.bf16 %v3723
        %v4092 = vunpack.c.h.s8.bf16 %v3724
        %v4093 = vunpack.c.h.s8.bf16 %v3725
        %v4094 = vunpack.c.h.s8.bf16 %v3726
        %v4095 = vunpack.c.h.s8.bf16 %v3727
        %v4096 = vunpack.c.h.s8.bf16 %v3728
        %v4097 = vunpack.c.h.s8.bf16 %v3729
        %v4098 = vunpack.c.h.s8.bf16 %v3730
        %v4099 = vunpack.c.l.s8.bf16 %v3731
        %v4100 = vunpack.c.l.s8.bf16 %v3732
        %v4101 = vunpack.c.l.s8.bf16 %v3733
        %v4102 = vunpack.c.l.s8.bf16 %v3734
        %v4103 = vunpack.c.l.s8.bf16 %v3735
        %v4104 = vunpack.c.l.s8.bf16 %v3736
        %v4105 = vunpack.c.l.s8.bf16 %v3737
        %v4106 = vunpack.c.l.s8.bf16 %v3738
        %v4107 = vunpack.c.h.s8.bf16 %v3731
        %v4108 = vunpack.c.h.s8.bf16 %v3732
        %v4109 = vunpack.c.h.s8.bf16 %v3733
        %v4110 = vunpack.c.h.s8.bf16 %v3734
        %v4111 = vunpack.c.h.s8.bf16 %v3735
        %v4112 = vunpack.c.h.s8.bf16 %v3736
        %v4113 = vunpack.c.h.s8.bf16 %v3737
        %v4114 = vunpack.c.h.s8.bf16 %v3738
        %v4115 = vunpack.c.l.s8.bf16 %v3739
        %v4116 = vunpack.c.l.s8.bf16 %v3740
        %v4117 = vunpack.c.l.s8.bf16 %v3741
        %v4118 = vunpack.c.l.s8.bf16 %v3742
        %v4119 = vunpack.c.l.s8.bf16 %v3743
        %v4120 = vunpack.c.l.s8.bf16 %v3744
        %v4121 = vunpack.c.l.s8.bf16 %v3745
        %v4122 = vunpack.c.l.s8.bf16 %v3746
        %v4123 = vunpack.c.h.s8.bf16 %v3739
        %v4124 = vunpack.c.h.s8.bf16 %v3740
        %v4125 = vunpack.c.h.s8.bf16 %v3741
        %v4126 = vunpack.c.h.s8.bf16 %v3742
        %v4127 = vunpack.c.h.s8.bf16 %v3743
        %v4128 = vunpack.c.h.s8.bf16 %v3744
        %v4129 = vunpack.c.h.s8.bf16 %v3745
        %v4130 = vunpack.c.h.s8.bf16 %v3746
        %v4131 = vunpack.c.l.s8.bf16 %v3747
        %v4132 = vunpack.c.l.s8.bf16 %v3748
        %v4133 = vunpack.c.l.s8.bf16 %v3749
        %v4134 = vunpack.c.l.s8.bf16 %v3750
        %v4135 = vunpack.c.l.s8.bf16 %v3751
        %v4136 = vunpack.c.l.s8.bf16 %v3752
        %v4137 = vunpack.c.l.s8.bf16 %v3753
        %v4138 = vunpack.c.l.s8.bf16 %v3754
        %v4139 = vunpack.c.h.s8.bf16 %v3747
        %v4140 = vunpack.c.h.s8.bf16 %v3748
        %v4141 = vunpack.c.h.s8.bf16 %v3749
        %v4142 = vunpack.c.h.s8.bf16 %v3750
        %v4143 = vunpack.c.h.s8.bf16 %v3751
        %v4144 = vunpack.c.h.s8.bf16 %v3752
        %v4145 = vunpack.c.h.s8.bf16 %v3753
        %v4146 = vunpack.c.h.s8.bf16 %v3754
        %v4147 = vunpack.c.l.s8.bf16 %v3755
        %v4148 = vunpack.c.l.s8.bf16 %v3756
        %v4149 = vunpack.c.l.s8.bf16 %v3757
        %v4150 = vunpack.c.l.s8.bf16 %v3758
        %v4151 = vunpack.c.l.s8.bf16 %v3759
        %v4152 = vunpack.c.l.s8.bf16 %v3760
        %v4153 = vunpack.c.l.s8.bf16 %v3761
        %v4154 = vunpack.c.l.s8.bf16 %v3762
        %v4155 = vunpack.c.h.s8.bf16 %v3755
        %v4156 = vunpack.c.h.s8.bf16 %v3756
        %v4157 = vunpack.c.h.s8.bf16 %v3757
        %v4158 = vunpack.c.h.s8.bf16 %v3758
        %v4159 = vunpack.c.h.s8.bf16 %v3759
        %v4160 = vunpack.c.h.s8.bf16 %v3760
        %v4161 = vunpack.c.h.s8.bf16 %v3761
        %v4162 = vunpack.c.h.s8.bf16 %v3762
        %v4163 = vunpack.c.l.s8.bf16 %v3763
        %v4164 = vunpack.c.l.s8.bf16 %v3764
        %v4165 = vunpack.c.l.s8.bf16 %v3765
        %v4166 = vunpack.c.l.s8.bf16 %v3766
        %v4167 = vunpack.c.l.s8.bf16 %v3767
        %v4168 = vunpack.c.l.s8.bf16 %v3768
        %v4169 = vunpack.c.l.s8.bf16 %v3769
        %v4170 = vunpack.c.l.s8.bf16 %v3770
        %v4171 = vunpack.c.h.s8.bf16 %v3763
        %v4172 = vunpack.c.h.s8.bf16 %v3764
        %v4173 = vunpack.c.h.s8.bf16 %v3765
        %v4174 = vunpack.c.h.s8.bf16 %v3766
        %v4175 = vunpack.c.h.s8.bf16 %v3767
        %v4176 = vunpack.c.h.s8.bf16 %v3768
        %v4177 = vunpack.c.h.s8.bf16 %v3769
        %v4178 = vunpack.c.h.s8.bf16 %v3770
        %v4179 = vunpack.c.l.s8.bf16 %v3771
        %v4180 = vunpack.c.l.s8.bf16 %v3772
        %v4181 = vunpack.c.l.s8.bf16 %v3773
        %v4182 = vunpack.c.l.s8.bf16 %v3774
        %v4183 = vunpack.c.l.s8.bf16 %v3775
        %v4184 = vunpack.c.l.s8.bf16 %v3776
        %v4185 = vunpack.c.l.s8.bf16 %v3777
        %v4186 = vunpack.c.l.s8.bf16 %v3778
        %v4187 = vunpack.c.h.s8.bf16 %v3771
        %v4188 = vunpack.c.h.s8.bf16 %v3772
        %v4189 = vunpack.c.h.s8.bf16 %v3773
        %v4190 = vunpack.c.h.s8.bf16 %v3774
        %v4191 = vunpack.c.h.s8.bf16 %v3775
        %v4192 = vunpack.c.h.s8.bf16 %v3776
        %v4193 = vunpack.c.h.s8.bf16 %v3777
        %v4194 = vunpack.c.h.s8.bf16 %v3778
        %v4195 = vunpack.c.l.s8.bf16 %v3779
        %v4196 = vunpack.c.l.s8.bf16 %v3780
        %v4197 = vunpack.c.l.s8.bf16 %v3781
        %v4198 = vunpack.c.l.s8.bf16 %v3782
        %v4199 = vunpack.c.l.s8.bf16 %v3783
        %v4200 = vunpack.c.l.s8.bf16 %v3784
        %v4201 = vunpack.c.l.s8.bf16 %v3785
        %v4202 = vunpack.c.l.s8.bf16 %v3786
        %v4203 = vunpack.c.h.s8.bf16 %v3779
        %v4204 = vunpack.c.h.s8.bf16 %v3780
        %v4205 = vunpack.c.h.s8.bf16 %v3781
        %v4206 = vunpack.c.h.s8.bf16 %v3782
        %v4207 = vunpack.c.h.s8.bf16 %v3783
        %v4208 = vunpack.c.h.s8.bf16 %v3784
        %v4209 = vunpack.c.h.s8.bf16 %v3785
        %v4210 = vunpack.c.h.s8.bf16 %v3786
        %v4211 = vunpack.c.l.s8.bf16 %v3787
        %v4212 = vunpack.c.l.s8.bf16 %v3788
        %v4213 = vunpack.c.l.s8.bf16 %v3789
        %v4214 = vunpack.c.l.s8.bf16 %v3790
        %v4215 = vunpack.c.l.s8.bf16 %v3791
        %v4216 = vunpack.c.l.s8.bf16 %v3792
        %v4217 = vunpack.c.l.s8.bf16 %v3793
        %v4218 = vunpack.c.l.s8.bf16 %v3794
        %v4219 = vunpack.c.h.s8.bf16 %v3787
        %v4220 = vunpack.c.h.s8.bf16 %v3788
        %v4221 = vunpack.c.h.s8.bf16 %v3789
        %v4222 = vunpack.c.h.s8.bf16 %v3790
        %v4223 = vunpack.c.h.s8.bf16 %v3791
        %v4224 = vunpack.c.h.s8.bf16 %v3792
        %v4225 = vunpack.c.h.s8.bf16 %v3793
        %v4226 = vunpack.c.h.s8.bf16 %v3794
        %v4227 = vunpack.c.l.s8.bf16 %v3795
        %v4228 = vunpack.c.l.s8.bf16 %v3796
        %v4229 = vunpack.c.l.s8.bf16 %v3797
        %v4230 = vunpack.c.l.s8.bf16 %v3798
        %v4231 = vunpack.c.l.s8.bf16 %v3799
        %v4232 = vunpack.c.l.s8.bf16 %v3800
        %v4233 = vunpack.c.l.s8.bf16 %v3801
        %v4234 = vunpack.c.l.s8.bf16 %v3802
        %v4235 = vunpack.c.h.s8.bf16 %v3795
        %v4236 = vunpack.c.h.s8.bf16 %v3796
        %v4237 = vunpack.c.h.s8.bf16 %v3797
        %v4238 = vunpack.c.h.s8.bf16 %v3798
        %v4239 = vunpack.c.h.s8.bf16 %v3799
        %v4240 = vunpack.c.h.s8.bf16 %v3800
        %v4241 = vunpack.c.h.s8.bf16 %v3801
        %v4242 = vunpack.c.h.s8.bf16 %v3802
        %v4243 = vunpack.c.l.s8.bf16 %v3803
        %v4244 = vunpack.c.l.s8.bf16 %v3804
        %v4245 = vunpack.c.l.s8.bf16 %v3805
        %v4246 = vunpack.c.l.s8.bf16 %v3806
        %v4247 = vunpack.c.l.s8.bf16 %v3807
        %v4248 = vunpack.c.l.s8.bf16 %v3808
        %v4249 = vunpack.c.l.s8.bf16 %v3809
        %v4250 = vunpack.c.l.s8.bf16 %v3810
        %v4251 = vunpack.c.h.s8.bf16 %v3803
        %v4252 = vunpack.c.h.s8.bf16 %v3804
        %v4253 = vunpack.c.h.s8.bf16 %v3805
        %v4254 = vunpack.c.h.s8.bf16 %v3806
        %v4255 = vunpack.c.h.s8.bf16 %v3807
        %v4256 = vunpack.c.h.s8.bf16 %v3808
        %v4257 = vunpack.c.h.s8.bf16 %v3809
        %v4258 = vunpack.c.h.s8.bf16 %v3810
        %v4259 = vunpack.c.l.s8.bf16 %v3811
        %v4260 = vunpack.c.l.s8.bf16 %v3812
        %v4261 = vunpack.c.l.s8.bf16 %v3813
        %v4262 = vunpack.c.l.s8.bf16 %v3814
        %v4263 = vunpack.c.l.s8.bf16 %v3815
        %v4264 = vunpack.c.l.s8.bf16 %v3816
        %v4265 = vunpack.c.l.s8.bf16 %v3817
        %v4266 = vunpack.c.l.s8.bf16 %v3818
        %v4267 = vunpack.c.h.s8.bf16 %v3811
        %v4268 = vunpack.c.h.s8.bf16 %v3812
        %v4269 = vunpack.c.h.s8.bf16 %v3813
        %v4270 = vunpack.c.h.s8.bf16 %v3814
        %v4271 = vunpack.c.h.s8.bf16 %v3815
        %v4272 = vunpack.c.h.s8.bf16 %v3816
        %v4273 = vunpack.c.h.s8.bf16 %v3817
        %v4274 = vunpack.c.h.s8.bf16 %v3818
        %v4275 = vunpack.c.l.s8.bf16 %v3819
        %v4276 = vunpack.c.l.s8.bf16 %v3820
        %v4277 = vunpack.c.l.s8.bf16 %v3821
        %v4278 = vunpack.c.l.s8.bf16 %v3822
        %v4279 = vunpack.c.l.s8.bf16 %v3823
        %v4280 = vunpack.c.l.s8.bf16 %v3824
        %v4281 = vunpack.c.l.s8.bf16 %v3825
        %v4282 = vunpack.c.l.s8.bf16 %v3826
        %v4283 = vunpack.c.h.s8.bf16 %v3819
        %v4284 = vunpack.c.h.s8.bf16 %v3820
        %v4285 = vunpack.c.h.s8.bf16 %v3821
        %v4286 = vunpack.c.h.s8.bf16 %v3822
        %v4287 = vunpack.c.h.s8.bf16 %v3823
        %v4288 = vunpack.c.h.s8.bf16 %v3824
        %v4289 = vunpack.c.h.s8.bf16 %v3825
        %v4290 = vunpack.c.h.s8.bf16 %v3826
        %v4291 = vunpack.c.l.s8.bf16 %v3827
        %v4292 = vunpack.c.l.s8.bf16 %v3828
        %v4293 = vunpack.c.l.s8.bf16 %v3829
        %v4294 = vunpack.c.l.s8.bf16 %v3830
        %v4295 = vunpack.c.l.s8.bf16 %v3831
        %v4296 = vunpack.c.l.s8.bf16 %v3832
        %v4297 = vunpack.c.l.s8.bf16 %v3833
        %v4298 = vunpack.c.l.s8.bf16 %v3834
        %v4299 = vunpack.c.h.s8.bf16 %v3827
        %v4300 = vunpack.c.h.s8.bf16 %v3828
        %v4301 = vunpack.c.h.s8.bf16 %v3829
        %v4302 = vunpack.c.h.s8.bf16 %v3830
        %v4303 = vunpack.c.h.s8.bf16 %v3831
        %v4304 = vunpack.c.h.s8.bf16 %v3832
        %v4305 = vunpack.c.h.s8.bf16 %v3833
        %v4306 = vunpack.c.h.s8.bf16 %v3834
        %v4307 = vunpack.c.l.s8.bf16 %v3835
        %v4308 = vunpack.c.l.s8.bf16 %v3836
        %v4309 = vunpack.c.l.s8.bf16 %v3837
        %v4310 = vunpack.c.l.s8.bf16 %v3838
        %v4311 = vunpack.c.l.s8.bf16 %v3839
        %v4312 = vunpack.c.l.s8.bf16 %v3840
        %v4313 = vunpack.c.l.s8.bf16 %v3841
        %v4314 = vunpack.c.l.s8.bf16 %v3842
        %v4315 = vunpack.c.h.s8.bf16 %v3835
        %v4316 = vunpack.c.h.s8.bf16 %v3836
        %v4317 = vunpack.c.h.s8.bf16 %v3837
        %v4318 = vunpack.c.h.s8.bf16 %v3838
        %v4319 = vunpack.c.h.s8.bf16 %v3839
        %v4320 = vunpack.c.h.s8.bf16 %v3840
        %v4321 = vunpack.c.h.s8.bf16 %v3841
        %v4322 = vunpack.c.h.s8.bf16 %v3842
        %v4323 = vunpack.c.l.s8.bf16 %v3843
        %v4324 = vunpack.c.l.s8.bf16 %v3844
        %v4325 = vunpack.c.l.s8.bf16 %v3845
        %v4326 = vunpack.c.l.s8.bf16 %v3846
        %v4327 = vunpack.c.l.s8.bf16 %v3847
        %v4328 = vunpack.c.l.s8.bf16 %v3848
        %v4329 = vunpack.c.l.s8.bf16 %v3849
        %v4330 = vunpack.c.l.s8.bf16 %v3850
        %v4331 = vunpack.c.h.s8.bf16 %v3843
        %v4332 = vunpack.c.h.s8.bf16 %v3844
        %v4333 = vunpack.c.h.s8.bf16 %v3845
        %v4334 = vunpack.c.h.s8.bf16 %v3846
        %v4335 = vunpack.c.h.s8.bf16 %v3847
        %v4336 = vunpack.c.h.s8.bf16 %v3848
        %v4337 = vunpack.c.h.s8.bf16 %v3849
        %v4338 = vunpack.c.h.s8.bf16 %v3850
        %v4339 = vunpack.c.l.s8.bf16 %v3851
        %v4340 = vunpack.c.l.s8.bf16 %v3852
        %v4341 = vunpack.c.l.s8.bf16 %v3853
        %v4342 = vunpack.c.l.s8.bf16 %v3854
        %v4343 = vunpack.c.l.s8.bf16 %v3855
        %v4344 = vunpack.c.l.s8.bf16 %v3856
        %v4345 = vunpack.c.l.s8.bf16 %v3857
        %v4346 = vunpack.c.l.s8.bf16 %v3858
        %v4347 = vunpack.c.h.s8.bf16 %v3851
        %v4348 = vunpack.c.h.s8.bf16 %v3852
        %v4349 = vunpack.c.h.s8.bf16 %v3853
        %v4350 = vunpack.c.h.s8.bf16 %v3854
        %v4351 = vunpack.c.h.s8.bf16 %v3855
        %v4352 = vunpack.c.h.s8.bf16 %v3856
        %v4353 = vunpack.c.h.s8.bf16 %v3857
        %v4354 = vunpack.c.h.s8.bf16 %v3858
        %v4355 = vunpack.c.l.s8.bf16 %v3859
        %v4356 = vunpack.c.l.s8.bf16 %v3860
        %v4357 = vunpack.c.l.s8.bf16 %v3861
        %v4358 = vunpack.c.l.s8.bf16 %v3862
        %v4359 = vunpack.c.l.s8.bf16 %v3863
        %v4360 = vunpack.c.l.s8.bf16 %v3864
        %v4361 = vunpack.c.l.s8.bf16 %v3865
        %v4362 = vunpack.c.l.s8.bf16 %v3866
        %v4363 = vunpack.c.h.s8.bf16 %v3859
        %v4364 = vunpack.c.h.s8.bf16 %v3860
        %v4365 = vunpack.c.h.s8.bf16 %v3861
        %v4366 = vunpack.c.h.s8.bf16 %v3862
        %v4367 = vunpack.c.h.s8.bf16 %v3863
        %v4368 = vunpack.c.h.s8.bf16 %v3864
        %v4369 = vunpack.c.h.s8.bf16 %v3865
        %v4370 = vunpack.c.h.s8.bf16 %v3866
        %v4371 = vunpack.c.l.s8.bf16 %v3867
        %v4372 = vunpack.c.l.s8.bf16 %v3868
        %v4373 = vunpack.c.l.s8.bf16 %v3869
        %v4374 = vunpack.c.l.s8.bf16 %v3870
        %v4375 = vunpack.c.l.s8.bf16 %v3871
        %v4376 = vunpack.c.l.s8.bf16 %v3872
        %v4377 = vunpack.c.l.s8.bf16 %v3873
        %v4378 = vunpack.c.l.s8.bf16 %v3874
        %v4379 = vunpack.c.h.s8.bf16 %v3867
        %v4380 = vunpack.c.h.s8.bf16 %v3868
        %v4381 = vunpack.c.h.s8.bf16 %v3869
        %v4382 = vunpack.c.h.s8.bf16 %v3870
        %v4383 = vunpack.c.h.s8.bf16 %v3871
        %v4384 = vunpack.c.h.s8.bf16 %v3872
        %v4385 = vunpack.c.h.s8.bf16 %v3873
        %v4386 = vunpack.c.h.s8.bf16 %v3874
        %v4387 = vpack.c.bf16 %v3611, %v3611
        %v4388 = vpack.c.bf16 %v3612, %v3612
        %v4389 = vpack.c.bf16 %v3613, %v3613
        %v4390 = vpack.c.bf16 %v3614, %v3614
        %v4391 = vpack.c.bf16 %v3615, %v3615
        %v4392 = vpack.c.bf16 %v3616, %v3616
        %v4393 = vpack.c.bf16 %v3617, %v3617
        %v4394 = vpack.c.bf16 %v3618, %v3618
        %4395 = vmatprep.subr.bf16.mxu0 %v3876
        %4396 = vmatpush1.bf16.msra.mxu0 %v3875
        %4397 = vmatprep.subr.bf16.mxu0 %v3884
        %4398 = vmatpush1.bf16.msra.mxu0 %v3883
        %4399 = vmatprep.subr.bf16.mxu0 %v3892
        %4400 = vmatpush1.bf16.msra.mxu0 %v3891
        %4401 = vmatprep.subr.bf16.mxu0 %v3900
        %4402 = vmatpush1.bf16.msra.mxu0 %v3899
        %4403 = vmatprep.subr.bf16.mxu0 %v3908
        %4404 = vmatpush1.bf16.msra.mxu0 %v3907
        %4405 = vmatprep.subr.bf16.mxu0 %v3916
        %4406 = vmatpush1.bf16.msra.mxu0 %v3915
        %4407 = vmatprep.subr.bf16.mxu0 %v3924
        %4408 = vmatpush1.bf16.msra.mxu0 %v3923
        %4409 = vmatprep.subr.bf16.mxu0 %v3932
        %4410 = vmatpush1.bf16.msra.mxu0 %v3931
        %4411 = vmatprep.subr.bf16.mxu0 %v3940
        %4412 = vmatpush1.bf16.msra.mxu0 %v3939
        %4413 = vmatprep.subr.bf16.mxu0 %v3948
        %4414 = vmatpush1.bf16.msra.mxu0 %v3947
        %4415 = vmatprep.subr.bf16.mxu0 %v3956
        %4416 = vmatpush1.bf16.msra.mxu0 %v3955
        %4417 = vmatprep.subr.bf16.mxu0 %v3964
        %4418 = vmatpush1.bf16.msra.mxu0 %v3963
        %4419 = vmatprep.subr.bf16.mxu0 %v3972
        %4420 = vmatpush1.bf16.msra.mxu0 %v3971
        %4421 = vmatprep.subr.bf16.mxu0 %v3980
        %4422 = vmatpush1.bf16.msra.mxu0 %v3979
        %4423 = vmatprep.subr.bf16.mxu0 %v3988
        %4424 = vmatpush1.bf16.msra.mxu0 %v3987
        %4425 = vmatprep.subr.bf16.mxu0 %v3996
        %4426 = vmatpush1.bf16.msra.mxu0 %v3995
        %4427 = vmatprep.mubr.bf16.mxu0 %v4388
        %4428 = vmatmul.mubr.bf16.gmra.mrb[0].mxu0 %v4387
        %v4429 = vpop.f32.mrb[0].mxu0
        %v4430 = vadd.f32 0.0, %v4429
        %v4431 = vpop.f32.mrb[0].mxu0
        %v4432 = vadd.f32 0.0, %v4431
        %v4433 = vpop.f32.mrb[0].mxu0
        %v4434 = vpop.f32.mrb[0].mxu0
        %4435 = vdwg.mxu0
        %4436 = vmatprep.subr.bf16.mxu0 %v4004
        %4437 = vmatpush1.bf16.msra.mxu0 %v4003
        %4438 = vmatprep.subr.bf16.mxu0 %v4012
        %4439 = vmatpush1.bf16.msra.mxu0 %v4011
        %4440 = vmatprep.subr.bf16.mxu0 %v4020
        %4441 = vmatpush1.bf16.msra.mxu0 %v4019
        %4442 = vmatprep.subr.bf16.mxu0 %v4028
        %4443 = vmatpush1.bf16.msra.mxu0 %v4027
        %4444 = vmatprep.subr.bf16.mxu0 %v4036
        %4445 = vmatpush1.bf16.msra.mxu0 %v4035
        %4446 = vmatprep.subr.bf16.mxu0 %v4044
        %4447 = vmatpush1.bf16.msra.mxu0 %v4043
        %4448 = vmatprep.subr.bf16.mxu0 %v4052
        %4449 = vmatpush1.bf16.msra.mxu0 %v4051
        %4450 = vmatprep.subr.bf16.mxu0 %v4060
        %4451 = vmatpush1.bf16.msra.mxu0 %v4059
        %4452 = vmatprep.subr.bf16.mxu0 %v4068
        %4453 = vmatpush1.bf16.msra.mxu0 %v4067
        %4454 = vmatprep.subr.bf16.mxu0 %v4076
        %4455 = vmatpush1.bf16.msra.mxu0 %v4075
        %4456 = vmatprep.subr.bf16.mxu0 %v4084
        %4457 = vmatpush1.bf16.msra.mxu0 %v4083
        %4458 = vmatprep.subr.bf16.mxu0 %v4092
        %4459 = vmatpush1.bf16.msra.mxu0 %v4091
        %4460 = vmatprep.subr.bf16.mxu0 %v4100
        %4461 = vmatpush1.bf16.msra.mxu0 %v4099
        %4462 = vmatprep.subr.bf16.mxu0 %v4108
        %4463 = vmatpush1.bf16.msra.mxu0 %v4107
        %4464 = vmatprep.subr.bf16.mxu0 %v4116
        %4465 = vmatpush1.bf16.msra.mxu0 %v4115
        %4466 = vmatprep.subr.bf16.mxu0 %v4124
        %4467 = vmatpush1.bf16.msra.mxu0 %v4123
        %4468 = vmatprep.mubr.bf16.mxu0 %v4390
        %4469 = vmatmul.mubr.bf16.gmra.mrb[0].mxu0 %v4389
        %v4470 = vpop.f32.mrb[0].mxu0
        %v4471 = vadd.f32 %v4430, %v4470
        %v4472 = vpop.f32.mrb[0].mxu0
        %v4473 = vadd.f32 %v4432, %v4472
        %v4474 = vpop.f32.mrb[0].mxu0
        %v4475 = vpop.f32.mrb[0].mxu0
        %4476 = vdwg.mxu0
        %4477 = vmatprep.subr.bf16.mxu0 %v4132
        %4478 = vmatpush1.bf16.msra.mxu0 %v4131
        %4479 = vmatprep.subr.bf16.mxu0 %v4140
        %4480 = vmatpush1.bf16.msra.mxu0 %v4139
        %4481 = vmatprep.subr.bf16.mxu0 %v4148
        %4482 = vmatpush1.bf16.msra.mxu0 %v4147
        %4483 = vmatprep.subr.bf16.mxu0 %v4156
        %4484 = vmatpush1.bf16.msra.mxu0 %v4155
        %4485 = vmatprep.subr.bf16.mxu0 %v4164
        %4486 = vmatpush1.bf16.msra.mxu0 %v4163
        %4487 = vmatprep.subr.bf16.mxu0 %v4172
        %4488 = vmatpush1.bf16.msra.mxu0 %v4171
        %4489 = vmatprep.subr.bf16.mxu0 %v4180
        %4490 = vmatpush1.bf16.msra.mxu0 %v4179
        %4491 = vmatprep.subr.bf16.mxu0 %v4188
        %4492 = vmatpush1.bf16.msra.mxu0 %v4187
        %4493 = vmatprep.subr.bf16.mxu0 %v4196
        %4494 = vmatpush1.bf16.msra.mxu0 %v4195
        %4495 = vmatprep.subr.bf16.mxu0 %v4204
        %4496 = vmatpush1.bf16.msra.mxu0 %v4203
        %4497 = vmatprep.subr.bf16.mxu0 %v4212
        %4498 = vmatpush1.bf16.msra.mxu0 %v4211
        %4499 = vmatprep.subr.bf16.mxu0 %v4220
        %4500 = vmatpush1.bf16.msra.mxu0 %v4219
        %4501 = vmatprep.subr.bf16.mxu0 %v4228
        %4502 = vmatpush1.bf16.msra.mxu0 %v4227
        %4503 = vmatprep.subr.bf16.mxu0 %v4236
        %4504 = vmatpush1.bf16.msra.mxu0 %v4235
        %4505 = vmatprep.subr.bf16.mxu0 %v4244
        %4506 = vmatpush1.bf16.msra.mxu0 %v4243
        %4507 = vmatprep.subr.bf16.mxu0 %v4252
        %4508 = vmatpush1.bf16.msra.mxu0 %v4251
        %4509 = vmatprep.mubr.bf16.mxu0 %v4392
        %4510 = vmatmul.mubr.bf16.gmra.mrb[0].mxu0 %v4391
        %v4511 = vpop.f32.mrb[0].mxu0
        %v4512 = vadd.f32 %v4471, %v4511
        %v4513 = vpop.f32.mrb[0].mxu0
        %v4514 = vadd.f32 %v4473, %v4513
        %v4515 = vpop.f32.mrb[0].mxu0
        %v4516 = vpop.f32.mrb[0].mxu0
        %4517 = vdwg.mxu0
        %4518 = vmatprep.subr.bf16.mxu0 %v4260
        %4519 = vmatpush1.bf16.msra.mxu0 %v4259
        %4520 = vmatprep.subr.bf16.mxu0 %v4268
        %4521 = vmatpush1.bf16.msra.mxu0 %v4267
        %4522 = vmatprep.subr.bf16.mxu0 %v4276
        %4523 = vmatpush1.bf16.msra.mxu0 %v4275
        %4524 = vmatprep.subr.bf16.mxu0 %v4284
        %4525 = vmatpush1.bf16.msra.mxu0 %v4283
        %4526 = vmatprep.subr.bf16.mxu0 %v4292
        %4527 = vmatpush1.bf16.msra.mxu0 %v4291
        %4528 = vmatprep.subr.bf16.mxu0 %v4300
        %4529 = vmatpush1.bf16.msra.mxu0 %v4299
        %4530 = vmatprep.subr.bf16.mxu0 %v4308
        %4531 = vmatpush1.bf16.msra.mxu0 %v4307
        %4532 = vmatprep.subr.bf16.mxu0 %v4316
        %4533 = vmatpush1.bf16.msra.mxu0 %v4315
        %4534 = vmatprep.subr.bf16.mxu0 %v4324
        %4535 = vmatpush1.bf16.msra.mxu0 %v4323
        %4536 = vmatprep.subr.bf16.mxu0 %v4332
        %4537 = vmatpush1.bf16.msra.mxu0 %v4331
        %4538 = vmatprep.subr.bf16.mxu0 %v4340
        %4539 = vmatpush1.bf16.msra.mxu0 %v4339
        %4540 = vmatprep.subr.bf16.mxu0 %v4348
        %4541 = vmatpush1.bf16.msra.mxu0 %v4347
        %4542 = vmatprep.subr.bf16.mxu0 %v4356
        %4543 = vmatpush1.bf16.msra.mxu0 %v4355
        %4544 = vmatprep.subr.bf16.mxu0 %v4364
        %4545 = vmatpush1.bf16.msra.mxu0 %v4363
        %4546 = vmatprep.subr.bf16.mxu0 %v4372
        %4547 = vmatpush1.bf16.msra.mxu0 %v4371
        %4548 = vmatprep.subr.bf16.mxu0 %v4380
        %4549 = vmatpush1.bf16.msra.mxu0 %v4379
        %4550 = vmatprep.mubr.bf16.mxu0 %v4394
        %4551 = vmatmul.mubr.bf16.gmra.mrb[0].mxu0 %v4393
        %v4552 = vpop.f32.mrb[0].mxu0
        %v4553 = vadd.f32 %v4512, %v4552
        %v4554 = vpop.f32.mrb[0].mxu0
        %v4555 = vadd.f32 %v4514, %v4554
        %v4556 = vpop.f32.mrb[0].mxu0
        %v4557 = vpop.f32.mrb[0].mxu0
        %4558 = vdwg.mxu0
        %4559 = vmatprep.subr.bf16.mxu0 %v3878
        %4560 = vmatpush1.bf16.msra.mxu0 %v3877
        %4561 = vmatprep.subr.bf16.mxu0 %v3886
        %4562 = vmatpush1.bf16.msra.mxu0 %v3885
        %4563 = vmatprep.subr.bf16.mxu0 %v3894
        %4564 = vmatpush1.bf16.msra.mxu0 %v3893
        %4565 = vmatprep.subr.bf16.mxu0 %v3902
        %4566 = vmatpush1.bf16.msra.mxu0 %v3901
        %4567 = vmatprep.subr.bf16.mxu0 %v3910
        %4568 = vmatpush1.bf16.msra.mxu0 %v3909
        %4569 = vmatprep.subr.bf16.mxu0 %v3918
        %4570 = vmatpush1.bf16.msra.mxu0 %v3917
        %4571 = vmatprep.subr.bf16.mxu0 %v3926
        %4572 = vmatpush1.bf16.msra.mxu0 %v3925
        %4573 = vmatprep.subr.bf16.mxu0 %v3934
        %4574 = vmatpush1.bf16.msra.mxu0 %v3933
        %4575 = vmatprep.subr.bf16.mxu0 %v3942
        %4576 = vmatpush1.bf16.msra.mxu0 %v3941
        %4577 = vmatprep.subr.bf16.mxu0 %v3950
        %4578 = vmatpush1.bf16.msra.mxu0 %v3949
        %4579 = vmatprep.subr.bf16.mxu0 %v3958
        %4580 = vmatpush1.bf16.msra.mxu0 %v3957
        %4581 = vmatprep.subr.bf16.mxu0 %v3966
        %4582 = vmatpush1.bf16.msra.mxu0 %v3965
        %4583 = vmatprep.subr.bf16.mxu0 %v3974
        %4584 = vmatpush1.bf16.msra.mxu0 %v3973
        %4585 = vmatprep.subr.bf16.mxu0 %v3982
        %4586 = vmatpush1.bf16.msra.mxu0 %v3981
        %4587 = vmatprep.subr.bf16.mxu0 %v3990
        %4588 = vmatpush1.bf16.msra.mxu0 %v3989
        %4589 = vmatprep.subr.bf16.mxu0 %v3998
        %4590 = vmatpush1.bf16.msra.mxu0 %v3997
        %4591 = vmatprep.mubr.bf16.mxu0 %v4388
        %4592 = vmatmul.mubr.bf16.gmra.mrb[0].mxu0 %v4387
        %v4593 = vpop.f32.mrb[0].mxu0
        %v4594 = vadd.f32 0.0, %v4593
        %v4595 = vpop.f32.mrb[0].mxu0
        %v4596 = vadd.f32 0.0, %v4595
        %v4597 = vpop.f32.mrb[0].mxu0
        %v4598 = vpop.f32.mrb[0].mxu0
        %4599 = vdwg.mxu0
        %4600 = vmatprep.subr.bf16.mxu0 %v4006
        %4601 = vmatpush1.bf16.msra.mxu0 %v4005
        %4602 = vmatprep.subr.bf16.mxu0 %v4014
        %4603 = vmatpush1.bf16.msra.mxu0 %v4013
        %4604 = vmatprep.subr.bf16.mxu0 %v4022
        %4605 = vmatpush1.bf16.msra.mxu0 %v4021
        %4606 = vmatprep.subr.bf16.mxu0 %v4030
        %4607 = vmatpush1.bf16.msra.mxu0 %v4029
        %4608 = vmatprep.subr.bf16.mxu0 %v4038
        %4609 = vmatpush1.bf16.msra.mxu0 %v4037
        %4610 = vmatprep.subr.bf16.mxu0 %v4046
        %4611 = vmatpush1.bf16.msra.mxu0 %v4045
        %4612 = vmatprep.subr.bf16.mxu0 %v4054
        %4613 = vmatpush1.bf16.msra.mxu0 %v4053
        %4614 = vmatprep.subr.bf16.mxu0 %v4062
        %4615 = vmatpush1.bf16.msra.mxu0 %v4061
        %4616 = vmatprep.subr.bf16.mxu0 %v4070
        %4617 = vmatpush1.bf16.msra.mxu0 %v4069
        %4618 = vmatprep.subr.bf16.mxu0 %v4078
        %4619 = vmatpush1.bf16.msra.mxu0 %v4077
        %4620 = vmatprep.subr.bf16.mxu0 %v4086
        %4621 = vmatpush1.bf16.msra.mxu0 %v4085
        %4622 = vmatprep.subr.bf16.mxu0 %v4094
        %4623 = vmatpush1.bf16.msra.mxu0 %v4093
        %4624 = vmatprep.subr.bf16.mxu0 %v4102
        %4625 = vmatpush1.bf16.msra.mxu0 %v4101
        %4626 = vmatprep.subr.bf16.mxu0 %v4110
        %4627 = vmatpush1.bf16.msra.mxu0 %v4109
        %4628 = vmatprep.subr.bf16.mxu0 %v4118
        %4629 = vmatpush1.bf16.msra.mxu0 %v4117
        %4630 = vmatprep.subr.bf16.mxu0 %v4126
        %4631 = vmatpush1.bf16.msra.mxu0 %v4125
        %4632 = vmatprep.mubr.bf16.mxu0 %v4390
        %4633 = vmatmul.mubr.bf16.gmra.mrb[0].mxu0 %v4389
        %v4634 = vpop.f32.mrb[0].mxu0
        %v4635 = vadd.f32 %v4594, %v4634
        %v4636 = vpop.f32.mrb[0].mxu0
        %v4637 = vadd.f32 %v4596, %v4636
        %v4638 = vpop.f32.mrb[0].mxu0
        %v4639 = vpop.f32.mrb[0].mxu0
        %4640 = vdwg.mxu0
        %4641 = vmatprep.subr.bf16.mxu0 %v4134
        %4642 = vmatpush1.bf16.msra.mxu0 %v4133
        %4643 = vmatprep.subr.bf16.mxu0 %v4142
        %4644 = vmatpush1.bf16.msra.mxu0 %v4141
        %4645 = vmatprep.subr.bf16.mxu0 %v4150
        %4646 = vmatpush1.bf16.msra.mxu0 %v4149
        %4647 = vmatprep.subr.bf16.mxu0 %v4158
        %4648 = vmatpush1.bf16.msra.mxu0 %v4157
        %4649 = vmatprep.subr.bf16.mxu0 %v4166
        %4650 = vmatpush1.bf16.msra.mxu0 %v4165
        %4651 = vmatprep.subr.bf16.mxu0 %v4174
        %4652 = vmatpush1.bf16.msra.mxu0 %v4173
        %4653 = vmatprep.subr.bf16.mxu0 %v4182
        %4654 = vmatpush1.bf16.msra.mxu0 %v4181
        %4655 = vmatprep.subr.bf16.mxu0 %v4190
        %4656 = vmatpush1.bf16.msra.mxu0 %v4189
        %4657 = vmatprep.subr.bf16.mxu0 %v4198
        %4658 = vmatpush1.bf16.msra.mxu0 %v4197
        %4659 = vmatprep.subr.bf16.mxu0 %v4206
        %4660 = vmatpush1.bf16.msra.mxu0 %v4205
        %4661 = vmatprep.subr.bf16.mxu0 %v4214
        %4662 = vmatpush1.bf16.msra.mxu0 %v4213
        %4663 = vmatprep.subr.bf16.mxu0 %v4222
        %4664 = vmatpush1.bf16.msra.mxu0 %v4221
        %4665 = vmatprep.subr.bf16.mxu0 %v4230
        %4666 = vmatpush1.bf16.msra.mxu0 %v4229
        %4667 = vmatprep.subr.bf16.mxu0 %v4238
        %4668 = vmatpush1.bf16.msra.mxu0 %v4237
        %4669 = vmatprep.subr.bf16.mxu0 %v4246
        %4670 = vmatpush1.bf16.msra.mxu0 %v4245
        %4671 = vmatprep.subr.bf16.mxu0 %v4254
        %4672 = vmatpush1.bf16.msra.mxu0 %v4253
        %4673 = vmatprep.mubr.bf16.mxu0 %v4392
        %4674 = vmatmul.mubr.bf16.gmra.mrb[0].mxu0 %v4391
        %v4675 = vpop.f32.mrb[0].mxu0
        %v4676 = vadd.f32 %v4635, %v4675
        %v4677 = vpop.f32.mrb[0].mxu0
        %v4678 = vadd.f32 %v4637, %v4677
        %v4679 = vpop.f32.mrb[0].mxu0
        %v4680 = vpop.f32.mrb[0].mxu0
        %4681 = vdwg.mxu0
        %4682 = vmatprep.subr.bf16.mxu0 %v4262
        %4683 = vmatpush1.bf16.msra.mxu0 %v4261
        %4684 = vmatprep.subr.bf16.mxu0 %v4270
        %4685 = vmatpush1.bf16.msra.mxu0 %v4269
        %4686 = vmatprep.subr.bf16.mxu0 %v4278
        %4687 = vmatpush1.bf16.msra.mxu0 %v4277
        %4688 = vmatprep.subr.bf16.mxu0 %v4286
        %4689 = vmatpush1.bf16.msra.mxu0 %v4285
        %4690 = vmatprep.subr.bf16.mxu0 %v4294
        %4691 = vmatpush1.bf16.msra.mxu0 %v4293
        %4692 = vmatprep.subr.bf16.mxu0 %v4302
        %4693 = vmatpush1.bf16.msra.mxu0 %v4301
        %4694 = vmatprep.subr.bf16.mxu0 %v4310
        %4695 = vmatpush1.bf16.msra.mxu0 %v4309
        %4696 = vmatprep.subr.bf16.mxu0 %v4318
        %4697 = vmatpush1.bf16.msra.mxu0 %v4317
        %4698 = vmatprep.subr.bf16.mxu0 %v4326
        %4699 = vmatpush1.bf16.msra.mxu0 %v4325
        %4700 = vmatprep.subr.bf16.mxu0 %v4334
        %4701 = vmatpush1.bf16.msra.mxu0 %v4333
        %4702 = vmatprep.subr.bf16.mxu0 %v4342
        %4703 = vmatpush1.bf16.msra.mxu0 %v4341
        %4704 = vmatprep.subr.bf16.mxu0 %v4350
        %4705 = vmatpush1.bf16.msra.mxu0 %v4349
        %4706 = vmatprep.subr.bf16.mxu0 %v4358
        %4707 = vmatpush1.bf16.msra.mxu0 %v4357
        %4708 = vmatprep.subr.bf16.mxu0 %v4366
        %4709 = vmatpush1.bf16.msra.mxu0 %v4365
        %4710 = vmatprep.subr.bf16.mxu0 %v4374
        %4711 = vmatpush1.bf16.msra.mxu0 %v4373
        %4712 = vmatprep.subr.bf16.mxu0 %v4382
        %4713 = vmatpush1.bf16.msra.mxu0 %v4381
        %4714 = vmatprep.mubr.bf16.mxu0 %v4394
        %4715 = vmatmul.mubr.bf16.gmra.mrb[0].mxu0 %v4393
        %v4716 = vpop.f32.mrb[0].mxu0
        %v4717 = vadd.f32 %v4676, %v4716
        %v4718 = vpop.f32.mrb[0].mxu0
        %v4719 = vadd.f32 %v4678, %v4718
        %v4720 = vpop.f32.mrb[0].mxu0
        %v4721 = vpop.f32.mrb[0].mxu0
        %4722 = vdwg.mxu0
        %4723 = vmatprep.subr.bf16.mxu0 %v3880
        %4724 = vmatpush1.bf16.msra.mxu0 %v3879
        %4725 = vmatprep.subr.bf16.mxu0 %v3888
        %4726 = vmatpush1.bf16.msra.mxu0 %v3887
        %4727 = vmatprep.subr.bf16.mxu0 %v3896
        %4728 = vmatpush1.bf16.msra.mxu0 %v3895
        %4729 = vmatprep.subr.bf16.mxu0 %v3904
        %4730 = vmatpush1.bf16.msra.mxu0 %v3903
        %4731 = vmatprep.subr.bf16.mxu0 %v3912
        %4732 = vmatpush1.bf16.msra.mxu0 %v3911
        %4733 = vmatprep.subr.bf16.mxu0 %v3920
        %4734 = vmatpush1.bf16.msra.mxu0 %v3919
        %4735 = vmatprep.subr.bf16.mxu0 %v3928
        %4736 = vmatpush1.bf16.msra.mxu0 %v3927
        %4737 = vmatprep.subr.bf16.mxu0 %v3936
        %4738 = vmatpush1.bf16.msra.mxu0 %v3935
        %4739 = vmatprep.subr.bf16.mxu0 %v3944
        %4740 = vmatpush1.bf16.msra.mxu0 %v3943
        %4741 = vmatprep.subr.bf16.mxu0 %v3952
        %4742 = vmatpush1.bf16.msra.mxu0 %v3951
        %4743 = vmatprep.subr.bf16.mxu0 %v3960
        %4744 = vmatpush1.bf16.msra.mxu0 %v3959
        %4745 = vmatprep.subr.bf16.mxu0 %v3968
        %4746 = vmatpush1.bf16.msra.mxu0 %v3967
        %4747 = vmatprep.subr.bf16.mxu0 %v3976
        %4748 = vmatpush1.bf16.msra.mxu0 %v3975
        %4749 = vmatprep.subr.bf16.mxu0 %v3984
        %4750 = vmatpush1.bf16.msra.mxu0 %v3983
        %4751 = vmatprep.subr.bf16.mxu0 %v3992
        %4752 = vmatpush1.bf16.msra.mxu0 %v3991
        %4753 = vmatprep.subr.bf16.mxu0 %v4000
        %4754 = vmatpush1.bf16.msra.mxu0 %v3999
        %4755 = vmatprep.mubr.bf16.mxu0 %v4388
        %4756 = vmatmul.mubr.bf16.gmra.mrb[0].mxu0 %v4387
        %v4757 = vpop.f32.mrb[0].mxu0
        %v4758 = vadd.f32 0.0, %v4757
        %v4759 = vpop.f32.mrb[0].mxu0
        %v4760 = vadd.f32 0.0, %v4759
        %v4761 = vpop.f32.mrb[0].mxu0
        %v4762 = vpop.f32.mrb[0].mxu0
        %4763 = vdwg.mxu0
        %4764 = vmatprep.subr.bf16.mxu0 %v4008
        %4765 = vmatpush1.bf16.msra.mxu0 %v4007
        %4766 = vmatprep.subr.bf16.mxu0 %v4016
        %4767 = vmatpush1.bf16.msra.mxu0 %v4015
        %4768 = vmatprep.subr.bf16.mxu0 %v4024
        %4769 = vmatpush1.bf16.msra.mxu0 %v4023
        %4770 = vmatprep.subr.bf16.mxu0 %v4032
        %4771 = vmatpush1.bf16.msra.mxu0 %v4031
        %4772 = vmatprep.subr.bf16.mxu0 %v4040
        %4773 = vmatpush1.bf16.msra.mxu0 %v4039
        %4774 = vmatprep.subr.bf16.mxu0 %v4048
        %4775 = vmatpush1.bf16.msra.mxu0 %v4047
        %4776 = vmatprep.subr.bf16.mxu0 %v4056
        %4777 = vmatpush1.bf16.msra.mxu0 %v4055
        %4778 = vmatprep.subr.bf16.mxu0 %v4064
        %4779 = vmatpush1.bf16.msra.mxu0 %v4063
        %4780 = vmatprep.subr.bf16.mxu0 %v4072
        %4781 = vmatpush1.bf16.msra.mxu0 %v4071
        %4782 = vmatprep.subr.bf16.mxu0 %v4080
        %4783 = vmatpush1.bf16.msra.mxu0 %v4079
        %4784 = vmatprep.subr.bf16.mxu0 %v4088
        %4785 = vmatpush1.bf16.msra.mxu0 %v4087
        %4786 = vmatprep.subr.bf16.mxu0 %v4096
        %4787 = vmatpush1.bf16.msra.mxu0 %v4095
        %4788 = vmatprep.subr.bf16.mxu0 %v4104
        %4789 = vmatpush1.bf16.msra.mxu0 %v4103
        %4790 = vmatprep.subr.bf16.mxu0 %v4112
        %4791 = vmatpush1.bf16.msra.mxu0 %v4111
        %4792 = vmatprep.subr.bf16.mxu0 %v4120
        %4793 = vmatpush1.bf16.msra.mxu0 %v4119
        %4794 = vmatprep.subr.bf16.mxu0 %v4128
        %4795 = vmatpush1.bf16.msra.mxu0 %v4127
        %4796 = vmatprep.mubr.bf16.mxu0 %v4390
        %4797 = vmatmul.mubr.bf16.gmra.mrb[0].mxu0 %v4389
        %v4798 = vpop.f32.mrb[0].mxu0
        %v4799 = vadd.f32 %v4758, %v4798
        %v4800 = vpop.f32.mrb[0].mxu0
        %v4801 = vadd.f32 %v4760, %v4800
        %v4802 = vpop.f32.mrb[0].mxu0
        %v4803 = vpop.f32.mrb[0].mxu0
        %4804 = vdwg.mxu0
        %4805 = vmatprep.subr.bf16.mxu0 %v4136
        %4806 = vmatpush1.bf16.msra.mxu0 %v4135
        %4807 = vmatprep.subr.bf16.mxu0 %v4144
        %4808 = vmatpush1.bf16.msra.mxu0 %v4143
        %4809 = vmatprep.subr.bf16.mxu0 %v4152
        %4810 = vmatpush1.bf16.msra.mxu0 %v4151
        %4811 = vmatprep.subr.bf16.mxu0 %v4160
        %4812 = vmatpush1.bf16.msra.mxu0 %v4159
        %4813 = vmatprep.subr.bf16.mxu0 %v4168
        %4814 = vmatpush1.bf16.msra.mxu0 %v4167
        %4815 = vmatprep.subr.bf16.mxu0 %v4176
        %4816 = vmatpush1.bf16.msra.mxu0 %v4175
        %4817 = vmatprep.subr.bf16.mxu0 %v4184
        %4818 = vmatpush1.bf16.msra.mxu0 %v4183
        %4819 = vmatprep.subr.bf16.mxu0 %v4192
        %4820 = vmatpush1.bf16.msra.mxu0 %v4191
        %4821 = vmatprep.subr.bf16.mxu0 %v4200
        %4822 = vmatpush1.bf16.msra.mxu0 %v4199
        %4823 = vmatprep.subr.bf16.mxu0 %v4208
        %4824 = vmatpush1.bf16.msra.mxu0 %v4207
        %4825 = vmatprep.subr.bf16.mxu0 %v4216
        %4826 = vmatpush1.bf16.msra.mxu0 %v4215
        %4827 = vmatprep.subr.bf16.mxu0 %v4224
        %4828 = vmatpush1.bf16.msra.mxu0 %v4223
        %4829 = vmatprep.subr.bf16.mxu0 %v4232
        %4830 = vmatpush1.bf16.msra.mxu0 %v4231
        %4831 = vmatprep.subr.bf16.mxu0 %v4240
        %4832 = vmatpush1.bf16.msra.mxu0 %v4239
        %4833 = vmatprep.subr.bf16.mxu0 %v4248
        %4834 = vmatpush1.bf16.msra.mxu0 %v4247
        %4835 = vmatprep.subr.bf16.mxu0 %v4256
        %4836 = vmatpush1.bf16.msra.mxu0 %v4255
        %4837 = vmatprep.mubr.bf16.mxu0 %v4392
        %4838 = vmatmul.mubr.bf16.gmra.mrb[0].mxu0 %v4391
        %v4839 = vpop.f32.mrb[0].mxu0
        %v4840 = vadd.f32 %v4799, %v4839
        %v4841 = vpop.f32.mrb[0].mxu0
        %v4842 = vadd.f32 %v4801, %v4841
        %v4843 = vpop.f32.mrb[0].mxu0
        %v4844 = vpop.f32.mrb[0].mxu0
        %4845 = vdwg.mxu0
        %4846 = vmatprep.subr.bf16.mxu0 %v4264
        %4847 = vmatpush1.bf16.msra.mxu0 %v4263
        %4848 = vmatprep.subr.bf16.mxu0 %v4272
        %4849 = vmatpush1.bf16.msra.mxu0 %v4271
        %4850 = vmatprep.subr.bf16.mxu0 %v4280
        %4851 = vmatpush1.bf16.msra.mxu0 %v4279
        %4852 = vmatprep.subr.bf16.mxu0 %v4288
        %4853 = vmatpush1.bf16.msra.mxu0 %v4287
        %4854 = vmatprep.subr.bf16.mxu0 %v4296
        %4855 = vmatpush1.bf16.msra.mxu0 %v4295
        %4856 = vmatprep.subr.bf16.mxu0 %v4304
        %4857 = vmatpush1.bf16.msra.mxu0 %v4303
        %4858 = vmatprep.subr.bf16.mxu0 %v4312
        %4859 = vmatpush1.bf16.msra.mxu0 %v4311
        %4860 = vmatprep.subr.bf16.mxu0 %v4320
        %4861 = vmatpush1.bf16.msra.mxu0 %v4319
        %4862 = vmatprep.subr.bf16.mxu0 %v4328
        %4863 = vmatpush1.bf16.msra.mxu0 %v4327
        %4864 = vmatprep.subr.bf16.mxu0 %v4336
        %4865 = vmatpush1.bf16.msra.mxu0 %v4335
        %4866 = vmatprep.subr.bf16.mxu0 %v4344
        %4867 = vmatpush1.bf16.msra.mxu0 %v4343
        %4868 = vmatprep.subr.bf16.mxu0 %v4352
        %4869 = vmatpush1.bf16.msra.mxu0 %v4351
        %4870 = vmatprep.subr.bf16.mxu0 %v4360
        %4871 = vmatpush1.bf16.msra.mxu0 %v4359
        %4872 = vmatprep.subr.bf16.mxu0 %v4368
        %4873 = vmatpush1.bf16.msra.mxu0 %v4367
        %4874 = vmatprep.subr.bf16.mxu0 %v4376
        %4875 = vmatpush1.bf16.msra.mxu0 %v4375
        %4876 = vmatprep.subr.bf16.mxu0 %v4384
        %4877 = vmatpush1.bf16.msra.mxu0 %v4383
        %4878 = vmatprep.mubr.bf16.mxu0 %v4394
        %4879 = vmatmul.mubr.bf16.gmra.mrb[0].mxu0 %v4393
        %v4880 = vpop.f32.mrb[0].mxu0
        %v4881 = vadd.f32 %v4840, %v4880
        %v4882 = vpop.f32.mrb[0].mxu0
        %v4883 = vadd.f32 %v4842, %v4882
        %v4884 = vpop.f32.mrb[0].mxu0
        %v4885 = vpop.f32.mrb[0].mxu0
        %4886 = vdwg.mxu0
        %4887 = vmatprep.subr.bf16.mxu0 %v3882
        %4888 = vmatpush1.bf16.msra.mxu0 %v3881
        %4889 = vmatprep.subr.bf16.mxu0 %v3890
        %4890 = vmatpush1.bf16.msra.mxu0 %v3889
        %4891 = vmatprep.subr.bf16.mxu0 %v3898
        %4892 = vmatpush1.bf16.msra.mxu0 %v3897
        %4893 = vmatprep.subr.bf16.mxu0 %v3906
        %4894 = vmatpush1.bf16.msra.mxu0 %v3905
        %4895 = vmatprep.subr.bf16.mxu0 %v3914
        %4896 = vmatpush1.bf16.msra.mxu0 %v3913
        %4897 = vmatprep.subr.bf16.mxu0 %v3922
        %4898 = vmatpush1.bf16.msra.mxu0 %v3921
        %4899 = vmatprep.subr.bf16.mxu0 %v3930
        %4900 = vmatpush1.bf16.msra.mxu0 %v3929
        %4901 = vmatprep.subr.bf16.mxu0 %v3938
        %4902 = vmatpush1.bf16.msra.mxu0 %v3937
        %4903 = vmatprep.subr.bf16.mxu0 %v3946
        %4904 = vmatpush1.bf16.msra.mxu0 %v3945
        %4905 = vmatprep.subr.bf16.mxu0 %v3954
        %4906 = vmatpush1.bf16.msra.mxu0 %v3953
        %4907 = vmatprep.subr.bf16.mxu0 %v3962
        %4908 = vmatpush1.bf16.msra.mxu0 %v3961
        %4909 = vmatprep.subr.bf16.mxu0 %v3970
        %4910 = vmatpush1.bf16.msra.mxu0 %v3969
        %4911 = vmatprep.subr.bf16.mxu0 %v3978
        %4912 = vmatpush1.bf16.msra.mxu0 %v3977
        %4913 = vmatprep.subr.bf16.mxu0 %v3986
        %4914 = vmatpush1.bf16.msra.mxu0 %v3985
        %4915 = vmatprep.subr.bf16.mxu0 %v3994
        %4916 = vmatpush1.bf16.msra.mxu0 %v3993
        %4917 = vmatprep.subr.bf16.mxu0 %v4002
        %4918 = vmatpush1.bf16.msra.mxu0 %v4001
        %4919 = vmatprep.mubr.bf16.mxu0 %v4388
        %4920 = vmatmul.mubr.bf16.gmra.mrb[0].mxu0 %v4387
        %v4921 = vpop.f32.mrb[0].mxu0
        %v4922 = vadd.f32 0.0, %v4921
        %v4923 = vpop.f32.mrb[0].mxu0
        %v4924 = vadd.f32 0.0, %v4923
        %v4925 = vpop.f32.mrb[0].mxu0
        %v4926 = vpop.f32.mrb[0].mxu0
        %4927 = vdwg.mxu0
        %4928 = vmatprep.subr.bf16.mxu0 %v4010
        %4929 = vmatpush1.bf16.msra.mxu0 %v4009
        %4930 = vmatprep.subr.bf16.mxu0 %v4018
        %4931 = vmatpush1.bf16.msra.mxu0 %v4017
        %4932 = vmatprep.subr.bf16.mxu0 %v4026
        %4933 = vmatpush1.bf16.msra.mxu0 %v4025
        %4934 = vmatprep.subr.bf16.mxu0 %v4034
        %4935 = vmatpush1.bf16.msra.mxu0 %v4033
        %4936 = vmatprep.subr.bf16.mxu0 %v4042
        %4937 = vmatpush1.bf16.msra.mxu0 %v4041
        %4938 = vmatprep.subr.bf16.mxu0 %v4050
        %4939 = vmatpush1.bf16.msra.mxu0 %v4049
        %4940 = vmatprep.subr.bf16.mxu0 %v4058
        %4941 = vmatpush1.bf16.msra.mxu0 %v4057
        %4942 = vmatprep.subr.bf16.mxu0 %v4066
        %4943 = vmatpush1.bf16.msra.mxu0 %v4065
        %4944 = vmatprep.subr.bf16.mxu0 %v4074
        %4945 = vmatpush1.bf16.msra.mxu0 %v4073
        %4946 = vmatprep.subr.bf16.mxu0 %v4082
        %4947 = vmatpush1.bf16.msra.mxu0 %v4081
        %4948 = vmatprep.subr.bf16.mxu0 %v4090
        %4949 = vmatpush1.bf16.msra.mxu0 %v4089
        %4950 = vmatprep.subr.bf16.mxu0 %v4098
        %4951 = vmatpush1.bf16.msra.mxu0 %v4097
        %4952 = vmatprep.subr.bf16.mxu0 %v4106
        %4953 = vmatpush1.bf16.msra.mxu0 %v4105
        %4954 = vmatprep.subr.bf16.mxu0 %v4114
        %4955 = vmatpush1.bf16.msra.mxu0 %v4113
        %4956 = vmatprep.subr.bf16.mxu0 %v4122
        %4957 = vmatpush1.bf16.msra.mxu0 %v4121
        %4958 = vmatprep.subr.bf16.mxu0 %v4130
        %4959 = vmatpush1.bf16.msra.mxu0 %v4129
        %4960 = vmatprep.mubr.bf16.mxu0 %v4390
        %4961 = vmatmul.mubr.bf16.gmra.mrb[0].mxu0 %v4389
        %v4962 = vpop.f32.mrb[0].mxu0
        %v4963 = vadd.f32 %v4922, %v4962
        %v4964 = vpop.f32.mrb[0].mxu0
        %v4965 = vadd.f32 %v4924, %v4964
        %v4966 = vpop.f32.mrb[0].mxu0
        %v4967 = vpop.f32.mrb[0].mxu0
        %4968 = vdwg.mxu0
        %4969 = vmatprep.subr.bf16.mxu0 %v4138
        %4970 = vmatpush1.bf16.msra.mxu0 %v4137
        %4971 = vmatprep.subr.bf16.mxu0 %v4146
        %4972 = vmatpush1.bf16.msra.mxu0 %v4145
        %4973 = vmatprep.subr.bf16.mxu0 %v4154
        %4974 = vmatpush1.bf16.msra.mxu0 %v4153
        %4975 = vmatprep.subr.bf16.mxu0 %v4162
        %4976 = vmatpush1.bf16.msra.mxu0 %v4161
        %4977 = vmatprep.subr.bf16.mxu0 %v4170
        %4978 = vmatpush1.bf16.msra.mxu0 %v4169
        %4979 = vmatprep.subr.bf16.mxu0 %v4178
        %4980 = vmatpush1.bf16.msra.mxu0 %v4177
        %4981 = vmatprep.subr.bf16.mxu0 %v4186
        %4982 = vmatpush1.bf16.msra.mxu0 %v4185
        %4983 = vmatprep.subr.bf16.mxu0 %v4194
        %4984 = vmatpush1.bf16.msra.mxu0 %v4193
        %4985 = vmatprep.subr.bf16.mxu0 %v4202
        %4986 = vmatpush1.bf16.msra.mxu0 %v4201
        %4987 = vmatprep.subr.bf16.mxu0 %v4210
        %4988 = vmatpush1.bf16.msra.mxu0 %v4209
        %4989 = vmatprep.subr.bf16.mxu0 %v4218
        %4990 = vmatpush1.bf16.msra.mxu0 %v4217
        %4991 = vmatprep.subr.bf16.mxu0 %v4226
        %4992 = vmatpush1.bf16.msra.mxu0 %v4225
        %4993 = vmatprep.subr.bf16.mxu0 %v4234
        %4994 = vmatpush1.bf16.msra.mxu0 %v4233
        %4995 = vmatprep.subr.bf16.mxu0 %v4242
        %4996 = vmatpush1.bf16.msra.mxu0 %v4241
        %4997 = vmatprep.subr.bf16.mxu0 %v4250
        %4998 = vmatpush1.bf16.msra.mxu0 %v4249
        %4999 = vmatprep.subr.bf16.mxu0 %v4258
        %5000 = vmatpush1.bf16.msra.mxu0 %v4257
        %5001 = vmatprep.mubr.bf16.mxu0 %v4392
        %5002 = vmatmul.mubr.bf16.gmra.mrb[0].mxu0 %v4391
        %v5003 = vpop.f32.mrb[0].mxu0
        %v5004 = vadd.f32 %v4963, %v5003
        %v5005 = vpop.f32.mrb[0].mxu0
        %v5006 = vadd.f32 %v4965, %v5005
        %v5007 = vpop.f32.mrb[0].mxu0
        %v5008 = vpop.f32.mrb[0].mxu0
        %5009 = vdwg.mxu0
        %5010 = vmatprep.subr.bf16.mxu0 %v4266
        %5011 = vmatpush1.bf16.msra.mxu0 %v4265
        %5012 = vmatprep.subr.bf16.mxu0 %v4274
        %5013 = vmatpush1.bf16.msra.mxu0 %v4273
        %5014 = vmatprep.subr.bf16.mxu0 %v4282
        %5015 = vmatpush1.bf16.msra.mxu0 %v4281
        %5016 = vmatprep.subr.bf16.mxu0 %v4290
        %5017 = vmatpush1.bf16.msra.mxu0 %v4289
        %5018 = vmatprep.subr.bf16.mxu0 %v4298
        %5019 = vmatpush1.bf16.msra.mxu0 %v4297
        %5020 = vmatprep.subr.bf16.mxu0 %v4306
        %5021 = vmatpush1.bf16.msra.mxu0 %v4305
        %5022 = vmatprep.subr.bf16.mxu0 %v4314
        %5023 = vmatpush1.bf16.msra.mxu0 %v4313
        %5024 = vmatprep.subr.bf16.mxu0 %v4322
        %5025 = vmatpush1.bf16.msra.mxu0 %v4321
        %5026 = vmatprep.subr.bf16.mxu0 %v4330
        %5027 = vmatpush1.bf16.msra.mxu0 %v4329
        %5028 = vmatprep.subr.bf16.mxu0 %v4338
        %5029 = vmatpush1.bf16.msra.mxu0 %v4337
        %5030 = vmatprep.subr.bf16.mxu0 %v4346
        %5031 = vmatpush1.bf16.msra.mxu0 %v4345
        %5032 = vmatprep.subr.bf16.mxu0 %v4354
        %5033 = vmatpush1.bf16.msra.mxu0 %v4353
        %5034 = vmatprep.subr.bf16.mxu0 %v4362
        %5035 = vmatpush1.bf16.msra.mxu0 %v4361
        %5036 = vmatprep.subr.bf16.mxu0 %v4370
        %5037 = vmatpush1.bf16.msra.mxu0 %v4369
        %5038 = vmatprep.subr.bf16.mxu0 %v4378
        %5039 = vmatpush1.bf16.msra.mxu0 %v4377
        %5040 = vmatprep.subr.bf16.mxu0 %v4386
        %5041 = vmatpush1.bf16.msra.mxu0 %v4385
        %5042 = vmatprep.mubr.bf16.mxu0 %v4394
        %5043 = vmatmul.mubr.bf16.gmra.mrb[0].mxu0 %v4393
        %v5044 = vpop.f32.mrb[0].mxu0
        %v5045 = vadd.f32 %v5004, %v5044
        %v5046 = vpop.f32.mrb[0].mxu0
        %v5047 = vadd.f32 %v5006, %v5046
        %v5048 = vpop.f32.mrb[0].mxu0
        %v5049 = vpop.f32.mrb[0].mxu0
        %5050 = vdwg.mxu0
        %v5051 = vld [vmem:[%s446] ss:$2 sm:$0xff]
        %s5052 = scalar_lea.vmem %s446, 1 [#allocation17]
        %v5053 = vld [vmem:[%s5052] ss:$2 sm:$0xff]
        %v5055 = vlaneseq
        %v5056 = vshrl.u32 %v5055, 7
        %v5057 = vsub.s32 0, %v5056
        %v5058 = vrot.slane %v5051, %v5057
        %v5059 = vlaneseq
        %v5060 = vshrl.u32 %v5059, 7
        %v5061 = vsub.s32 1, %v5060
        %v5062 = vrot.slane %v5051, %v5061
        %v5063 = vlaneseq
        %v5064 = vshrl.u32 %v5063, 7
        %v5065 = vsub.s32 2, %v5064
        %v5066 = vrot.slane %v5051, %v5065
        %v5067 = vlaneseq
        %v5068 = vshrl.u32 %v5067, 7
        %v5069 = vsub.s32 3, %v5068
        %v5070 = vrot.slane %v5051, %v5069
        %v5071 = vlaneseq
        %v5072 = vshrl.u32 %v5071, 7
        %v5073 = vsub.s32 4, %v5072
        %v5074 = vrot.slane %v5051, %v5073
        %v5075 = vlaneseq
        %v5076 = vshrl.u32 %v5075, 7
        %v5077 = vsub.s32 5, %v5076
        %v5078 = vrot.slane %v5051, %v5077
        %v5079 = vlaneseq
        %v5080 = vshrl.u32 %v5079, 7
        %v5081 = vsub.s32 6, %v5080
        %v5082 = vrot.slane %v5051, %v5081
        %v5083 = vlaneseq
        %v5084 = vshrl.u32 %v5083, 7
        %v5085 = vsub.s32 7, %v5084
        %v5086 = vrot.slane %v5051, %v5085
        %v5095 = vmul.f32 %v4553, %v5058
        %v5096 = vmul.f32 %v4555, %v5062
        %v5097 = vmul.f32 %v4717, %v5066
        %v5098 = vmul.f32 %v4719, %v5070
        %v5099 = vmul.f32 %v4881, %v5074
        %v5100 = vmul.f32 %v4883, %v5078
        %v5101 = vmul.f32 %v5045, %v5082
        %v5102 = vmul.f32 %v5047, %v5086
        %v5104 = vlaneseq
        %v5105 = vshrl.u32 %v5104, 7
        %v5106 = vsub.s32 0, %v5105
        %v5107 = vrot.slane %v5053, %v5106
        %v5108 = vlaneseq
        %v5109 = vshrl.u32 %v5108, 7
        %v5110 = vsub.s32 1, %v5109
        %v5111 = vrot.slane %v5053, %v5110
        %v5112 = vlaneseq
        %v5113 = vshrl.u32 %v5112, 7
        %v5114 = vsub.s32 2, %v5113
        %v5115 = vrot.slane %v5053, %v5114
        %v5116 = vlaneseq
        %v5117 = vshrl.u32 %v5116, 7
        %v5118 = vsub.s32 3, %v5117
        %v5119 = vrot.slane %v5053, %v5118
        %v5120 = vlaneseq
        %v5121 = vshrl.u32 %v5120, 7
        %v5122 = vsub.s32 4, %v5121
        %v5123 = vrot.slane %v5053, %v5122
        %v5124 = vlaneseq
        %v5125 = vshrl.u32 %v5124, 7
        %v5126 = vsub.s32 5, %v5125
        %v5127 = vrot.slane %v5053, %v5126
        %v5128 = vlaneseq
        %v5129 = vshrl.u32 %v5128, 7
        %v5130 = vsub.s32 6, %v5129
        %v5131 = vrot.slane %v5053, %v5130
        %v5132 = vlaneseq
        %v5133 = vshrl.u32 %v5132, 7
        %v5134 = vsub.s32 7, %v5133
        %v5135 = vrot.slane %v5053, %v5134
        %v5144 = vadd.f32 %v5095, %v5107
        %v5145 = vadd.f32 %v5096, %v5111
        %v5146 = vadd.f32 %v5097, %v5115
        %v5147 = vadd.f32 %v5098, %v5119
        %v5148 = vadd.f32 %v5099, %v5123
        %v5149 = vadd.f32 %v5100, %v5127
        %v5150 = vadd.f32 %v5101, %v5131
        %v5151 = vadd.f32 %v5102, %v5135
        %v5152 = vtanh.pop %v5144
        %v5153 = vtanh.pop %v5145
        %v5154 = vtanh.pop %v5146
        %v5155 = vtanh.pop %v5147
        %v5156 = vtanh.pop %v5148
        %v5157 = vtanh.pop %v5149
        %v5158 = vtanh.pop %v5150
        %v5159 = vtanh.pop %v5151
        %5160 = vst [vmem:[%s490] sm:$0xff] %v5152
        %5161 = vst [vmem:[%s490 + $0x8] sm:$0xff] %v5153
        %5162 = vst [vmem:[%s490 + $0x10] sm:$0xff] %v5154
        %5163 = vst [vmem:[%s490 + $0x18] sm:$0xff] %v5155
        %5164 = vst [vmem:[%s490 + $0x20] sm:$0xff] %v5156
        %5165 = vst [vmem:[%s490 + $0x28] sm:$0xff] %v5157
        %5166 = vst [vmem:[%s490 + $0x30] sm:$0xff] %v5158
        %5167 = vst [vmem:[%s490 + $0x38] sm:$0xff] %v5159
        %s5168 = smul.u32 8, %s32
        %p5169 = scmp.lt.s32.totalorder %s5168, 31
        %s5170 = scalar_select %p5169, %s5168, 31
        %s5171 = smul.addr %s5170, 8
        %s5172 = scalar_lea.vmem %s10, %s5171
        // Predicated region
        $region93: #{_generator_forward_impl.1} parent=55 // pred_check
          %p5173 = pneg %p249
        $region94: #{_generator_forward_impl.1} parent=55 // pred_check_branch
          %5175 = sbr.rel (%p5173) target = $region96
        $region95: #{_generator_forward_impl.1} parent=55 // pred_region
          %s5176 = smul.u32 8, %s32
        $region96: #{_generator_forward_impl.1} parent=55 // pred_fallthru
          _
      $region56: #{_generator_forward_impl.1} parent=5 // pred_fallthru
        _
      %p5177 = scmp.le.s32.totalorder 2, %s27
      // Predicated region
      $region97: #{_generator_forward_impl.1} parent=5 // pred_check
        %p5178 = pneg %p5177
      $region98: #{_generator_forward_impl.1} parent=5 // pred_check_branch
        %5180 = sbr.rel (%p5178) target = $region100
      $region99: #{_generator_forward_impl.1} parent=5 // pred_region
        %s5181 = ssub.s32 %s27, 2
        // Predicated region
        $region101: #{_generator_forward_impl.1} parent=99 // pred_check
          %p5182 = pneg %p255
        $region102: #{_generator_forward_impl.1} parent=99 // pred_check_branch
          %5184 = sbr.rel (%p5182) target = $region104
        $region103: #{_generator_forward_impl.1} parent=99 // pred_region
          %s5185 = smul.u32 8, %s33
          %p5186 = scmp.lt.s32.totalorder %s5185, 31
          %s5187 = scalar_select %p5186, %s5185, 31
          %s5188 = smul.addr %s5187, 8
          %s5189 = scalar_lea.vmem %s10, %s5188
        $region104: #{_generator_forward_impl.1} parent=99 // pred_fallthru
          _
      $region100: #{_generator_forward_impl.1} parent=5 // pred_fallthru
        _
    $region6: #{_generator_forward_impl.1} parent=1 // loop_footer
      %s31 = sadd.s32 1, %s27
    $region7: #{_generator_forward_impl.1} parent=1 // loop_footer_branch
      %26 = sbr.rel target = $region3
    $region8: #{_generator_forward_impl.1} parent=1 // loop_exit
      _
    %5190 = vsyncpa [#allocation5], 1
    %s5191 = scalar_lea.sflag [#allocation5], 1
    %5192 = vsyncpa %s5191, 1
    %5193 = vsyncpa [#allocation7], 1
    %5194 = vsyncpa [#allocation10], 1
    %5195 = vsyncpa [#allocation13], 1
    %5196 = vsyncpa [#allocation16], 1
    %s5197 = scalar_lea.sflag [#allocation16], 1
    %5198 = vsyncpa %s5197, 1

</llo_original>
